<compile_context>
chip_gen: v6e
topology: v6e:2x2x1
jax: 0.10.0
libtpu: 0.0.40
codegen_flags: <defaults>
</compile_context>

<pallas_src>
import math

import jax
import jax.numpy as jnp
from jax.experimental import pallas as pl

# ----------------------------- config -----------------------------
B = 2          # batch
S = 8          # sequence length
H = 32         # hidden size (stand-in for 768)
NH = 4         # attention heads
DH = H // NH   # head dim
FFN = 4 * H    # intermediate size
LAYERS = 2
VOCAB = 100
MAX_POS = 16
LN_EPS = 1e-12
BS = B * S
SCALE = 1.0 / math.sqrt(DH)


# ----------------------------- fused kernel -----------------------------

def _layernorm(x, g, b):
    """LayerNorm over the last axis; stats in f32."""
    mu = jnp.mean(x, axis=-1, keepdims=True)
    var = jnp.mean((x - mu) ** 2, axis=-1, keepdims=True)
    return (x - mu) * jax.lax.rsqrt(var + LN_EPS) * g + b


def _fused_bert_kernel(emb_ref, mask_ref, emb_ln_ref,
                       wqkv_ref, bqkv_ref, wo_ref, w1_ref, b1_ref, w2_ref,
                       lvec_ref, pw_ref, pvec_ref, out_ref):
    """Entire BERT encoder + pooler + regression head; everything stays in vregs/VMEM.

    Shapes:
      emb_ref    (BS, H)  f32      mask_ref (B, 1, S) f32 additive
      emb_ln_ref (2, H)   f32      wqkv_ref (L, H, 3H) bf16   bqkv_ref (L, 1, 3H) f32
      wo_ref     (L, H, H) bf16    w1_ref   (L, H, FFN) bf16  b1_ref   (L, 1, FFN) f32
      w2_ref     (L, FFN, H) bf16  lvec_ref (L, 6, H) f32 [bo, ln1_g, ln1_b, b2, ln2_g, ln2_b]
      pw_ref     (2, H, H) bf16 [pool_w, head_w1]
      pvec_ref   (4, H) f32 [pool_b, head_b1, head_w2_row, head_b2(padded)]
      out_ref    (B, 1) f32
    """
    # Embedding layernorm (dropout = identity at inference).
    x = _layernorm(emb_ref[...], emb_ln_ref[0:1, :], emb_ln_ref[1:2, :])
    mask = mask_ref[...]                                   # (B, 1, S)

    for layer in range(LAYERS):
        wqkv = wqkv_ref[layer]                             # (H, 3H) bf16
        bqkv = bqkv_ref[layer]                             # (1, 3H) f32
        wo = wo_ref[layer]                                 # (H, H)  bf16
        w1 = w1_ref[layer]                                 # (H, FFN) bf16
        b1 = b1_ref[layer]                                 # (1, FFN) f32
        w2 = w2_ref[layer]                                 # (FFN, H) bf16
        lv = lvec_ref[layer]                               # (6, H) f32
        bo, ln1_g, ln1_b = lv[0:1, :], lv[1:2, :], lv[2:3, :]
        b2, ln2_g, ln2_b = lv[3:4, :], lv[4:5, :], lv[5:6, :]

        # Fused QKV projection; result held in registers (no VMEM scratch).
        qkv = jnp.dot(x.astype(jnp.bfloat16), wqkv,
                      preferred_element_type=jnp.float32) + bqkv      # (BS, 3H) f32

        # Self-attention: batched over B with 3-D einsums, short loop over NH heads.
        ctx_parts = []
        for h in range(NH):
            c0 = h * DH
            qh = qkv[:, c0:c0 + DH].reshape(B, S, DH)
            kh = qkv[:, H + c0:H + c0 + DH].reshape(B, S, DH)
            vh = qkv[:, 2 * H + c0:2 * H + c0 + DH].reshape(B, S, DH)
            s = jnp.einsum('bqd,bkd->bqk', qh, kh,
                           preferred_element_type=jnp.float32) * SCALE + mask
            s = s - jnp.max(s, axis=-1, keepdims=True)
            p = jnp.exp(s)
            p = p * pl.reciprocal(jnp.sum(p, axis=-1, keepdims=True), approx=True)
            ctx_h = jnp.einsum('bqk,bkd->bqd', p, vh,
                               preferred_element_type=jnp.float32)    # (B, S, DH)
            ctx_parts.append(ctx_h.reshape(BS, DH))
        ctx = jnp.concatenate(ctx_parts, axis=-1)                      # (BS, H)

        attn_out = jnp.dot(ctx.astype(jnp.bfloat16), wo,
                           preferred_element_type=jnp.float32) + bo
        # Residual fused into the layernorm.
        x = _layernorm(x + attn_out, ln1_g, ln1_b)

        # Feed-forward.
        # TODO(synk): HF BertIntermediate uses exact erf-GELU; tanh-approx used here
        # (EUP-friendly), deviation typically ~1e-3.
        hmid = jax.nn.gelu(jnp.dot(x.astype(jnp.bfloat16), w1,
                                   preferred_element_type=jnp.float32) + b1,
                           approximate=True)
        ff = jnp.dot(hmid.astype(jnp.bfloat16), w2,
                     preferred_element_type=jnp.float32) + b2
        x = _layernorm(x + ff, ln2_g, ln2_b)

    # BERT pooler: tanh(Linear(CLS)); CLS rows extracted with a reshape (no gather loop).
    pool_w, head_w1 = pw_ref[0], pw_ref[1]                 # (H, H) bf16
    pv = pvec_ref[...]                                     # (4, H) f32
    pool_b, head_b1 = pv[0:1, :], pv[1:2, :]
    head_w2_row, head_b2 = pv[2:3, :], pv[3:4, 0:1]

    cls = x.reshape(B, S, H)[:, 0, :]                      # (B, H)
    pooled = jnp.tanh(jnp.dot(cls.astype(jnp.bfloat16), pool_w,
                              preferred_element_type=jnp.float32) + pool_b)

    # Regression head: Linear -> ReLU -> dropout(identity) -> Linear(H -> 1).
    h1 = jnp.maximum(jnp.dot(pooled.astype(jnp.bfloat16), head_w1,
                             preferred_element_type=jnp.float32) + head_b1, 0.0)
    # Final (H -> 1) projection as a VPU mul + lane reduce (output dim is 1).
    out_ref[...] = jnp.sum(h1 * head_w2_row, axis=-1, keepdims=True) + head_b2


# ----------------------------- parameters -----------------------------

def init_params(key):
    std = 0.02

    def nrm(k, shape):
        return jax.random.normal(k, shape, jnp.float32) * std

    keys = iter(jax.random.split(key, 64))
    params = {
        "word_emb": nrm(next(keys), (VOCAB, H)),
        "pos_emb": nrm(next(keys), (MAX_POS, H)),
        "type_emb": nrm(next(keys), (2, H)),
        "emb_ln_g": jnp.ones((H,), jnp.float32),
        "emb_ln_b": jnp.zeros((H,), jnp.float32),
        "layers": [],
        "pool_w": nrm(next(keys), (H, H)),
        "pool_b": jnp.zeros((H,), jnp.float32),
        # TODO(synk): exact model_utils.RegressionHead internals unavailable; using
        # Linear -> activation -> dropout(identity) -> Linear with D_in=H, D_out=1.
        "head_w1": nrm(next(keys), (H, H)),
        "head_b1": jnp.zeros((H,), jnp.float32),
        "head_w2": nrm(next(keys), (H, 1)),
        "head_b2": jnp.zeros((1,), jnp.float32),
    }
    for _ in range(LAYERS):
        params["layers"].append({
            "wq": nrm(next(keys), (H, H)), "bq": jnp.zeros((H,), jnp.float32),
            "wk": nrm(next(keys), (H, H)), "bk": jnp.zeros((H,), jnp.float32),
            "wv": nrm(next(keys), (H, H)), "bv": jnp.zeros((H,), jnp.float32),
            "wo": nrm(next(keys), (H, H)), "bo": jnp.zeros((H,), jnp.float32),
            "ln1_g": jnp.ones((H,), jnp.float32), "ln1_b": jnp.zeros((H,), jnp.float32),
            "w1": nrm(next(keys), (H, FFN)), "b1": jnp.zeros((FFN,), jnp.float32),
            "w2": nrm(next(keys), (FFN, H)), "b2": jnp.zeros((H,), jnp.float32),
            "ln2_g": jnp.ones((H,), jnp.float32), "ln2_b": jnp.zeros((H,), jnp.float32),
        })
    return params


def pack_params(p):
    """One-time packing (outside jit): stacks per-layer weights, casts matmul weights to
    bf16, and packs all small vectors into a few lane-dense slabs. Cuts ~30 kernel input
    DMAs down to ~12 and removes per-call concatenation from the forward path."""
    layers = p["layers"]
    wqkv = jnp.stack([jnp.concatenate([l["wq"], l["wk"], l["wv"]], axis=1)
                      for l in layers]).astype(jnp.bfloat16)                 # (L, H, 3H)
    bqkv = jnp.stack([jnp.concatenate([l["bq"], l["bk"], l["bv"]]).reshape(1, 3 * H)
                      for l in layers])                                      # (L, 1, 3H)
    wo = jnp.stack([l["wo"] for l in layers]).astype(jnp.bfloat16)           # (L, H, H)
    w1 = jnp.stack([l["w1"] for l in layers]).astype(jnp.bfloat16)           # (L, H, FFN)
    b1 = jnp.stack([l["b1"].reshape(1, FFN) for l in layers])                # (L, 1, FFN)
    w2 = jnp.stack([l["w2"] for l in layers]).astype(jnp.bfloat16)           # (L, FFN, H)
    lvec = jnp.stack([jnp.stack([l["bo"], l["ln1_g"], l["ln1_b"],
                                 l["b2"], l["ln2_g"], l["ln2_b"]])
                      for l in layers])                                      # (L, 6, H)
    emb_ln = jnp.stack([p["emb_ln_g"], p["emb_ln_b"]])                       # (2, H)
    pw = jnp.stack([p["pool_w"], p["head_w1"]]).astype(jnp.bfloat16)         # (2, H, H)
    pvec = jnp.stack([p["pool_b"], p["head_b1"], p["head_w2"][:, 0],
                      jnp.pad(p["head_b2"], (0, H - 1))])                    # (4, H)
    return {
        "word_emb": p["word_emb"], "pos_emb": p["pos_emb"], "type_emb": p["type_emb"],
        "emb_ln": emb_ln, "wqkv": wqkv, "bqkv": bqkv, "wo": wo,
        "w1": w1, "b1": b1, "w2": w2, "lvec": lvec, "pw": pw, "pvec": pvec,
    }


# ----------------------------- forward -----------------------------

@jax.jit
def bert_regressor_forward(packed, input_ids, attention_masks):
    Bq, Sq = input_ids.shape

    # Embedding gathers + mask folding are plain-JAX glue around the single kernel.
    we = jnp.take(packed["word_emb"], input_ids, axis=0)              # (B, S, H)
    pe = packed["pos_emb"][:Sq][None, :, :]                           # (1, S, H)
    # TODO(synk): token_type_ids assumed all-zero (segment 0), as in single-segment use.
    te = packed["type_emb"][0][None, None, :]
    emb = (we + pe + te).reshape(Bq * Sq, H).astype(jnp.float32)
    mask_add = ((1.0 - attention_masks.astype(jnp.float32)) * -1e9
                ).reshape(Bq, 1, Sq)                                  # (B, 1, S) additive

    # No grid: one kernel invocation; all (packed, tiny) arrays mapped whole into VMEM.
    return pl.pallas_call(
        _fused_bert_kernel,
        out_shape=jax.ShapeDtypeStruct((Bq, 1), jnp.float32),
    )(emb, mask_add, packed["emb_ln"],
      packed["wqkv"], packed["bqkv"], packed["wo"],
      packed["w1"], packed["b1"], packed["w2"],
      packed["lvec"], packed["pw"], packed["pvec"])


# ----------------------------- main -----------------------------

if __name__ == "__main__":
    key = jax.random.PRNGKey(0)
    k_params, k_ids = jax.random.split(key, 2)

    params = init_params(k_params)
    packed = pack_params(params)          # done once, outside the jitted forward

    input_ids = jax.random.randint(k_ids, (B, S), 0, VOCAB, dtype=jnp.int32)
    attention_masks = jnp.ones((B, S), dtype=jnp.float32)

    out = bert_regressor_forward(packed, input_ids, attention_masks)
    out = jax.block_until_ready(out)
    assert out.shape == (B, 1), out.shape
    assert bool(jnp.all(jnp.isfinite(out)))
    print("KERNEL_OK")
</pallas_src>

<mosaic_0001>
module attributes {stable_mosaic.version = 11 : i64} {
  func.func @_fused_bert_kernel(%arg0: memref<16x32xf32, #tpu.memory_space<vmem>>, %arg1: memref<2x1x8xf32, #tpu.memory_space<vmem>>, %arg2: memref<2x32xf32, #tpu.memory_space<vmem>>, %arg3: memref<2x32x96xbf16, #tpu.memory_space<vmem>>, %arg4: memref<2x1x96xf32, #tpu.memory_space<vmem>>, %arg5: memref<2x32x32xbf16, #tpu.memory_space<vmem>>, %arg6: memref<2x32x128xbf16, #tpu.memory_space<vmem>>, %arg7: memref<2x1x128xf32, #tpu.memory_space<vmem>>, %arg8: memref<2x128x32xbf16, #tpu.memory_space<vmem>>, %arg9: memref<2x6x32xf32, #tpu.memory_space<vmem>>, %arg10: memref<2x32x32xbf16, #tpu.memory_space<vmem>>, %arg11: memref<4x32xf32, #tpu.memory_space<vmem>>, %arg12: memref<2x1xf32, #tpu.memory_space<vmem>>) attributes {dimension_semantics = [], scalar_prefetch = 0 : i64, scratch_operands = 0 : i64, tpu.core_type = #tpu.core_type<tc>} {
    %c0 = arith.constant 0 : index
    %c0_0 = arith.constant 0 : index
    %0 = vector.load %arg0[%c0, %c0_0] : memref<16x32xf32, #tpu.memory_space<vmem>>, vector<16x32xf32>
    %c0_1 = arith.constant 0 : index
    %c0_2 = arith.constant 0 : index
    %1 = vector.load %arg2[%c0_1, %c0_2] : memref<2x32xf32, #tpu.memory_space<vmem>>, vector<1x32xf32>
    %c1 = arith.constant 1 : index
    %c0_3 = arith.constant 0 : index
    %2 = vector.load %arg2[%c1, %c0_3] : memref<2x32xf32, #tpu.memory_space<vmem>>, vector<1x32xf32>
    %cst = arith.constant dense<0.000000e+00> : vector<16xf32>
    %3 = vector.multi_reduction <add>, %0, %cst [1] : vector<16x32xf32> to vector<16xf32>
    %4 = vector.shape_cast %3 : vector<16xf32> to vector<16x1xf32>
    %cst_4 = arith.constant 3.200000e+01 : f32
    %5 = vector.broadcast %cst_4 : f32 to vector<16x1xf32>
    %6 = arith.divf %4, %5 : vector<16x1xf32>
    %7 = vector.broadcast %6 : vector<16x1xf32> to vector<16x32xf32>
    %8 = arith.subf %0, %7 : vector<16x32xf32>
    %9 = arith.mulf %8, %8 : vector<16x32xf32>
    %cst_5 = arith.constant dense<0.000000e+00> : vector<16xf32>
    %10 = vector.multi_reduction <add>, %9, %cst_5 [1] : vector<16x32xf32> to vector<16xf32>
    %11 = vector.shape_cast %10 : vector<16xf32> to vector<16x1xf32>
    %cst_6 = arith.constant 3.200000e+01 : f32
    %12 = vector.broadcast %cst_6 : f32 to vector<16x1xf32>
    %13 = arith.divf %11, %12 : vector<16x1xf32>
    %14 = vector.broadcast %6 : vector<16x1xf32> to vector<16x32xf32>
    %15 = arith.subf %0, %14 : vector<16x32xf32>
    %cst_7 = arith.constant 9.99999996E-13 : f32
    %16 = vector.broadcast %cst_7 : f32 to vector<16x1xf32>
    %17 = arith.addf %13, %16 : vector<16x1xf32>
    %18 = math.rsqrt %17 : vector<16x1xf32>
    %19 = vector.broadcast %18 : vector<16x1xf32> to vector<16x32xf32>
    %20 = arith.mulf %15, %19 : vector<16x32xf32>
    %21 = vector.broadcast %1 : vector<1x32xf32> to vector<16x32xf32>
    %22 = arith.mulf %20, %21 : vector<16x32xf32>
    %23 = vector.broadcast %2 : vector<1x32xf32> to vector<16x32xf32>
    %24 = arith.addf %22, %23 : vector<16x32xf32>
    %c0_8 = arith.constant 0 : index
    %c0_9 = arith.constant 0 : index
    %c0_10 = arith.constant 0 : index
    %25 = vector.load %arg1[%c0_8, %c0_9, %c0_10] : memref<2x1x8xf32, #tpu.memory_space<vmem>>, vector<2x1x8xf32>
    %c0_11 = arith.constant 0 : index
    %c0_12 = arith.constant 0 : index
    %c0_13 = arith.constant 0 : index
    %26 = vector.load %arg3[%c0_11, %c0_12, %c0_13] : memref<2x32x96xbf16, #tpu.memory_space<vmem>>, vector<1x32x96xbf16>
    %27 = vector.shape_cast %26 : vector<1x32x96xbf16> to vector<32x96xbf16>
    %c0_14 = arith.constant 0 : index
    %c0_15 = arith.constant 0 : index
    %c0_16 = arith.constant 0 : index
    %28 = vector.load %arg4[%c0_14, %c0_15, %c0_16] : memref<2x1x96xf32, #tpu.memory_space<vmem>>, vector<1x1x96xf32>
    %29 = vector.shape_cast %28 : vector<1x1x96xf32> to vector<1x96xf32>
    %c0_17 = arith.constant 0 : index
    %c0_18 = arith.constant 0 : index
    %c0_19 = arith.constant 0 : index
    %30 = vector.load %arg5[%c0_17, %c0_18, %c0_19] : memref<2x32x32xbf16, #tpu.memory_space<vmem>>, vector<1x32x32xbf16>
    %31 = vector.shape_cast %30 : vector<1x32x32xbf16> to vector<32x32xbf16>
    %c0_20 = arith.constant 0 : index
    %c0_21 = arith.constant 0 : index
    %c0_22 = arith.constant 0 : index
    %32 = vector.load %arg6[%c0_20, %c0_21, %c0_22] : memref<2x32x128xbf16, #tpu.memory_space<vmem>>, vector<1x32x128xbf16>
    %33 = vector.shape_cast %32 : vector<1x32x128xbf16> to vector<32x128xbf16>
    %c0_23 = arith.constant 0 : index
    %c0_24 = arith.constant 0 : index
    %c0_25 = arith.constant 0 : index
    %34 = vector.load %arg7[%c0_23, %c0_24, %c0_25] : memref<2x1x128xf32, #tpu.memory_space<vmem>>, vector<1x1x128xf32>
    %35 = vector.shape_cast %34 : vector<1x1x128xf32> to vector<1x128xf32>
    %c0_26 = arith.constant 0 : index
    %c0_27 = arith.constant 0 : index
    %c0_28 = arith.constant 0 : index
    %36 = vector.load %arg8[%c0_26, %c0_27, %c0_28] : memref<2x128x32xbf16, #tpu.memory_space<vmem>>, vector<1x128x32xbf16>
    %37 = vector.shape_cast %36 : vector<1x128x32xbf16> to vector<128x32xbf16>
    %c0_29 = arith.constant 0 : index
    %c0_30 = arith.constant 0 : index
    %c0_31 = arith.constant 0 : index
    %38 = vector.load %arg9[%c0_29, %c0_30, %c0_31] : memref<2x6x32xf32, #tpu.memory_space<vmem>>, vector<1x6x32xf32>
    %39 = vector.shape_cast %38 : vector<1x6x32xf32> to vector<6x32xf32>
    %40 = vector.extract_strided_slice %39 {offsets = [0, 0], sizes = [1, 32], strides = [1, 1]} : vector<6x32xf32> to vector<1x32xf32>
    %41 = vector.extract_strided_slice %39 {offsets = [1, 0], sizes = [1, 32], strides = [1, 1]} : vector<6x32xf32> to vector<1x32xf32>
    %42 = vector.extract_strided_slice %39 {offsets = [2, 0], sizes = [1, 32], strides = [1, 1]} : vector<6x32xf32> to vector<1x32xf32>
    %43 = vector.extract_strided_slice %39 {offsets = [3, 0], sizes = [1, 32], strides = [1, 1]} : vector<6x32xf32> to vector<1x32xf32>
    %44 = vector.extract_strided_slice %39 {offsets = [4, 0], sizes = [1, 32], strides = [1, 1]} : vector<6x32xf32> to vector<1x32xf32>
    %45 = vector.extract_strided_slice %39 {offsets = [5, 0], sizes = [1, 32], strides = [1, 1]} : vector<6x32xf32> to vector<1x32xf32>
    %46 = arith.truncf %24 : vector<16x32xf32> to vector<16x32xbf16>
    %cst_32 = arith.constant dense<0.000000e+00> : vector<16x96xf32>
    %47 = tpu.matmul %46, %27, %cst_32 {dimension_numbers = #tpu.dot_dimension_numbers<[1], [0], [0], [1], [0, 0, 1, 1], [], []>} : vector<16x32xbf16>, vector<32x96xbf16>, vector<16x96xf32> -> vector<16x96xf32>
    %48 = vector.broadcast %29 : vector<1x96xf32> to vector<16x96xf32>
    %49 = arith.addf %47, %48 : vector<16x96xf32>
    %50 = vector.extract_strided_slice %49 {offsets = [0, 0], sizes = [16, 8], strides = [1, 1]} : vector<16x96xf32> to vector<16x8xf32>
    %51 = vector.shape_cast %50 : vector<16x8xf32> to vector<2x8x8xf32>
    %52 = vector.extract_strided_slice %49 {offsets = [0, 32], sizes = [16, 8], strides = [1, 1]} : vector<16x96xf32> to vector<16x8xf32>
    %53 = vector.shape_cast %52 : vector<16x8xf32> to vector<2x8x8xf32>
    %54 = vector.extract_strided_slice %49 {offsets = [0, 64], sizes = [16, 8], strides = [1, 1]} : vector<16x96xf32> to vector<16x8xf32>
    %55 = vector.shape_cast %54 : vector<16x8xf32> to vector<2x8x8xf32>
    "tpu.trace_start"() <{level = 10 : i32, message = "bqd,bkd->bqk"}> : () -> ()
    %cst_33 = arith.constant dense<0.000000e+00> : vector<2x8x8xf32>
    %56 = tpu.matmul %51, %53, %cst_33 {dimension_numbers = #tpu.dot_dimension_numbers<[2], [2], [1], [1], [0, 0, 0, 1, 1, 1], [0], [0]>} : vector<2x8x8xf32>, vector<2x8x8xf32>, vector<2x8x8xf32> -> vector<2x8x8xf32>
    "tpu.trace_stop"() : () -> ()
    %cst_34 = arith.constant 0.353553385 : f32
    %57 = vector.broadcast %cst_34 : f32 to vector<2x8x8xf32>
    %58 = arith.mulf %56, %57 : vector<2x8x8xf32>
    %59 = vector.broadcast %25 : vector<2x1x8xf32> to vector<2x8x8xf32>
    %60 = arith.addf %58, %59 : vector<2x8x8xf32>
    %cst_35 = arith.constant dense<0xFF800000> : vector<2x8xf32>
    %61 = vector.multi_reduction <maximumf>, %60, %cst_35 [2] : vector<2x8x8xf32> to vector<2x8xf32>
    %62 = vector.shape_cast %61 : vector<2x8xf32> to vector<2x8x1xf32>
    %63 = vector.broadcast %62 : vector<2x8x1xf32> to vector<2x8x8xf32>
    %64 = arith.subf %60, %63 : vector<2x8x8xf32>
    %65 = math.exp %64 : vector<2x8x8xf32>
    %cst_36 = arith.constant dense<0.000000e+00> : vector<2x8xf32>
    %66 = vector.multi_reduction <add>, %65, %cst_36 [2] : vector<2x8x8xf32> to vector<2x8xf32>
    %67 = vector.shape_cast %66 : vector<2x8xf32> to vector<2x8x1xf32>
    %68 = tpu.reciprocal %67 {approx = true} : vector<2x8x1xf32> -> vector<2x8x1xf32>
    %69 = vector.broadcast %68 : vector<2x8x1xf32> to vector<2x8x8xf32>
    %70 = arith.mulf %65, %69 : vector<2x8x8xf32>
    "tpu.trace_start"() <{level = 10 : i32, message = "bqk,bkd->bqd"}> : () -> ()
    %cst_37 = arith.constant dense<0.000000e+00> : vector<2x8x8xf32>
    %71 = tpu.matmul %70, %55, %cst_37 {dimension_numbers = #tpu.dot_dimension_numbers<[2], [1], [1], [2], [0, 0, 0, 1, 1, 2], [0], [0]>} : vector<2x8x8xf32>, vector<2x8x8xf32>, vector<2x8x8xf32> -> vector<2x8x8xf32>
    "tpu.trace_stop"() : () -> ()
    %72 = vector.shape_cast %71 : vector<2x8x8xf32> to vector<16x8xf32>
    %73 = vector.extract_strided_slice %49 {offsets = [0, 8], sizes = [16, 8], strides = [1, 1]} : vector<16x96xf32> to vector<16x8xf32>
    %74 = vector.shape_cast %73 : vector<16x8xf32> to vector<2x8x8xf32>
    %75 = vector.extract_strided_slice %49 {offsets = [0, 40], sizes = [16, 8], strides = [1, 1]} : vector<16x96xf32> to vector<16x8xf32>
    %76 = vector.shape_cast %75 : vector<16x8xf32> to vector<2x8x8xf32>
    %77 = vector.extract_strided_slice %49 {offsets = [0, 72], sizes = [16, 8], strides = [1, 1]} : vector<16x96xf32> to vector<16x8xf32>
    %78 = vector.shape_cast %77 : vector<16x8xf32> to vector<2x8x8xf32>
    "tpu.trace_start"() <{level = 10 : i32, message = "bqd,bkd->bqk"}> : () -> ()
    %cst_38 = arith.constant dense<0.000000e+00> : vector<2x8x8xf32>
    %79 = tpu.matmul %74, %76, %cst_38 {dimension_numbers = #tpu.dot_dimension_numbers<[2], [2], [1], [1], [0, 0, 0, 1, 1, 1], [0], [0]>} : vector<2x8x8xf32>, vector<2x8x8xf32>, vector<2x8x8xf32> -> vector<2x8x8xf32>
    "tpu.trace_stop"() : () -> ()
    %cst_39 = arith.constant 0.353553385 : f32
    %80 = vector.broadcast %cst_39 : f32 to vector<2x8x8xf32>
    %81 = arith.mulf %79, %80 : vector<2x8x8xf32>
    %82 = vector.broadcast %25 : vector<2x1x8xf32> to vector<2x8x8xf32>
    %83 = arith.addf %81, %82 : vector<2x8x8xf32>
    %cst_40 = arith.constant dense<0xFF800000> : vector<2x8xf32>
    %84 = vector.multi_reduction <maximumf>, %83, %cst_40 [2] : vector<2x8x8xf32> to vector<2x8xf32>
    %85 = vector.shape_cast %84 : vector<2x8xf32> to vector<2x8x1xf32>
    %86 = vector.broadcast %85 : vector<2x8x1xf32> to vector<2x8x8xf32>
    %87 = arith.subf %83, %86 : vector<2x8x8xf32>
    %88 = math.exp %87 : vector<2x8x8xf32>
    %cst_41 = arith.constant dense<0.000000e+00> : vector<2x8xf32>
    %89 = vector.multi_reduction <add>, %88, %cst_41 [2] : vector<2x8x8xf32> to vector<2x8xf32>
    %90 = vector.shape_cast %89 : vector<2x8xf32> to vector<2x8x1xf32>
    %91 = tpu.reciprocal %90 {approx = true} : vector<2x8x1xf32> -> vector<2x8x1xf32>
    %92 = vector.broadcast %91 : vector<2x8x1xf32> to vector<2x8x8xf32>
    %93 = arith.mulf %88, %92 : vector<2x8x8xf32>
    "tpu.trace_start"() <{level = 10 : i32, message = "bqk,bkd->bqd"}> : () -> ()
    %cst_42 = arith.constant dense<0.000000e+00> : vector<2x8x8xf32>
    %94 = tpu.matmul %93, %78, %cst_42 {dimension_numbers = #tpu.dot_dimension_numbers<[2], [1], [1], [2], [0, 0, 0, 1, 1, 2], [0], [0]>} : vector<2x8x8xf32>, vector<2x8x8xf32>, vector<2x8x8xf32> -> vector<2x8x8xf32>
    "tpu.trace_stop"() : () -> ()
    %95 = vector.shape_cast %94 : vector<2x8x8xf32> to vector<16x8xf32>
    %96 = vector.extract_strided_slice %49 {offsets = [0, 16], sizes = [16, 8], strides = [1, 1]} : vector<16x96xf32> to vector<16x8xf32>
    %97 = vector.shape_cast %96 : vector<16x8xf32> to vector<2x8x8xf32>
    %98 = vector.extract_strided_slice %49 {offsets = [0, 48], sizes = [16, 8], strides = [1, 1]} : vector<16x96xf32> to vector<16x8xf32>
    %99 = vector.shape_cast %98 : vector<16x8xf32> to vector<2x8x8xf32>
    %100 = vector.extract_strided_slice %49 {offsets = [0, 80], sizes = [16, 8], strides = [1, 1]} : vector<16x96xf32> to vector<16x8xf32>
    %101 = vector.shape_cast %100 : vector<16x8xf32> to vector<2x8x8xf32>
    "tpu.trace_start"() <{level = 10 : i32, message = "bqd,bkd->bqk"}> : () -> ()
    %cst_43 = arith.constant dense<0.000000e+00> : vector<2x8x8xf32>
    %102 = tpu.matmul %97, %99, %cst_43 {dimension_numbers = #tpu.dot_dimension_numbers<[2], [2], [1], [1], [0, 0, 0, 1, 1, 1], [0], [0]>} : vector<2x8x8xf32>, vector<2x8x8xf32>, vector<2x8x8xf32> -> vector<2x8x8xf32>
    "tpu.trace_stop"() : () -> ()
    %cst_44 = arith.constant 0.353553385 : f32
    %103 = vector.broadcast %cst_44 : f32 to vector<2x8x8xf32>
    %104 = arith.mulf %102, %103 : vector<2x8x8xf32>
    %105 = vector.broadcast %25 : vector<2x1x8xf32> to vector<2x8x8xf32>
    %106 = arith.addf %104, %105 : vector<2x8x8xf32>
    %cst_45 = arith.constant dense<0xFF800000> : vector<2x8xf32>
    %107 = vector.multi_reduction <maximumf>, %106, %cst_45 [2] : vector<2x8x8xf32> to vector<2x8xf32>
    %108 = vector.shape_cast %107 : vector<2x8xf32> to vector<2x8x1xf32>
    %109 = vector.broadcast %108 : vector<2x8x1xf32> to vector<2x8x8xf32>
    %110 = arith.subf %106, %109 : vector<2x8x8xf32>
    %111 = math.exp %110 : vector<2x8x8xf32>
    %cst_46 = arith.constant dense<0.000000e+00> : vector<2x8xf32>
    %112 = vector.multi_reduction <add>, %111, %cst_46 [2] : vector<2x8x8xf32> to vector<2x8xf32>
    %113 = vector.shape_cast %112 : vector<2x8xf32> to vector<2x8x1xf32>
    %114 = tpu.reciprocal %113 {approx = true} : vector<2x8x1xf32> -> vector<2x8x1xf32>
    %115 = vector.broadcast %114 : vector<2x8x1xf32> to vector<2x8x8xf32>
    %116 = arith.mulf %111, %115 : vector<2x8x8xf32>
    "tpu.trace_start"() <{level = 10 : i32, message = "bqk,bkd->bqd"}> : () -> ()
    %cst_47 = arith.constant dense<0.000000e+00> : vector<2x8x8xf32>
    %117 = tpu.matmul %116, %101, %cst_47 {dimension_numbers = #tpu.dot_dimension_numbers<[2], [1], [1], [2], [0, 0, 0, 1, 1, 2], [0], [0]>} : vector<2x8x8xf32>, vector<2x8x8xf32>, vector<2x8x8xf32> -> vector<2x8x8xf32>
    "tpu.trace_stop"() : () -> ()
    %118 = vector.shape_cast %117 : vector<2x8x8xf32> to vector<16x8xf32>
    %119 = vector.extract_strided_slice %49 {offsets = [0, 24], sizes = [16, 8], strides = [1, 1]} : vector<16x96xf32> to vector<16x8xf32>
    %120 = vector.shape_cast %119 : vector<16x8xf32> to vector<2x8x8xf32>
    %121 = vector.extract_strided_slice %49 {offsets = [0, 56], sizes = [16, 8], strides = [1, 1]} : vector<16x96xf32> to vector<16x8xf32>
    %122 = vector.shape_cast %121 : vector<16x8xf32> to vector<2x8x8xf32>
    %123 = vector.extract_strided_slice %49 {offsets = [0, 88], sizes = [16, 8], strides = [1, 1]} : vector<16x96xf32> to vector<16x8xf32>
    %124 = vector.shape_cast %123 : vector<16x8xf32> to vector<2x8x8xf32>
    "tpu.trace_start"() <{level = 10 : i32, message = "bqd,bkd->bqk"}> : () -> ()
    %cst_48 = arith.constant dense<0.000000e+00> : vector<2x8x8xf32>
    %125 = tpu.matmul %120, %122, %cst_48 {dimension_numbers = #tpu.dot_dimension_numbers<[2], [2], [1], [1], [0, 0, 0, 1, 1, 1], [0], [0]>} : vector<2x8x8xf32>, vector<2x8x8xf32>, vector<2x8x8xf32> -> vector<2x8x8xf32>
    "tpu.trace_stop"() : () -> ()
    %cst_49 = arith.constant 0.353553385 : f32
    %126 = vector.broadcast %cst_49 : f32 to vector<2x8x8xf32>
    %127 = arith.mulf %125, %126 : vector<2x8x8xf32>
    %128 = vector.broadcast %25 : vector<2x1x8xf32> to vector<2x8x8xf32>
    %129 = arith.addf %127, %128 : vector<2x8x8xf32>
    %cst_50 = arith.constant dense<0xFF800000> : vector<2x8xf32>
    %130 = vector.multi_reduction <maximumf>, %129, %cst_50 [2] : vector<2x8x8xf32> to vector<2x8xf32>
    %131 = vector.shape_cast %130 : vector<2x8xf32> to vector<2x8x1xf32>
    %132 = vector.broadcast %131 : vector<2x8x1xf32> to vector<2x8x8xf32>
    %133 = arith.subf %129, %132 : vector<2x8x8xf32>
    %134 = math.exp %133 : vector<2x8x8xf32>
    %cst_51 = arith.constant dense<0.000000e+00> : vector<2x8xf32>
    %135 = vector.multi_reduction <add>, %134, %cst_51 [2] : vector<2x8x8xf32> to vector<2x8xf32>
    %136 = vector.shape_cast %135 : vector<2x8xf32> to vector<2x8x1xf32>
    %137 = tpu.reciprocal %136 {approx = true} : vector<2x8x1xf32> -> vector<2x8x1xf32>
    %138 = vector.broadcast %137 : vector<2x8x1xf32> to vector<2x8x8xf32>
    %139 = arith.mulf %134, %138 : vector<2x8x8xf32>
    "tpu.trace_start"() <{level = 10 : i32, message = "bqk,bkd->bqd"}> : () -> ()
    %cst_52 = arith.constant dense<0.000000e+00> : vector<2x8x8xf32>
    %140 = tpu.matmul %139, %124, %cst_52 {dimension_numbers = #tpu.dot_dimension_numbers<[2], [1], [1], [2], [0, 0, 0, 1, 1, 2], [0], [0]>} : vector<2x8x8xf32>, vector<2x8x8xf32>, vector<2x8x8xf32> -> vector<2x8x8xf32>
    "tpu.trace_stop"() : () -> ()
    %141 = vector.shape_cast %140 : vector<2x8x8xf32> to vector<16x8xf32>
    %142 = tpu.concatenate %72, %95, %118, %141 in 1 : vector<16x8xf32>, vector<16x8xf32>, vector<16x8xf32>, vector<16x8xf32> -> vector<16x32xf32>
    %143 = arith.truncf %142 : vector<16x32xf32> to vector<16x32xbf16>
    %cst_53 = arith.constant dense<0.000000e+00> : vector<16x32xf32>
    %144 = tpu.matmul %143, %31, %cst_53 {dimension_numbers = #tpu.dot_dimension_numbers<[1], [0], [0], [1], [0, 0, 1, 1], [], []>} : vector<16x32xbf16>, vector<32x32xbf16>, vector<16x32xf32> -> vector<16x32xf32>
    %145 = vector.broadcast %40 : vector<1x32xf32> to vector<16x32xf32>
    %146 = arith.addf %144, %145 : vector<16x32xf32>
    %147 = arith.addf %24, %146 : vector<16x32xf32>
    %cst_54 = arith.constant dense<0.000000e+00> : vector<16xf32>
    %148 = vector.multi_reduction <add>, %147, %cst_54 [1] : vector<16x32xf32> to vector<16xf32>
    %149 = vector.shape_cast %148 : vector<16xf32> to vector<16x1xf32>
    %cst_55 = arith.constant 3.200000e+01 : f32
    %150 = vector.broadcast %cst_55 : f32 to vector<16x1xf32>
    %151 = arith.divf %149, %150 : vector<16x1xf32>
    %152 = vector.broadcast %151 : vector<16x1xf32> to vector<16x32xf32>
    %153 = arith.subf %147, %152 : vector<16x32xf32>
    %154 = arith.mulf %153, %153 : vector<16x32xf32>
    %cst_56 = arith.constant dense<0.000000e+00> : vector<16xf32>
    %155 = vector.multi_reduction <add>, %154, %cst_56 [1] : vector<16x32xf32> to vector<16xf32>
    %156 = vector.shape_cast %155 : vector<16xf32> to vector<16x1xf32>
    %cst_57 = arith.constant 3.200000e+01 : f32
    %157 = vector.broadcast %cst_57 : f32 to vector<16x1xf32>
    %158 = arith.divf %156, %157 : vector<16x1xf32>
    %159 = vector.broadcast %151 : vector<16x1xf32> to vector<16x32xf32>
    %160 = arith.subf %147, %159 : vector<16x32xf32>
    %cst_58 = arith.constant 9.99999996E-13 : f32
    %161 = vector.broadcast %cst_58 : f32 to vector<16x1xf32>
    %162 = arith.addf %158, %161 : vector<16x1xf32>
    %163 = math.rsqrt %162 : vector<16x1xf32>
    %164 = vector.broadcast %163 : vector<16x1xf32> to vector<16x32xf32>
    %165 = arith.mulf %160, %164 : vector<16x32xf32>
    %166 = vector.broadcast %41 : vector<1x32xf32> to vector<16x32xf32>
    %167 = arith.mulf %165, %166 : vector<16x32xf32>
    %168 = vector.broadcast %42 : vector<1x32xf32> to vector<16x32xf32>
    %169 = arith.addf %167, %168 : vector<16x32xf32>
    %170 = arith.truncf %169 : vector<16x32xf32> to vector<16x32xbf16>
    %cst_59 = arith.constant dense<0.000000e+00> : vector<16x128xf32>
    %171 = tpu.matmul %170, %33, %cst_59 {dimension_numbers = #tpu.dot_dimension_numbers<[1], [0], [0], [1], [0, 0, 1, 1], [], []>} : vector<16x32xbf16>, vector<32x128xbf16>, vector<16x128xf32> -> vector<16x128xf32>
    %172 = vector.broadcast %35 : vector<1x128xf32> to vector<16x128xf32>
    %173 = arith.addf %171, %172 : vector<16x128xf32>
    %174 = arith.mulf %173, %173 : vector<16x128xf32>
    %175 = arith.mulf %173, %174 : vector<16x128xf32>
    %cst_60 = arith.constant 4.471500e-02 : f32
    %176 = vector.broadcast %cst_60 : f32 to vector<16x128xf32>
    %177 = arith.mulf %176, %175 : vector<16x128xf32>
    %178 = arith.addf %173, %177 : vector<16x128xf32>
    %cst_61 = arith.constant 0.797884583 : f32
    %179 = vector.broadcast %cst_61 : f32 to vector<16x128xf32>
    %180 = arith.mulf %179, %178 : vector<16x128xf32>
    %181 = math.tanh %180 : vector<16x128xf32>
    %cst_62 = arith.constant 1.000000e+00 : f32
    %182 = vector.broadcast %cst_62 : f32 to vector<16x128xf32>
    %183 = arith.addf %182, %181 : vector<16x128xf32>
    %cst_63 = arith.constant 5.000000e-01 : f32
    %184 = vector.broadcast %cst_63 : f32 to vector<16x128xf32>
    %185 = arith.mulf %184, %183 : vector<16x128xf32>
    %186 = arith.mulf %173, %185 : vector<16x128xf32>
    %187 = arith.truncf %186 : vector<16x128xf32> to vector<16x128xbf16>
    %cst_64 = arith.constant dense<0.000000e+00> : vector<16x32xf32>
    %188 = tpu.matmul %187, %37, %cst_64 {dimension_numbers = #tpu.dot_dimension_numbers<[1], [0], [0], [1], [0, 0, 1, 1], [], []>} : vector<16x128xbf16>, vector<128x32xbf16>, vector<16x32xf32> -> vector<16x32xf32>
    %189 = vector.broadcast %43 : vector<1x32xf32> to vector<16x32xf32>
    %190 = arith.addf %188, %189 : vector<16x32xf32>
    %191 = arith.addf %169, %190 : vector<16x32xf32>
    %cst_65 = arith.constant dense<0.000000e+00> : vector<16xf32>
    %192 = vector.multi_reduction <add>, %191, %cst_65 [1] : vector<16x32xf32> to vector<16xf32>
    %193 = vector.shape_cast %192 : vector<16xf32> to vector<16x1xf32>
    %cst_66 = arith.constant 3.200000e+01 : f32
    %194 = vector.broadcast %cst_66 : f32 to vector<16x1xf32>
    %195 = arith.divf %193, %194 : vector<16x1xf32>
    %196 = vector.broadcast %195 : vector<16x1xf32> to vector<16x32xf32>
    %197 = arith.subf %191, %196 : vector<16x32xf32>
    %198 = arith.mulf %197, %197 : vector<16x32xf32>
    %cst_67 = arith.constant dense<0.000000e+00> : vector<16xf32>
    %199 = vector.multi_reduction <add>, %198, %cst_67 [1] : vector<16x32xf32> to vector<16xf32>
    %200 = vector.shape_cast %199 : vector<16xf32> to vector<16x1xf32>
    %cst_68 = arith.constant 3.200000e+01 : f32
    %201 = vector.broadcast %cst_68 : f32 to vector<16x1xf32>
    %202 = arith.divf %200, %201 : vector<16x1xf32>
    %203 = vector.broadcast %195 : vector<16x1xf32> to vector<16x32xf32>
    %204 = arith.subf %191, %203 : vector<16x32xf32>
    %cst_69 = arith.constant 9.99999996E-13 : f32
    %205 = vector.broadcast %cst_69 : f32 to vector<16x1xf32>
    %206 = arith.addf %202, %205 : vector<16x1xf32>
    %207 = math.rsqrt %206 : vector<16x1xf32>
    %208 = vector.broadcast %207 : vector<16x1xf32> to vector<16x32xf32>
    %209 = arith.mulf %204, %208 : vector<16x32xf32>
    %210 = vector.broadcast %44 : vector<1x32xf32> to vector<16x32xf32>
    %211 = arith.mulf %209, %210 : vector<16x32xf32>
    %212 = vector.broadcast %45 : vector<1x32xf32> to vector<16x32xf32>
    %213 = arith.addf %211, %212 : vector<16x32xf32>
    %c1_70 = arith.constant 1 : index
    %c0_71 = arith.constant 0 : index
    %c0_72 = arith.constant 0 : index
    %214 = vector.load %arg3[%c1_70, %c0_71, %c0_72] : memref<2x32x96xbf16, #tpu.memory_space<vmem>>, vector<1x32x96xbf16>
    %215 = vector.shape_cast %214 : vector<1x32x96xbf16> to vector<32x96xbf16>
    %c1_73 = arith.constant 1 : index
    %c0_74 = arith.constant 0 : index
    %c0_75 = arith.constant 0 : index
    %216 = vector.load %arg4[%c1_73, %c0_74, %c0_75] : memref<2x1x96xf32, #tpu.memory_space<vmem>>, vector<1x1x96xf32>
    %217 = vector.shape_cast %216 : vector<1x1x96xf32> to vector<1x96xf32>
    %c1_76 = arith.constant 1 : index
    %c0_77 = arith.constant 0 : index
    %c0_78 = arith.constant 0 : index
    %218 = vector.load %arg5[%c1_76, %c0_77, %c0_78] : memref<2x32x32xbf16, #tpu.memory_space<vmem>>, vector<1x32x32xbf16>
    %219 = vector.shape_cast %218 : vector<1x32x32xbf16> to vector<32x32xbf16>
    %c1_79 = arith.constant 1 : index
    %c0_80 = arith.constant 0 : index
    %c0_81 = arith.constant 0 : index
    %220 = vector.load %arg6[%c1_79, %c0_80, %c0_81] : memref<2x32x128xbf16, #tpu.memory_space<vmem>>, vector<1x32x128xbf16>
    %221 = vector.shape_cast %220 : vector<1x32x128xbf16> to vector<32x128xbf16>
    %c1_82 = arith.constant 1 : index
    %c0_83 = arith.constant 0 : index
    %c0_84 = arith.constant 0 : index
    %222 = vector.load %arg7[%c1_82, %c0_83, %c0_84] : memref<2x1x128xf32, #tpu.memory_space<vmem>>, vector<1x1x128xf32>
    %223 = vector.shape_cast %222 : vector<1x1x128xf32> to vector<1x128xf32>
    %c1_85 = arith.constant 1 : index
    %c0_86 = arith.constant 0 : index
    %c0_87 = arith.constant 0 : index
    %224 = vector.load %arg8[%c1_85, %c0_86, %c0_87] : memref<2x128x32xbf16, #tpu.memory_space<vmem>>, vector<1x128x32xbf16>
    %225 = vector.shape_cast %224 : vector<1x128x32xbf16> to vector<128x32xbf16>
    %c1_88 = arith.constant 1 : index
    %c0_89 = arith.constant 0 : index
    %c0_90 = arith.constant 0 : index
    %226 = vector.load %arg9[%c1_88, %c0_89, %c0_90] : memref<2x6x32xf32, #tpu.memory_space<vmem>>, vector<1x6x32xf32>
    %227 = vector.shape_cast %226 : vector<1x6x32xf32> to vector<6x32xf32>
    %228 = vector.extract_strided_slice %227 {offsets = [0, 0], sizes = [1, 32], strides = [1, 1]} : vector<6x32xf32> to vector<1x32xf32>
    %229 = vector.extract_strided_slice %227 {offsets = [1, 0], sizes = [1, 32], strides = [1, 1]} : vector<6x32xf32> to vector<1x32xf32>
    %230 = vector.extract_strided_slice %227 {offsets = [2, 0], sizes = [1, 32], strides = [1, 1]} : vector<6x32xf32> to vector<1x32xf32>
    %231 = vector.extract_strided_slice %227 {offsets = [3, 0], sizes = [1, 32], strides = [1, 1]} : vector<6x32xf32> to vector<1x32xf32>
    %232 = vector.extract_strided_slice %227 {offsets = [4, 0], sizes = [1, 32], strides = [1, 1]} : vector<6x32xf32> to vector<1x32xf32>
    %233 = vector.extract_strided_slice %227 {offsets = [5, 0], sizes = [1, 32], strides = [1, 1]} : vector<6x32xf32> to vector<1x32xf32>
    %234 = arith.truncf %213 : vector<16x32xf32> to vector<16x32xbf16>
    %cst_91 = arith.constant dense<0.000000e+00> : vector<16x96xf32>
    %235 = tpu.matmul %234, %215, %cst_91 {dimension_numbers = #tpu.dot_dimension_numbers<[1], [0], [0], [1], [0, 0, 1, 1], [], []>} : vector<16x32xbf16>, vector<32x96xbf16>, vector<16x96xf32> -> vector<16x96xf32>
    %236 = vector.broadcast %217 : vector<1x96xf32> to vector<16x96xf32>
    %237 = arith.addf %235, %236 : vector<16x96xf32>
    %238 = vector.extract_strided_slice %237 {offsets = [0, 0], sizes = [16, 8], strides = [1, 1]} : vector<16x96xf32> to vector<16x8xf32>
    %239 = vector.shape_cast %238 : vector<16x8xf32> to vector<2x8x8xf32>
    %240 = vector.extract_strided_slice %237 {offsets = [0, 32], sizes = [16, 8], strides = [1, 1]} : vector<16x96xf32> to vector<16x8xf32>
    %241 = vector.shape_cast %240 : vector<16x8xf32> to vector<2x8x8xf32>
    %242 = vector.extract_strided_slice %237 {offsets = [0, 64], sizes = [16, 8], strides = [1, 1]} : vector<16x96xf32> to vector<16x8xf32>
    %243 = vector.shape_cast %242 : vector<16x8xf32> to vector<2x8x8xf32>
    "tpu.trace_start"() <{level = 10 : i32, message = "bqd,bkd->bqk"}> : () -> ()
    %cst_92 = arith.constant dense<0.000000e+00> : vector<2x8x8xf32>
    %244 = tpu.matmul %239, %241, %cst_92 {dimension_numbers = #tpu.dot_dimension_numbers<[2], [2], [1], [1], [0, 0, 0, 1, 1, 1], [0], [0]>} : vector<2x8x8xf32>, vector<2x8x8xf32>, vector<2x8x8xf32> -> vector<2x8x8xf32>
    "tpu.trace_stop"() : () -> ()
    %cst_93 = arith.constant 0.353553385 : f32
    %245 = vector.broadcast %cst_93 : f32 to vector<2x8x8xf32>
    %246 = arith.mulf %244, %245 : vector<2x8x8xf32>
    %247 = vector.broadcast %25 : vector<2x1x8xf32> to vector<2x8x8xf32>
    %248 = arith.addf %246, %247 : vector<2x8x8xf32>
    %cst_94 = arith.constant dense<0xFF800000> : vector<2x8xf32>
    %249 = vector.multi_reduction <maximumf>, %248, %cst_94 [2] : vector<2x8x8xf32> to vector<2x8xf32>
    %250 = vector.shape_cast %249 : vector<2x8xf32> to vector<2x8x1xf32>
    %251 = vector.broadcast %250 : vector<2x8x1xf32> to vector<2x8x8xf32>
    %252 = arith.subf %248, %251 : vector<2x8x8xf32>
    %253 = math.exp %252 : vector<2x8x8xf32>
    %cst_95 = arith.constant dense<0.000000e+00> : vector<2x8xf32>
    %254 = vector.multi_reduction <add>, %253, %cst_95 [2] : vector<2x8x8xf32> to vector<2x8xf32>
    %255 = vector.shape_cast %254 : vector<2x8xf32> to vector<2x8x1xf32>
    %256 = tpu.reciprocal %255 {approx = true} : vector<2x8x1xf32> -> vector<2x8x1xf32>
    %257 = vector.broadcast %256 : vector<2x8x1xf32> to vector<2x8x8xf32>
    %258 = arith.mulf %253, %257 : vector<2x8x8xf32>
    "tpu.trace_start"() <{level = 10 : i32, message = "bqk,bkd->bqd"}> : () -> ()
    %cst_96 = arith.constant dense<0.000000e+00> : vector<2x8x8xf32>
    %259 = tpu.matmul %258, %243, %cst_96 {dimension_numbers = #tpu.dot_dimension_numbers<[2], [1], [1], [2], [0, 0, 0, 1, 1, 2], [0], [0]>} : vector<2x8x8xf32>, vector<2x8x8xf32>, vector<2x8x8xf32> -> vector<2x8x8xf32>
    "tpu.trace_stop"() : () -> ()
    %260 = vector.shape_cast %259 : vector<2x8x8xf32> to vector<16x8xf32>
    %261 = vector.extract_strided_slice %237 {offsets = [0, 8], sizes = [16, 8], strides = [1, 1]} : vector<16x96xf32> to vector<16x8xf32>
    %262 = vector.shape_cast %261 : vector<16x8xf32> to vector<2x8x8xf32>
    %263 = vector.extract_strided_slice %237 {offsets = [0, 40], sizes = [16, 8], strides = [1, 1]} : vector<16x96xf32> to vector<16x8xf32>
    %264 = vector.shape_cast %263 : vector<16x8xf32> to vector<2x8x8xf32>
    %265 = vector.extract_strided_slice %237 {offsets = [0, 72], sizes = [16, 8], strides = [1, 1]} : vector<16x96xf32> to vector<16x8xf32>
    %266 = vector.shape_cast %265 : vector<16x8xf32> to vector<2x8x8xf32>
    "tpu.trace_start"() <{level = 10 : i32, message = "bqd,bkd->bqk"}> : () -> ()
    %cst_97 = arith.constant dense<0.000000e+00> : vector<2x8x8xf32>
    %267 = tpu.matmul %262, %264, %cst_97 {dimension_numbers = #tpu.dot_dimension_numbers<[2], [2], [1], [1], [0, 0, 0, 1, 1, 1], [0], [0]>} : vector<2x8x8xf32>, vector<2x8x8xf32>, vector<2x8x8xf32> -> vector<2x8x8xf32>
    "tpu.trace_stop"() : () -> ()
    %cst_98 = arith.constant 0.353553385 : f32
    %268 = vector.broadcast %cst_98 : f32 to vector<2x8x8xf32>
    %269 = arith.mulf %267, %268 : vector<2x8x8xf32>
    %270 = vector.broadcast %25 : vector<2x1x8xf32> to vector<2x8x8xf32>
    %271 = arith.addf %269, %270 : vector<2x8x8xf32>
    %cst_99 = arith.constant dense<0xFF800000> : vector<2x8xf32>
    %272 = vector.multi_reduction <maximumf>, %271, %cst_99 [2] : vector<2x8x8xf32> to vector<2x8xf32>
    %273 = vector.shape_cast %272 : vector<2x8xf32> to vector<2x8x1xf32>
    %274 = vector.broadcast %273 : vector<2x8x1xf32> to vector<2x8x8xf32>
    %275 = arith.subf %271, %274 : vector<2x8x8xf32>
    %276 = math.exp %275 : vector<2x8x8xf32>
    %cst_100 = arith.constant dense<0.000000e+00> : vector<2x8xf32>
    %277 = vector.multi_reduction <add>, %276, %cst_100 [2] : vector<2x8x8xf32> to vector<2x8xf32>
    %278 = vector.shape_cast %277 : vector<2x8xf32> to vector<2x8x1xf32>
    %279 = tpu.reciprocal %278 {approx = true} : vector<2x8x1xf32> -> vector<2x8x1xf32>
    %280 = vector.broadcast %279 : vector<2x8x1xf32> to vector<2x8x8xf32>
    %281 = arith.mulf %276, %280 : vector<2x8x8xf32>
    "tpu.trace_start"() <{level = 10 : i32, message = "bqk,bkd->bqd"}> : () -> ()
    %cst_101 = arith.constant dense<0.000000e+00> : vector<2x8x8xf32>
    %282 = tpu.matmul %281, %266, %cst_101 {dimension_numbers = #tpu.dot_dimension_numbers<[2], [1], [1], [2], [0, 0, 0, 1, 1, 2], [0], [0]>} : vector<2x8x8xf32>, vector<2x8x8xf32>, vector<2x8x8xf32> -> vector<2x8x8xf32>
    "tpu.trace_stop"() : () -> ()
    %283 = vector.shape_cast %282 : vector<2x8x8xf32> to vector<16x8xf32>
    %284 = vector.extract_strided_slice %237 {offsets = [0, 16], sizes = [16, 8], strides = [1, 1]} : vector<16x96xf32> to vector<16x8xf32>
    %285 = vector.shape_cast %284 : vector<16x8xf32> to vector<2x8x8xf32>
    %286 = vector.extract_strided_slice %237 {offsets = [0, 48], sizes = [16, 8], strides = [1, 1]} : vector<16x96xf32> to vector<16x8xf32>
    %287 = vector.shape_cast %286 : vector<16x8xf32> to vector<2x8x8xf32>
    %288 = vector.extract_strided_slice %237 {offsets = [0, 80], sizes = [16, 8], strides = [1, 1]} : vector<16x96xf32> to vector<16x8xf32>
    %289 = vector.shape_cast %288 : vector<16x8xf32> to vector<2x8x8xf32>
    "tpu.trace_start"() <{level = 10 : i32, message = "bqd,bkd->bqk"}> : () -> ()
    %cst_102 = arith.constant dense<0.000000e+00> : vector<2x8x8xf32>
    %290 = tpu.matmul %285, %287, %cst_102 {dimension_numbers = #tpu.dot_dimension_numbers<[2], [2], [1], [1], [0, 0, 0, 1, 1, 1], [0], [0]>} : vector<2x8x8xf32>, vector<2x8x8xf32>, vector<2x8x8xf32> -> vector<2x8x8xf32>
    "tpu.trace_stop"() : () -> ()
    %cst_103 = arith.constant 0.353553385 : f32
    %291 = vector.broadcast %cst_103 : f32 to vector<2x8x8xf32>
    %292 = arith.mulf %290, %291 : vector<2x8x8xf32>
    %293 = vector.broadcast %25 : vector<2x1x8xf32> to vector<2x8x8xf32>
    %294 = arith.addf %292, %293 : vector<2x8x8xf32>
    %cst_104 = arith.constant dense<0xFF800000> : vector<2x8xf32>
    %295 = vector.multi_reduction <maximumf>, %294, %cst_104 [2] : vector<2x8x8xf32> to vector<2x8xf32>
    %296 = vector.shape_cast %295 : vector<2x8xf32> to vector<2x8x1xf32>
    %297 = vector.broadcast %296 : vector<2x8x1xf32> to vector<2x8x8xf32>
    %298 = arith.subf %294, %297 : vector<2x8x8xf32>
    %299 = math.exp %298 : vector<2x8x8xf32>
    %cst_105 = arith.constant dense<0.000000e+00> : vector<2x8xf32>
    %300 = vector.multi_reduction <add>, %299, %cst_105 [2] : vector<2x8x8xf32> to vector<2x8xf32>
    %301 = vector.shape_cast %300 : vector<2x8xf32> to vector<2x8x1xf32>
    %302 = tpu.reciprocal %301 {approx = true} : vector<2x8x1xf32> -> vector<2x8x1xf32>
    %303 = vector.broadcast %302 : vector<2x8x1xf32> to vector<2x8x8xf32>
    %304 = arith.mulf %299, %303 : vector<2x8x8xf32>
    "tpu.trace_start"() <{level = 10 : i32, message = "bqk,bkd->bqd"}> : () -> ()
    %cst_106 = arith.constant dense<0.000000e+00> : vector<2x8x8xf32>
    %305 = tpu.matmul %304, %289, %cst_106 {dimension_numbers = #tpu.dot_dimension_numbers<[2], [1], [1], [2], [0, 0, 0, 1, 1, 2], [0], [0]>} : vector<2x8x8xf32>, vector<2x8x8xf32>, vector<2x8x8xf32> -> vector<2x8x8xf32>
    "tpu.trace_stop"() : () -> ()
    %306 = vector.shape_cast %305 : vector<2x8x8xf32> to vector<16x8xf32>
    %307 = vector.extract_strided_slice %237 {offsets = [0, 24], sizes = [16, 8], strides = [1, 1]} : vector<16x96xf32> to vector<16x8xf32>
    %308 = vector.shape_cast %307 : vector<16x8xf32> to vector<2x8x8xf32>
    %309 = vector.extract_strided_slice %237 {offsets = [0, 56], sizes = [16, 8], strides = [1, 1]} : vector<16x96xf32> to vector<16x8xf32>
    %310 = vector.shape_cast %309 : vector<16x8xf32> to vector<2x8x8xf32>
    %311 = vector.extract_strided_slice %237 {offsets = [0, 88], sizes = [16, 8], strides = [1, 1]} : vector<16x96xf32> to vector<16x8xf32>
    %312 = vector.shape_cast %311 : vector<16x8xf32> to vector<2x8x8xf32>
    "tpu.trace_start"() <{level = 10 : i32, message = "bqd,bkd->bqk"}> : () -> ()
    %cst_107 = arith.constant dense<0.000000e+00> : vector<2x8x8xf32>
    %313 = tpu.matmul %308, %310, %cst_107 {dimension_numbers = #tpu.dot_dimension_numbers<[2], [2], [1], [1], [0, 0, 0, 1, 1, 1], [0], [0]>} : vector<2x8x8xf32>, vector<2x8x8xf32>, vector<2x8x8xf32> -> vector<2x8x8xf32>
    "tpu.trace_stop"() : () -> ()
    %cst_108 = arith.constant 0.353553385 : f32
    %314 = vector.broadcast %cst_108 : f32 to vector<2x8x8xf32>
    %315 = arith.mulf %313, %314 : vector<2x8x8xf32>
    %316 = vector.broadcast %25 : vector<2x1x8xf32> to vector<2x8x8xf32>
    %317 = arith.addf %315, %316 : vector<2x8x8xf32>
    %cst_109 = arith.constant dense<0xFF800000> : vector<2x8xf32>
    %318 = vector.multi_reduction <maximumf>, %317, %cst_109 [2] : vector<2x8x8xf32> to vector<2x8xf32>
    %319 = vector.shape_cast %318 : vector<2x8xf32> to vector<2x8x1xf32>
    %320 = vector.broadcast %319 : vector<2x8x1xf32> to vector<2x8x8xf32>
    %321 = arith.subf %317, %320 : vector<2x8x8xf32>
    %322 = math.exp %321 : vector<2x8x8xf32>
    %cst_110 = arith.constant dense<0.000000e+00> : vector<2x8xf32>
    %323 = vector.multi_reduction <add>, %322, %cst_110 [2] : vector<2x8x8xf32> to vector<2x8xf32>
    %324 = vector.shape_cast %323 : vector<2x8xf32> to vector<2x8x1xf32>
    %325 = tpu.reciprocal %324 {approx = true} : vector<2x8x1xf32> -> vector<2x8x1xf32>
    %326 = vector.broadcast %325 : vector<2x8x1xf32> to vector<2x8x8xf32>
    %327 = arith.mulf %322, %326 : vector<2x8x8xf32>
    "tpu.trace_start"() <{level = 10 : i32, message = "bqk,bkd->bqd"}> : () -> ()
    %cst_111 = arith.constant dense<0.000000e+00> : vector<2x8x8xf32>
    %328 = tpu.matmul %327, %312, %cst_111 {dimension_numbers = #tpu.dot_dimension_numbers<[2], [1], [1], [2], [0, 0, 0, 1, 1, 2], [0], [0]>} : vector<2x8x8xf32>, vector<2x8x8xf32>, vector<2x8x8xf32> -> vector<2x8x8xf32>
    "tpu.trace_stop"() : () -> ()
    %329 = vector.shape_cast %328 : vector<2x8x8xf32> to vector<16x8xf32>
    %330 = tpu.concatenate %260, %283, %306, %329 in 1 : vector<16x8xf32>, vector<16x8xf32>, vector<16x8xf32>, vector<16x8xf32> -> vector<16x32xf32>
    %331 = arith.truncf %330 : vector<16x32xf32> to vector<16x32xbf16>
    %cst_112 = arith.constant dense<0.000000e+00> : vector<16x32xf32>
    %332 = tpu.matmul %331, %219, %cst_112 {dimension_numbers = #tpu.dot_dimension_numbers<[1], [0], [0], [1], [0, 0, 1, 1], [], []>} : vector<16x32xbf16>, vector<32x32xbf16>, vector<16x32xf32> -> vector<16x32xf32>
    %333 = vector.broadcast %228 : vector<1x32xf32> to vector<16x32xf32>
    %334 = arith.addf %332, %333 : vector<16x32xf32>
    %335 = arith.addf %213, %334 : vector<16x32xf32>
    %cst_113 = arith.constant dense<0.000000e+00> : vector<16xf32>
    %336 = vector.multi_reduction <add>, %335, %cst_113 [1] : vector<16x32xf32> to vector<16xf32>
    %337 = vector.shape_cast %336 : vector<16xf32> to vector<16x1xf32>
    %cst_114 = arith.constant 3.200000e+01 : f32
    %338 = vector.broadcast %cst_114 : f32 to vector<16x1xf32>
    %339 = arith.divf %337, %338 : vector<16x1xf32>
    %340 = vector.broadcast %339 : vector<16x1xf32> to vector<16x32xf32>
    %341 = arith.subf %335, %340 : vector<16x32xf32>
    %342 = arith.mulf %341, %341 : vector<16x32xf32>
    %cst_115 = arith.constant dense<0.000000e+00> : vector<16xf32>
    %343 = vector.multi_reduction <add>, %342, %cst_115 [1] : vector<16x32xf32> to vector<16xf32>
    %344 = vector.shape_cast %343 : vector<16xf32> to vector<16x1xf32>
    %cst_116 = arith.constant 3.200000e+01 : f32
    %345 = vector.broadcast %cst_116 : f32 to vector<16x1xf32>
    %346 = arith.divf %344, %345 : vector<16x1xf32>
    %347 = vector.broadcast %339 : vector<16x1xf32> to vector<16x32xf32>
    %348 = arith.subf %335, %347 : vector<16x32xf32>
    %cst_117 = arith.constant 9.99999996E-13 : f32
    %349 = vector.broadcast %cst_117 : f32 to vector<16x1xf32>
    %350 = arith.addf %346, %349 : vector<16x1xf32>
    %351 = math.rsqrt %350 : vector<16x1xf32>
    %352 = vector.broadcast %351 : vector<16x1xf32> to vector<16x32xf32>
    %353 = arith.mulf %348, %352 : vector<16x32xf32>
    %354 = vector.broadcast %229 : vector<1x32xf32> to vector<16x32xf32>
    %355 = arith.mulf %353, %354 : vector<16x32xf32>
    %356 = vector.broadcast %230 : vector<1x32xf32> to vector<16x32xf32>
    %357 = arith.addf %355, %356 : vector<16x32xf32>
    %358 = arith.truncf %357 : vector<16x32xf32> to vector<16x32xbf16>
    %cst_118 = arith.constant dense<0.000000e+00> : vector<16x128xf32>
    %359 = tpu.matmul %358, %221, %cst_118 {dimension_numbers = #tpu.dot_dimension_numbers<[1], [0], [0], [1], [0, 0, 1, 1], [], []>} : vector<16x32xbf16>, vector<32x128xbf16>, vector<16x128xf32> -> vector<16x128xf32>
    %360 = vector.broadcast %223 : vector<1x128xf32> to vector<16x128xf32>
    %361 = arith.addf %359, %360 : vector<16x128xf32>
    %362 = arith.mulf %361, %361 : vector<16x128xf32>
    %363 = arith.mulf %361, %362 : vector<16x128xf32>
    %cst_119 = arith.constant 4.471500e-02 : f32
    %364 = vector.broadcast %cst_119 : f32 to vector<16x128xf32>
    %365 = arith.mulf %364, %363 : vector<16x128xf32>
    %366 = arith.addf %361, %365 : vector<16x128xf32>
    %cst_120 = arith.constant 0.797884583 : f32
    %367 = vector.broadcast %cst_120 : f32 to vector<16x128xf32>
    %368 = arith.mulf %367, %366 : vector<16x128xf32>
    %369 = math.tanh %368 : vector<16x128xf32>
    %cst_121 = arith.constant 1.000000e+00 : f32
    %370 = vector.broadcast %cst_121 : f32 to vector<16x128xf32>
    %371 = arith.addf %370, %369 : vector<16x128xf32>
    %cst_122 = arith.constant 5.000000e-01 : f32
    %372 = vector.broadcast %cst_122 : f32 to vector<16x128xf32>
    %373 = arith.mulf %372, %371 : vector<16x128xf32>
    %374 = arith.mulf %361, %373 : vector<16x128xf32>
    %375 = arith.truncf %374 : vector<16x128xf32> to vector<16x128xbf16>
    %cst_123 = arith.constant dense<0.000000e+00> : vector<16x32xf32>
    %376 = tpu.matmul %375, %225, %cst_123 {dimension_numbers = #tpu.dot_dimension_numbers<[1], [0], [0], [1], [0, 0, 1, 1], [], []>} : vector<16x128xbf16>, vector<128x32xbf16>, vector<16x32xf32> -> vector<16x32xf32>
    %377 = vector.broadcast %231 : vector<1x32xf32> to vector<16x32xf32>
    %378 = arith.addf %376, %377 : vector<16x32xf32>
    %379 = arith.addf %357, %378 : vector<16x32xf32>
    %cst_124 = arith.constant dense<0.000000e+00> : vector<16xf32>
    %380 = vector.multi_reduction <add>, %379, %cst_124 [1] : vector<16x32xf32> to vector<16xf32>
    %381 = vector.shape_cast %380 : vector<16xf32> to vector<16x1xf32>
    %cst_125 = arith.constant 3.200000e+01 : f32
    %382 = vector.broadcast %cst_125 : f32 to vector<16x1xf32>
    %383 = arith.divf %381, %382 : vector<16x1xf32>
    %384 = vector.broadcast %383 : vector<16x1xf32> to vector<16x32xf32>
    %385 = arith.subf %379, %384 : vector<16x32xf32>
    %386 = arith.mulf %385, %385 : vector<16x32xf32>
    %cst_126 = arith.constant dense<0.000000e+00> : vector<16xf32>
    %387 = vector.multi_reduction <add>, %386, %cst_126 [1] : vector<16x32xf32> to vector<16xf32>
    %388 = vector.shape_cast %387 : vector<16xf32> to vector<16x1xf32>
    %cst_127 = arith.constant 3.200000e+01 : f32
    %389 = vector.broadcast %cst_127 : f32 to vector<16x1xf32>
    %390 = arith.divf %388, %389 : vector<16x1xf32>
    %391 = vector.broadcast %383 : vector<16x1xf32> to vector<16x32xf32>
    %392 = arith.subf %379, %391 : vector<16x32xf32>
    %cst_128 = arith.constant 9.99999996E-13 : f32
    %393 = vector.broadcast %cst_128 : f32 to vector<16x1xf32>
    %394 = arith.addf %390, %393 : vector<16x1xf32>
    %395 = math.rsqrt %394 : vector<16x1xf32>
    %396 = vector.broadcast %395 : vector<16x1xf32> to vector<16x32xf32>
    %397 = arith.mulf %392, %396 : vector<16x32xf32>
    %398 = vector.broadcast %232 : vector<1x32xf32> to vector<16x32xf32>
    %399 = arith.mulf %397, %398 : vector<16x32xf32>
    %400 = vector.broadcast %233 : vector<1x32xf32> to vector<16x32xf32>
    %401 = arith.addf %399, %400 : vector<16x32xf32>
    %c0_129 = arith.constant 0 : index
    %c0_130 = arith.constant 0 : index
    %c0_131 = arith.constant 0 : index
    %402 = vector.load %arg10[%c0_129, %c0_130, %c0_131] : memref<2x32x32xbf16, #tpu.memory_space<vmem>>, vector<1x32x32xbf16>
    %403 = vector.shape_cast %402 : vector<1x32x32xbf16> to vector<32x32xbf16>
    %c1_132 = arith.constant 1 : index
    %c0_133 = arith.constant 0 : index
    %c0_134 = arith.constant 0 : index
    %404 = vector.load %arg10[%c1_132, %c0_133, %c0_134] : memref<2x32x32xbf16, #tpu.memory_space<vmem>>, vector<1x32x32xbf16>
    %405 = vector.shape_cast %404 : vector<1x32x32xbf16> to vector<32x32xbf16>
    %c0_135 = arith.constant 0 : index
    %c0_136 = arith.constant 0 : index
    %406 = vector.load %arg11[%c0_135, %c0_136] : memref<4x32xf32, #tpu.memory_space<vmem>>, vector<4x32xf32>
    %407 = vector.extract_strided_slice %406 {offsets = [0, 0], sizes = [1, 32], strides = [1, 1]} : vector<4x32xf32> to vector<1x32xf32>
    %408 = vector.extract_strided_slice %406 {offsets = [1, 0], sizes = [1, 32], strides = [1, 1]} : vector<4x32xf32> to vector<1x32xf32>
    %409 = vector.extract_strided_slice %406 {offsets = [2, 0], sizes = [1, 32], strides = [1, 1]} : vector<4x32xf32> to vector<1x32xf32>
    %410 = vector.extract_strided_slice %406 {offsets = [3, 0], sizes = [1, 1], strides = [1, 1]} : vector<4x32xf32> to vector<1x1xf32>
    %411 = vector.shape_cast %401 : vector<16x32xf32> to vector<2x8x32xf32>
    %412 = vector.extract_strided_slice %411 {offsets = [0, 0, 0], sizes = [2, 1, 32], strides = [1, 1, 1]} : vector<2x8x32xf32> to vector<2x1x32xf32>
    %413 = vector.shape_cast %412 : vector<2x1x32xf32> to vector<2x32xf32>
    %414 = arith.truncf %413 : vector<2x32xf32> to vector<2x32xbf16>
    %cst_137 = arith.constant dense<0.000000e+00> : vector<2x32xf32>
    %415 = tpu.matmul %414, %403, %cst_137 {dimension_numbers = #tpu.dot_dimension_numbers<[1], [0], [0], [1], [0, 0, 1, 1], [], []>} : vector<2x32xbf16>, vector<32x32xbf16>, vector<2x32xf32> -> vector<2x32xf32>
    %416 = vector.broadcast %407 : vector<1x32xf32> to vector<2x32xf32>
    %417 = arith.addf %415, %416 : vector<2x32xf32>
    %418 = math.tanh %417 : vector<2x32xf32>
    %419 = arith.truncf %418 : vector<2x32xf32> to vector<2x32xbf16>
    %cst_138 = arith.constant dense<0.000000e+00> : vector<2x32xf32>
    %420 = tpu.matmul %419, %405, %cst_138 {dimension_numbers = #tpu.dot_dimension_numbers<[1], [0], [0], [1], [0, 0, 1, 1], [], []>} : vector<2x32xbf16>, vector<32x32xbf16>, vector<2x32xf32> -> vector<2x32xf32>
    %421 = vector.broadcast %408 : vector<1x32xf32> to vector<2x32xf32>
    %422 = arith.addf %420, %421 : vector<2x32xf32>
    %cst_139 = arith.constant 0.000000e+00 : f32
    %423 = vector.broadcast %cst_139 : f32 to vector<2x32xf32>
    %424 = arith.maximumf %422, %423 : vector<2x32xf32>
    %425 = vector.broadcast %409 : vector<1x32xf32> to vector<2x32xf32>
    %426 = arith.mulf %424, %425 : vector<2x32xf32>
    %cst_140 = arith.constant dense<0.000000e+00> : vector<2xf32>
    %427 = vector.multi_reduction <add>, %426, %cst_140 [1] : vector<2x32xf32> to vector<2xf32>
    %428 = vector.shape_cast %427 : vector<2xf32> to vector<2x1xf32>
    %429 = vector.broadcast %410 : vector<1x1xf32> to vector<2x1xf32>
    %430 = arith.addf %428, %429 : vector<2x1xf32>
    %c0_141 = arith.constant 0 : index
    %c0_142 = arith.constant 0 : index
    %431 = vector.load %arg12[%c0_141, %c0_142] : memref<2x1xf32, #tpu.memory_space<vmem>>, vector<2x1xf32>
    tpu.vector_store %arg12[%c0_141, %c0_142], %430 {strides = array<i32>} : memref<2x1xf32, #tpu.memory_space<vmem>>, vector<2x1xf32>,
    return
  }
}

</mosaic_0001>

<llo_original>
// kernel: bert_regressor_forward.1
$region0: #{bert_regressor_forward.1}
  #allocation0 [shape = 'u32[]', space=smem, size = 0x4, offset = 0x4, fixed_abs, tag = 'smem constant byte address 0x4 - core index']
  #allocation1 [shape = 'u32[144,128]{1,0:T(1,128)}', space=vmem, size = 0x12000, scoped, tag = 'internal scratch']
  %s0 = inlined_call_operand.vmem [shape: f32[16,32], index: 0, kind: input, shape index: {}]
  %s1 = inlined_call_operand.vmem [shape: f32[2,1,8], index: 1, kind: input, shape index: {}]
  %s2 = inlined_call_operand.vmem [shape: f32[2,32], index: 2, kind: input, shape index: {}]
  %s3 = inlined_call_operand.vmem [shape: bf16[2,32,96], index: 3, kind: input, shape index: {}]
  %s4 = inlined_call_operand.vmem [shape: f32[2,1,96], index: 4, kind: input, shape index: {}]
  %s5 = inlined_call_operand.vmem [shape: bf16[2,32,32], index: 5, kind: input, shape index: {}]
  %s6 = inlined_call_operand.vmem [shape: bf16[2,32,128], index: 6, kind: input, shape index: {}]
  %s7 = inlined_call_operand.vmem [shape: f32[2,1,128], index: 7, kind: input, shape index: {}]
  %s8 = inlined_call_operand.vmem [shape: bf16[2,128,32], index: 8, kind: input, shape index: {}]
  %s9 = inlined_call_operand.vmem [shape: f32[2,6,32], index: 9, kind: input, shape index: {}]
  %s10 = inlined_call_operand.vmem [shape: bf16[2,32,32], index: 10, kind: input, shape index: {}]
  %s11 = inlined_call_operand.vmem [shape: f32[4,32], index: 11, kind: input, shape index: {}]
  %s12 = inlined_call_operand.vmem [shape: f32[2,1], index: 12, kind: output, shape index: {}]
  %s13 = sld [smem:[#allocation0]]
  $region58: #{bert_regressor_forward.1} parent=0
    _
  %s15 = ssub.s32 1, %s13
  %s16 = scalar_select 0, %s15, %s13
  // Predicated region
  $region2: #{bert_regressor_forward.1} parent=0 // pred_check
    _
  $region3: #{bert_regressor_forward.1} parent=0 // pred_check_branch
    %18 = sbr.rel (0) target = $region5
  $region4: #{bert_regressor_forward.1} parent=0 // pred_region
    _
  $region5: #{bert_regressor_forward.1} parent=0 // pred_fallthru
    _
  // Predicated region
  $region6: #{bert_regressor_forward.1} parent=0 // pred_check
    _
  $region7: #{bert_regressor_forward.1} parent=0 // pred_check_branch
    %20 = sbr.rel (0) target = $region9
  $region8: #{bert_regressor_forward.1} parent=0 // pred_region
    _
  $region9: #{bert_regressor_forward.1} parent=0 // pred_fallthru
    _
  // Predicated region
  $region10: #{bert_regressor_forward.1} parent=0 // pred_check
    _
  $region11: #{bert_regressor_forward.1} parent=0 // pred_check_branch
    %22 = sbr.rel (0) target = $region13
  $region12: #{bert_regressor_forward.1} parent=0 // pred_region
    _
  $region13: #{bert_regressor_forward.1} parent=0 // pred_fallthru
    _
  // Predicated region
  $region14: #{bert_regressor_forward.1} parent=0 // pred_check
    _
  $region15: #{bert_regressor_forward.1} parent=0 // pred_check_branch
    %24 = sbr.rel (0) target = $region17
  $region16: #{bert_regressor_forward.1} parent=0 // pred_region
    _
  $region17: #{bert_regressor_forward.1} parent=0 // pred_fallthru
    _
  // Predicated region
  $region18: #{bert_regressor_forward.1} parent=0 // pred_check
    _
  $region19: #{bert_regressor_forward.1} parent=0 // pred_check_branch
    %26 = sbr.rel (0) target = $region21
  $region20: #{bert_regressor_forward.1} parent=0 // pred_region
    _
  $region21: #{bert_regressor_forward.1} parent=0 // pred_fallthru
    _
  // Predicated region
  $region22: #{bert_regressor_forward.1} parent=0 // pred_check
    _
  $region23: #{bert_regressor_forward.1} parent=0 // pred_check_branch
    %28 = sbr.rel (0) target = $region25
  $region24: #{bert_regressor_forward.1} parent=0 // pred_region
    _
  $region25: #{bert_regressor_forward.1} parent=0 // pred_fallthru
    _
  // Predicated region
  $region26: #{bert_regressor_forward.1} parent=0 // pred_check
    _
  $region27: #{bert_regressor_forward.1} parent=0 // pred_check_branch
    %30 = sbr.rel (0) target = $region29
  $region28: #{bert_regressor_forward.1} parent=0 // pred_region
    _
  $region29: #{bert_regressor_forward.1} parent=0 // pred_fallthru
    _
  // Predicated region
  $region30: #{bert_regressor_forward.1} parent=0 // pred_check
    _
  $region31: #{bert_regressor_forward.1} parent=0 // pred_check_branch
    %32 = sbr.rel (0) target = $region33
  $region32: #{bert_regressor_forward.1} parent=0 // pred_region
    _
  $region33: #{bert_regressor_forward.1} parent=0 // pred_fallthru
    _
  // Predicated region
  $region34: #{bert_regressor_forward.1} parent=0 // pred_check
    _
  $region35: #{bert_regressor_forward.1} parent=0 // pred_check_branch
    %34 = sbr.rel (0) target = $region37
  $region36: #{bert_regressor_forward.1} parent=0 // pred_region
    _
  $region37: #{bert_regressor_forward.1} parent=0 // pred_fallthru
    _
  // Predicated region
  $region38: #{bert_regressor_forward.1} parent=0 // pred_check
    _
  $region39: #{bert_regressor_forward.1} parent=0 // pred_check_branch
    %36 = sbr.rel (0) target = $region41
  $region40: #{bert_regressor_forward.1} parent=0 // pred_region
    _
  $region41: #{bert_regressor_forward.1} parent=0 // pred_fallthru
    _
  // Predicated region
  $region42: #{bert_regressor_forward.1} parent=0 // pred_check
    _
  $region43: #{bert_regressor_forward.1} parent=0 // pred_check_branch
    %38 = sbr.rel (0) target = $region45
  $region44: #{bert_regressor_forward.1} parent=0 // pred_region
    _
  $region45: #{bert_regressor_forward.1} parent=0 // pred_fallthru
    _
  // Predicated region
  $region46: #{bert_regressor_forward.1} parent=0 // pred_check
    _
  $region47: #{bert_regressor_forward.1} parent=0 // pred_check_branch
    %40 = sbr.rel (0) target = $region49
  $region48: #{bert_regressor_forward.1} parent=0 // pred_region
    _
  $region49: #{bert_regressor_forward.1} parent=0 // pred_fallthru
    _
  %v42 = vld [vmem:[%s0] sm:$0xff]
  %v43 = vld [vmem:[%s0 + $0x8] sm:$0xff]
  %v44 = vld [vmem:[%s2] sm:$0x1]
  %v45 = vld [vmem:[%s2 + $0x1] sm:$0x1]
  %vm46 = vcmask 261120
  %v47 = vsel %vm46, %v42, 0.0
  %48 = vadd.xlane.f32.xlu0 %v47
  %v49 = vpop.xlane.xlu0 %48
  %v50 = vsel %vm46, %v43, 0.0
  %51 = vadd.xlane.f32.xlu0 %v50
  %v52 = vpop.xlane.xlu0 %51
  %v53 = vrcp.pop 32.0
  %v54 = vmul.f32 %v49, %v53
  %v55 = vmul.f32 %v52, %v53
  %v56 = vsub.f32 %v42, %v54
  %v57 = vsub.f32 %v43, %v55
  %v58 = vmul.f32 %v56, %v56
  %v59 = vmul.f32 %v57, %v57
  %v60 = vsel %vm46, %v58, 0.0
  %61 = vadd.xlane.f32.xlu0 %v60
  %v62 = vpop.xlane.xlu0 %61
  %v63 = vsel %vm46, %v59, 0.0
  %64 = vadd.xlane.f32.xlu0 %v63
  %v65 = vpop.xlane.xlu0 %64
  %v66 = vmul.f32 %v62, %v53
  %v67 = vmul.f32 %v65, %v53
  %v68 = vadd.f32 %v66, 1e-12
  %v69 = vadd.f32 %v67, 1e-12
  %v70 = vrsqrt.pop %v68
  %v71 = vrsqrt.pop %v69
  %v72 = vmul.f32 %v56, %v70
  %v73 = vmul.f32 %v57, %v71
  %v74 = vlaneseq
  %v75 = vshrl.u32 %v74, 7
  %v76 = vsub.s32 0, %v75
  %v77 = vrot.slane %v44, %v76
  %v78 = vmul.f32 %v72, %v77
  %v79 = vmul.f32 %v73, %v77
  %v80 = vlaneseq
  %v81 = vshrl.u32 %v80, 7
  %v82 = vsub.s32 0, %v81
  %v83 = vrot.slane %v45, %v82
  %v84 = vadd.f32 %v78, %v83
  %v85 = vadd.f32 %v79, %v83
  %v86 = vld [vmem:[%s1] sm:$0x1]
  %v87 = vld [vmem:[%s1 + $0x1] sm:$0x1]
  %v88 = vld [vmem:[%s3] sm:$0xf]
  %v89 = vld [vmem:[%s3 + $0x4] sm:$0xf]
  %v90 = vld [vmem:[%s3 + $0x8] sm:$0xf]
  %v91 = vld [vmem:[%s3 + $0xc] sm:$0xf]
  %v92 = vld [vmem:[%s4] sm:$0x1]
  %v93 = vld [vmem:[%s5] sm:$0xf]
  %v94 = vld [vmem:[%s5 + $0x4] sm:$0xf]
  %v95 = vld [vmem:[%s5 + $0x8] sm:$0xf]
  %v96 = vld [vmem:[%s5 + $0xc] sm:$0xf]
  %v97 = vld [vmem:[%s6] sm:$0xf]
  %v98 = vld [vmem:[%s6 + $0x4] sm:$0xf]
  %v99 = vld [vmem:[%s6 + $0x8] sm:$0xf]
  %v100 = vld [vmem:[%s6 + $0xc] sm:$0xf]
  %v101 = vld [vmem:[%s7] sm:$0x1]
  %v102 = vld [vmem:[%s8] sm:$0xf]
  %v103 = vld [vmem:[%s8 + $0x4] sm:$0xf]
  %v104 = vld [vmem:[%s8 + $0x8] sm:$0xf]
  %v105 = vld [vmem:[%s8 + $0xc] sm:$0xf]
  %v106 = vld [vmem:[%s8 + $0x10] sm:$0xf]
  %v107 = vld [vmem:[%s8 + $0x14] sm:$0xf]
  %v108 = vld [vmem:[%s8 + $0x18] sm:$0xf]
  %v109 = vld [vmem:[%s8 + $0x1c] sm:$0xf]
  %v110 = vld [vmem:[%s8 + $0x20] sm:$0xf]
  %v111 = vld [vmem:[%s8 + $0x24] sm:$0xf]
  %v112 = vld [vmem:[%s8 + $0x28] sm:$0xf]
  %v113 = vld [vmem:[%s8 + $0x2c] sm:$0xf]
  %v114 = vld [vmem:[%s8 + $0x30] sm:$0xf]
  %v115 = vld [vmem:[%s8 + $0x34] sm:$0xf]
  %v116 = vld [vmem:[%s8 + $0x38] sm:$0xf]
  %v117 = vld [vmem:[%s8 + $0x3c] sm:$0xf]
  %v118 = vld [vmem:[%s9] sm:$0x3f]
  %v119 = vpack.c.bf16 %v85, %v84
  %v121 = vlaneseq
  %v122 = vshrl.u32 %v121, 7
  %v123 = vsub.s32 0, %v122
  %v124 = vrot.slane %v92, %v123
  %v130 = vunpack.c.l.b16 %v88
  %v131 = vunpack.c.l.b16 %v89
  %v132 = vunpack.c.l.b16 %v90
  %v133 = vunpack.c.l.b16 %v91
  %v134 = vpack.c.b16 %v131, %v130
  %v135 = vpack.c.b16 %v133, %v132
  %v139 = vsel %vm46, %v119, 0
  %141 = vmatprep.subr.bf16.mxu0 0
  %142 = vmatpush1.bf16.msra.mxu0 0
  %143 = vmatprep.subr.bf16.mxu0 0
  %144 = vmatpush1.bf16.msra.mxu0 0
  %145 = vmatprep.subr.bf16.mxu0 0
  %146 = vmatpush1.bf16.msra.mxu0 0
  %147 = vmatprep.subr.bf16.mxu0 0
  %148 = vmatpush1.bf16.msra.mxu0 0
  %149 = vmatprep.subr.bf16.mxu0 0
  %150 = vmatpush1.bf16.msra.mxu0 0
  %151 = vmatprep.subr.bf16.mxu0 0
  %152 = vmatpush1.bf16.msra.mxu0 0
  %153 = vmatprep.subr.bf16.mxu0 0
  %154 = vmatpush1.bf16.msra.mxu0 %v135
  %155 = vmatprep.subr.bf16.mxu0 0
  %156 = vmatpush1.bf16.msra.mxu0 %v134
  %157 = vmatprep.subr.bf16.mxu0 0
  %158 = vmatpush2.bf16.msra.mxu0 0
  %159 = vmatprep.subr.bf16.mxu0 0
  %160 = vmatpush2.bf16.msra.mxu0 0
  %161 = vmatprep.subr.bf16.mxu0 0
  %162 = vmatpush2.bf16.msra.mxu0 0
  %163 = vmatprep.subr.bf16.mxu0 0
  %164 = vmatpush2.bf16.msra.mxu0 0
  %165 = vmatprep.subr.bf16.mxu0 0
  %166 = vmatpush2.bf16.msra.mxu0 0
  %167 = vmatprep.subr.bf16.mxu0 0
  %168 = vmatpush2.bf16.msra.mxu0 0
  %169 = vmatprep.subr.bf16.mxu0 0
  %170 = vmatpush2.bf16.msra.mxu0 0
  %171 = vmatprep.subr.bf16.mxu0 0
  %172 = vmatpush2.bf16.msra.mxu0 0
  %173 = vmatprep.mubr.bf16.mxu0 0
  %174 = vmatmul.mubr.bf16.gmra.mxu0 %v139
  %v175 = vpop.f32.mrf.mxu0
  %v176 = vadd.f32 %v124, %v175
  %v177 = vpop.f32.mrf.mxu0
  %v178 = vpop.f32.mrf.mxu0
  %v179 = vadd.f32 %v124, %v178
  %v180 = vpop.f32.mrf.mxu0
  %181 = vdwg.mxu0
  %183 = vrot.lane.b32.xlu0 %v176, 96
  %v184 = vpop.permute.xlu0 %183
  %vm185 = vcmask 64512
  %v186 = vsel %vm185, %v176, 0
  %v188 = vsel %vm185, %v184, 0
  %190 = vmatprep.subr.mxu0 0.0
  %191 = vmatpush1.xpose.msra.mxu0 0.0
  %192 = vmatprep.subr.mxu0 0.0
  %193 = vmatpush1.xpose.msra.mxu0 0.0
  %194 = vmatprep.subr.mxu0 0.0
  %195 = vmatpush1.xpose.msra.mxu0 0.0
  %196 = vmatprep.subr.mxu0 0.0
  %197 = vmatpush1.xpose.msra.mxu0 0.0
  %198 = vmatprep.subr.mxu0 0.0
  %199 = vmatpush1.xpose.msra.mxu0 0.0
  %200 = vmatprep.subr.mxu0 0.0
  %201 = vmatpush1.xpose.msra.mxu0 0.0
  %202 = vmatprep.subr.mxu0 0.0
  %203 = vmatpush1.xpose.msra.mxu0 0.0
  %204 = vmatprep.subr.mxu0 0.0
  %205 = vmatpush1.xpose.msra.mxu0 0.0
  %206 = vmatprep.subr.mxu0 0.0
  %207 = vmatpush1.xpose.msra.mxu0 0.0
  %208 = vmatprep.subr.mxu0 0.0
  %209 = vmatpush1.xpose.msra.mxu0 0.0
  %210 = vmatprep.subr.mxu0 0.0
  %211 = vmatpush1.xpose.msra.mxu0 0.0
  %212 = vmatprep.subr.mxu0 0.0
  %213 = vmatpush1.xpose.msra.mxu0 0.0
  %214 = vmatprep.subr.mxu0 0.0
  %215 = vmatpush1.xpose.msra.mxu0 0.0
  %216 = vmatprep.subr.mxu0 0.0
  %217 = vmatpush1.xpose.msra.mxu0 0.0
  %218 = vmatprep.subr.mxu0 0.0
  %219 = vmatpush1.xpose.msra.mxu0 0.0
  %220 = vmatprep.subr.mxu0 0.0
  %221 = vmatpush1.xpose.msra.mxu0 %v188
  %222 = vmatprep.subr.mxu0 0.0
  %223 = vmatpush2.xpose.msra.mxu0 0.0
  %224 = vmatprep.subr.mxu0 0.0
  %225 = vmatpush2.xpose.msra.mxu0 0.0
  %226 = vmatprep.subr.mxu0 0.0
  %227 = vmatpush2.xpose.msra.mxu0 0.0
  %228 = vmatprep.subr.mxu0 0.0
  %229 = vmatpush2.xpose.msra.mxu0 0.0
  %230 = vmatprep.subr.mxu0 0.0
  %231 = vmatpush2.xpose.msra.mxu0 0.0
  %232 = vmatprep.subr.mxu0 0.0
  %233 = vmatpush2.xpose.msra.mxu0 0.0
  %234 = vmatprep.subr.mxu0 0.0
  %235 = vmatpush2.xpose.msra.mxu0 0.0
  %236 = vmatprep.subr.mxu0 0.0
  %237 = vmatpush2.xpose.msra.mxu0 0.0
  %238 = vmatprep.subr.mxu0 0.0
  %239 = vmatpush2.xpose.msra.mxu0 0.0
  %240 = vmatprep.subr.mxu0 0.0
  %241 = vmatpush2.xpose.msra.mxu0 0.0
  %242 = vmatprep.subr.mxu0 0.0
  %243 = vmatpush2.xpose.msra.mxu0 0.0
  %244 = vmatprep.subr.mxu0 0.0
  %245 = vmatpush2.xpose.msra.mxu0 0.0
  %246 = vmatprep.subr.mxu0 0.0
  %247 = vmatpush2.xpose.msra.mxu0 0.0
  %248 = vmatprep.subr.mxu0 0.0
  %249 = vmatpush2.xpose.msra.mxu0 0.0
  %250 = vmatprep.subr.mxu0 0.0
  %251 = vmatpush2.xpose.msra.mxu0 0.0
  %252 = vmatprep.subr.mxu0 0.0
  %253 = vmatpush2.xpose.msra.mxu0 0.0
  %254 = vmatprep.mubr.f32.mxu0 0.0
  %255 = vmatmul.mubr.f32.gmra.mxu0 %v186
  %v256 = vpop.f32.mrf.mxu0
  %v257 = vadd.f32 0.0, %v256
  %v258 = vpop.f32.mrf.mxu0
  %259 = vdwg.mxu0
  %261 = vrot.lane.b32.xlu0 %v179, 96
  %v262 = vpop.permute.xlu0 %261
  %v263 = vsel %vm185, %v179, 0
  %v265 = vsel %vm185, %v262, 0
  %267 = vmatprep.subr.mxu0 0.0
  %268 = vmatpush1.xpose.msra.mxu0 0.0
  %269 = vmatprep.subr.mxu0 0.0
  %270 = vmatpush1.xpose.msra.mxu0 0.0
  %271 = vmatprep.subr.mxu0 0.0
  %272 = vmatpush1.xpose.msra.mxu0 0.0
  %273 = vmatprep.subr.mxu0 0.0
  %274 = vmatpush1.xpose.msra.mxu0 0.0
  %275 = vmatprep.subr.mxu0 0.0
  %276 = vmatpush1.xpose.msra.mxu0 0.0
  %277 = vmatprep.subr.mxu0 0.0
  %278 = vmatpush1.xpose.msra.mxu0 0.0
  %279 = vmatprep.subr.mxu0 0.0
  %280 = vmatpush1.xpose.msra.mxu0 0.0
  %281 = vmatprep.subr.mxu0 0.0
  %282 = vmatpush1.xpose.msra.mxu0 0.0
  %283 = vmatprep.subr.mxu0 0.0
  %284 = vmatpush1.xpose.msra.mxu0 0.0
  %285 = vmatprep.subr.mxu0 0.0
  %286 = vmatpush1.xpose.msra.mxu0 0.0
  %287 = vmatprep.subr.mxu0 0.0
  %288 = vmatpush1.xpose.msra.mxu0 0.0
  %289 = vmatprep.subr.mxu0 0.0
  %290 = vmatpush1.xpose.msra.mxu0 0.0
  %291 = vmatprep.subr.mxu0 0.0
  %292 = vmatpush1.xpose.msra.mxu0 0.0
  %293 = vmatprep.subr.mxu0 0.0
  %294 = vmatpush1.xpose.msra.mxu0 0.0
  %295 = vmatprep.subr.mxu0 0.0
  %296 = vmatpush1.xpose.msra.mxu0 0.0
  %297 = vmatprep.subr.mxu0 0.0
  %298 = vmatpush1.xpose.msra.mxu0 %v265
  %299 = vmatprep.subr.mxu0 0.0
  %300 = vmatpush2.xpose.msra.mxu0 0.0
  %301 = vmatprep.subr.mxu0 0.0
  %302 = vmatpush2.xpose.msra.mxu0 0.0
  %303 = vmatprep.subr.mxu0 0.0
  %304 = vmatpush2.xpose.msra.mxu0 0.0
  %305 = vmatprep.subr.mxu0 0.0
  %306 = vmatpush2.xpose.msra.mxu0 0.0
  %307 = vmatprep.subr.mxu0 0.0
  %308 = vmatpush2.xpose.msra.mxu0 0.0
  %309 = vmatprep.subr.mxu0 0.0
  %310 = vmatpush2.xpose.msra.mxu0 0.0
  %311 = vmatprep.subr.mxu0 0.0
  %312 = vmatpush2.xpose.msra.mxu0 0.0
  %313 = vmatprep.subr.mxu0 0.0
  %314 = vmatpush2.xpose.msra.mxu0 0.0
  %315 = vmatprep.subr.mxu0 0.0
  %316 = vmatpush2.xpose.msra.mxu0 0.0
  %317 = vmatprep.subr.mxu0 0.0
  %318 = vmatpush2.xpose.msra.mxu0 0.0
  %319 = vmatprep.subr.mxu0 0.0
  %320 = vmatpush2.xpose.msra.mxu0 0.0
  %321 = vmatprep.subr.mxu0 0.0
  %322 = vmatpush2.xpose.msra.mxu0 0.0
  %323 = vmatprep.subr.mxu0 0.0
  %324 = vmatpush2.xpose.msra.mxu0 0.0
  %325 = vmatprep.subr.mxu0 0.0
  %326 = vmatpush2.xpose.msra.mxu0 0.0
  %327 = vmatprep.subr.mxu0 0.0
  %328 = vmatpush2.xpose.msra.mxu0 0.0
  %329 = vmatprep.subr.mxu0 0.0
  %330 = vmatpush2.xpose.msra.mxu0 0.0
  %331 = vmatprep.mubr.f32.mxu0 0.0
  %332 = vmatmul.mubr.f32.gmra.mxu0 %v263
  %v333 = vpop.f32.mrf.mxu0
  %v334 = vadd.f32 0.0, %v333
  %v335 = vpop.f32.mrf.mxu0
  %336 = vdwg.mxu0
  %v337 = vmul.f32 %v257, 0.35355338
  %v338 = vmul.f32 %v334, 0.35355338
  %v341 = vlaneseq
  %v342 = vshrl.u32 %v341, 7
  %v343 = vsub.s32 0, %v342
  %v344 = vrot.slane %v86, %v343
  %v345 = vlaneseq
  %v346 = vshrl.u32 %v345, 7
  %v347 = vsub.s32 0, %v346
  %v348 = vrot.slane %v87, %v347
  %v351 = vadd.f32 %v337, %v344
  %v352 = vadd.f32 %v338, %v348
  %v353 = vsel %vm185, %v351, -inf
  %354 = vmax.xlane.f32.xlu0 %v353
  %v355 = vpop.xlane.xlu0 %354
  %v356 = vsel %vm185, %v352, -inf
  %357 = vmax.xlane.f32.xlu0 %v356
  %v358 = vpop.xlane.xlu0 %357
  %v359 = vsub.f32 %v351, %v355
  %v360 = vsub.f32 %v352, %v358
  %v361 = vmul.f32 %v359, 1.442695
  %v362 = vpow.pop %v361
  %v363 = vmul.f32 %v360, 1.442695
  %v364 = vpow.pop %v363
  %v365 = vsel %vm185, %v362, 0.0
  %366 = vadd.xlane.f32.xlu0 %v365
  %v367 = vpop.xlane.xlu0 %366
  %v368 = vsel %vm185, %v364, 0.0
  %369 = vadd.xlane.f32.xlu0 %v368
  %v370 = vpop.xlane.xlu0 %369
  %v371 = vrcp.pop %v367
  %v372 = vrcp.pop %v370
  %v373 = vmul.f32 %v362, %v371
  %v374 = vmul.f32 %v364, %v372
  %375 = vrot.lane.b32.xlu0 %v176, 64
  %v376 = vpop.permute.xlu0 %375
  %v379 = vsel %vm185, %v373, 0
  %381 = vmatprep.subr.mxu0 0.0
  %382 = vmatpush1.msra.mxu0 0.0
  %383 = vmatprep.subr.mxu0 0.0
  %384 = vmatpush1.msra.mxu0 0.0
  %385 = vmatprep.subr.mxu0 0.0
  %386 = vmatpush1.msra.mxu0 0.0
  %387 = vmatprep.subr.mxu0 0.0
  %388 = vmatpush1.msra.mxu0 0.0
  %389 = vmatprep.subr.mxu0 0.0
  %390 = vmatpush1.msra.mxu0 0.0
  %391 = vmatprep.subr.mxu0 0.0
  %392 = vmatpush1.msra.mxu0 0.0
  %393 = vmatprep.subr.mxu0 0.0
  %394 = vmatpush1.msra.mxu0 0.0
  %395 = vmatprep.subr.mxu0 0.0
  %396 = vmatpush1.msra.mxu0 0.0
  %397 = vmatprep.subr.mxu0 0.0
  %398 = vmatpush1.msra.mxu0 0.0
  %399 = vmatprep.subr.mxu0 0.0
  %400 = vmatpush1.msra.mxu0 0.0
  %401 = vmatprep.subr.mxu0 0.0
  %402 = vmatpush1.msra.mxu0 0.0
  %403 = vmatprep.subr.mxu0 0.0
  %404 = vmatpush1.msra.mxu0 0.0
  %405 = vmatprep.subr.mxu0 0.0
  %406 = vmatpush1.msra.mxu0 0.0
  %407 = vmatprep.subr.mxu0 0.0
  %408 = vmatpush1.msra.mxu0 0.0
  %409 = vmatprep.subr.mxu0 0.0
  %410 = vmatpush1.msra.mxu0 0.0
  %411 = vmatprep.subr.mxu0 0.0
  %412 = vmatpush1.msra.mxu0 %v376
  %413 = vmatprep.subr.mxu0 0.0
  %414 = vmatpush2.msra.mxu0 0.0
  %415 = vmatprep.subr.mxu0 0.0
  %416 = vmatpush2.msra.mxu0 0.0
  %417 = vmatprep.subr.mxu0 0.0
  %418 = vmatpush2.msra.mxu0 0.0
  %419 = vmatprep.subr.mxu0 0.0
  %420 = vmatpush2.msra.mxu0 0.0
  %421 = vmatprep.subr.mxu0 0.0
  %422 = vmatpush2.msra.mxu0 0.0
  %423 = vmatprep.subr.mxu0 0.0
  %424 = vmatpush2.msra.mxu0 0.0
  %425 = vmatprep.subr.mxu0 0.0
  %426 = vmatpush2.msra.mxu0 0.0
  %427 = vmatprep.subr.mxu0 0.0
  %428 = vmatpush2.msra.mxu0 0.0
  %429 = vmatprep.subr.mxu0 0.0
  %430 = vmatpush2.msra.mxu0 0.0
  %431 = vmatprep.subr.mxu0 0.0
  %432 = vmatpush2.msra.mxu0 0.0
  %433 = vmatprep.subr.mxu0 0.0
  %434 = vmatpush2.msra.mxu0 0.0
  %435 = vmatprep.subr.mxu0 0.0
  %436 = vmatpush2.msra.mxu0 0.0
  %437 = vmatprep.subr.mxu0 0.0
  %438 = vmatpush2.msra.mxu0 0.0
  %439 = vmatprep.subr.mxu0 0.0
  %440 = vmatpush2.msra.mxu0 0.0
  %441 = vmatprep.subr.mxu0 0.0
  %442 = vmatpush2.msra.mxu0 0.0
  %443 = vmatprep.subr.mxu0 0.0
  %444 = vmatpush2.msra.mxu0 0.0
  %445 = vmatprep.mubr.f32.mxu0 0.0
  %446 = vmatmul.mubr.f32.gmra.mxu0 %v379
  %v447 = vpop.f32.mrf.mxu0
  %v448 = vadd.f32 0.0, %v447
  %v449 = vpop.f32.mrf.mxu0
  %450 = vdwg.mxu0
  %451 = vrot.lane.b32.xlu0 %v179, 64
  %v452 = vpop.permute.xlu0 %451
  %v455 = vsel %vm185, %v374, 0
  %457 = vmatprep.subr.mxu0 0.0
  %458 = vmatpush1.msra.mxu0 0.0
  %459 = vmatprep.subr.mxu0 0.0
  %460 = vmatpush1.msra.mxu0 0.0
  %461 = vmatprep.subr.mxu0 0.0
  %462 = vmatpush1.msra.mxu0 0.0
  %463 = vmatprep.subr.mxu0 0.0
  %464 = vmatpush1.msra.mxu0 0.0
  %465 = vmatprep.subr.mxu0 0.0
  %466 = vmatpush1.msra.mxu0 0.0
  %467 = vmatprep.subr.mxu0 0.0
  %468 = vmatpush1.msra.mxu0 0.0
  %469 = vmatprep.subr.mxu0 0.0
  %470 = vmatpush1.msra.mxu0 0.0
  %471 = vmatprep.subr.mxu0 0.0
  %472 = vmatpush1.msra.mxu0 0.0
  %473 = vmatprep.subr.mxu0 0.0
  %474 = vmatpush1.msra.mxu0 0.0
  %475 = vmatprep.subr.mxu0 0.0
  %476 = vmatpush1.msra.mxu0 0.0
  %477 = vmatprep.subr.mxu0 0.0
  %478 = vmatpush1.msra.mxu0 0.0
  %479 = vmatprep.subr.mxu0 0.0
  %480 = vmatpush1.msra.mxu0 0.0
  %481 = vmatprep.subr.mxu0 0.0
  %482 = vmatpush1.msra.mxu0 0.0
  %483 = vmatprep.subr.mxu0 0.0
  %484 = vmatpush1.msra.mxu0 0.0
  %485 = vmatprep.subr.mxu0 0.0
  %486 = vmatpush1.msra.mxu0 0.0
  %487 = vmatprep.subr.mxu0 0.0
  %488 = vmatpush1.msra.mxu0 %v452
  %489 = vmatprep.subr.mxu0 0.0
  %490 = vmatpush2.msra.mxu0 0.0
  %491 = vmatprep.subr.mxu0 0.0
  %492 = vmatpush2.msra.mxu0 0.0
  %493 = vmatprep.subr.mxu0 0.0
  %494 = vmatpush2.msra.mxu0 0.0
  %495 = vmatprep.subr.mxu0 0.0
  %496 = vmatpush2.msra.mxu0 0.0
  %497 = vmatprep.subr.mxu0 0.0
  %498 = vmatpush2.msra.mxu0 0.0
  %499 = vmatprep.subr.mxu0 0.0
  %500 = vmatpush2.msra.mxu0 0.0
  %501 = vmatprep.subr.mxu0 0.0
  %502 = vmatpush2.msra.mxu0 0.0
  %503 = vmatprep.subr.mxu0 0.0
  %504 = vmatpush2.msra.mxu0 0.0
  %505 = vmatprep.subr.mxu0 0.0
  %506 = vmatpush2.msra.mxu0 0.0
  %507 = vmatprep.subr.mxu0 0.0
  %508 = vmatpush2.msra.mxu0 0.0
  %509 = vmatprep.subr.mxu0 0.0
  %510 = vmatpush2.msra.mxu0 0.0
  %511 = vmatprep.subr.mxu0 0.0
  %512 = vmatpush2.msra.mxu0 0.0
  %513 = vmatprep.subr.mxu0 0.0
  %514 = vmatpush2.msra.mxu0 0.0
  %515 = vmatprep.subr.mxu0 0.0
  %516 = vmatpush2.msra.mxu0 0.0
  %517 = vmatprep.subr.mxu0 0.0
  %518 = vmatpush2.msra.mxu0 0.0
  %519 = vmatprep.subr.mxu0 0.0
  %520 = vmatpush2.msra.mxu0 0.0
  %521 = vmatprep.mubr.f32.mxu0 0.0
  %522 = vmatmul.mubr.f32.gmra.mxu0 %v455
  %v523 = vpop.f32.mrf.mxu0
  %v524 = vadd.f32 0.0, %v523
  %v525 = vpop.f32.mrf.mxu0
  %526 = vdwg.mxu0
  %527 = vrot.lane.b32.xlu0 %v176, 120
  %v528 = vpop.permute.xlu0 %527
  %529 = vrot.lane.b32.xlu0 %v176, 88
  %v530 = vpop.permute.xlu0 %529
  %v531 = vsel %vm185, %v528, 0
  %v533 = vsel %vm185, %v530, 0
  %535 = vmatprep.subr.mxu0 0.0
  %536 = vmatpush1.xpose.msra.mxu0 0.0
  %537 = vmatprep.subr.mxu0 0.0
  %538 = vmatpush1.xpose.msra.mxu0 0.0
  %539 = vmatprep.subr.mxu0 0.0
  %540 = vmatpush1.xpose.msra.mxu0 0.0
  %541 = vmatprep.subr.mxu0 0.0
  %542 = vmatpush1.xpose.msra.mxu0 0.0
  %543 = vmatprep.subr.mxu0 0.0
  %544 = vmatpush1.xpose.msra.mxu0 0.0
  %545 = vmatprep.subr.mxu0 0.0
  %546 = vmatpush1.xpose.msra.mxu0 0.0
  %547 = vmatprep.subr.mxu0 0.0
  %548 = vmatpush1.xpose.msra.mxu0 0.0
  %549 = vmatprep.subr.mxu0 0.0
  %550 = vmatpush1.xpose.msra.mxu0 0.0
  %551 = vmatprep.subr.mxu0 0.0
  %552 = vmatpush1.xpose.msra.mxu0 0.0
  %553 = vmatprep.subr.mxu0 0.0
  %554 = vmatpush1.xpose.msra.mxu0 0.0
  %555 = vmatprep.subr.mxu0 0.0
  %556 = vmatpush1.xpose.msra.mxu0 0.0
  %557 = vmatprep.subr.mxu0 0.0
  %558 = vmatpush1.xpose.msra.mxu0 0.0
  %559 = vmatprep.subr.mxu0 0.0
  %560 = vmatpush1.xpose.msra.mxu0 0.0
  %561 = vmatprep.subr.mxu0 0.0
  %562 = vmatpush1.xpose.msra.mxu0 0.0
  %563 = vmatprep.subr.mxu0 0.0
  %564 = vmatpush1.xpose.msra.mxu0 0.0
  %565 = vmatprep.subr.mxu0 0.0
  %566 = vmatpush1.xpose.msra.mxu0 %v533
  %567 = vmatprep.subr.mxu0 0.0
  %568 = vmatpush2.xpose.msra.mxu0 0.0
  %569 = vmatprep.subr.mxu0 0.0
  %570 = vmatpush2.xpose.msra.mxu0 0.0
  %571 = vmatprep.subr.mxu0 0.0
  %572 = vmatpush2.xpose.msra.mxu0 0.0
  %573 = vmatprep.subr.mxu0 0.0
  %574 = vmatpush2.xpose.msra.mxu0 0.0
  %575 = vmatprep.subr.mxu0 0.0
  %576 = vmatpush2.xpose.msra.mxu0 0.0
  %577 = vmatprep.subr.mxu0 0.0
  %578 = vmatpush2.xpose.msra.mxu0 0.0
  %579 = vmatprep.subr.mxu0 0.0
  %580 = vmatpush2.xpose.msra.mxu0 0.0
  %581 = vmatprep.subr.mxu0 0.0
  %582 = vmatpush2.xpose.msra.mxu0 0.0
  %583 = vmatprep.subr.mxu0 0.0
  %584 = vmatpush2.xpose.msra.mxu0 0.0
  %585 = vmatprep.subr.mxu0 0.0
  %586 = vmatpush2.xpose.msra.mxu0 0.0
  %587 = vmatprep.subr.mxu0 0.0
  %588 = vmatpush2.xpose.msra.mxu0 0.0
  %589 = vmatprep.subr.mxu0 0.0
  %590 = vmatpush2.xpose.msra.mxu0 0.0
  %591 = vmatprep.subr.mxu0 0.0
  %592 = vmatpush2.xpose.msra.mxu0 0.0
  %593 = vmatprep.subr.mxu0 0.0
  %594 = vmatpush2.xpose.msra.mxu0 0.0
  %595 = vmatprep.subr.mxu0 0.0
  %596 = vmatpush2.xpose.msra.mxu0 0.0
  %597 = vmatprep.subr.mxu0 0.0
  %598 = vmatpush2.xpose.msra.mxu0 0.0
  %599 = vmatprep.mubr.f32.mxu0 0.0
  %600 = vmatmul.mubr.f32.gmra.mxu0 %v531
  %v601 = vpop.f32.mrf.mxu0
  %v602 = vadd.f32 0.0, %v601
  %v603 = vpop.f32.mrf.mxu0
  %604 = vdwg.mxu0
  %605 = vrot.lane.b32.xlu0 %v179, 120
  %v606 = vpop.permute.xlu0 %605
  %607 = vrot.lane.b32.xlu0 %v179, 88
  %v608 = vpop.permute.xlu0 %607
  %v609 = vsel %vm185, %v606, 0
  %v611 = vsel %vm185, %v608, 0
  %613 = vmatprep.subr.mxu0 0.0
  %614 = vmatpush1.xpose.msra.mxu0 0.0
  %615 = vmatprep.subr.mxu0 0.0
  %616 = vmatpush1.xpose.msra.mxu0 0.0
  %617 = vmatprep.subr.mxu0 0.0
  %618 = vmatpush1.xpose.msra.mxu0 0.0
  %619 = vmatprep.subr.mxu0 0.0
  %620 = vmatpush1.xpose.msra.mxu0 0.0
  %621 = vmatprep.subr.mxu0 0.0
  %622 = vmatpush1.xpose.msra.mxu0 0.0
  %623 = vmatprep.subr.mxu0 0.0
  %624 = vmatpush1.xpose.msra.mxu0 0.0
  %625 = vmatprep.subr.mxu0 0.0
  %626 = vmatpush1.xpose.msra.mxu0 0.0
  %627 = vmatprep.subr.mxu0 0.0
  %628 = vmatpush1.xpose.msra.mxu0 0.0
  %629 = vmatprep.subr.mxu0 0.0
  %630 = vmatpush1.xpose.msra.mxu0 0.0
  %631 = vmatprep.subr.mxu0 0.0
  %632 = vmatpush1.xpose.msra.mxu0 0.0
  %633 = vmatprep.subr.mxu0 0.0
  %634 = vmatpush1.xpose.msra.mxu0 0.0
  %635 = vmatprep.subr.mxu0 0.0
  %636 = vmatpush1.xpose.msra.mxu0 0.0
  %637 = vmatprep.subr.mxu0 0.0
  %638 = vmatpush1.xpose.msra.mxu0 0.0
  %639 = vmatprep.subr.mxu0 0.0
  %640 = vmatpush1.xpose.msra.mxu0 0.0
  %641 = vmatprep.subr.mxu0 0.0
  %642 = vmatpush1.xpose.msra.mxu0 0.0
  %643 = vmatprep.subr.mxu0 0.0
  %644 = vmatpush1.xpose.msra.mxu0 %v611
  %645 = vmatprep.subr.mxu0 0.0
  %646 = vmatpush2.xpose.msra.mxu0 0.0
  %647 = vmatprep.subr.mxu0 0.0
  %648 = vmatpush2.xpose.msra.mxu0 0.0
  %649 = vmatprep.subr.mxu0 0.0
  %650 = vmatpush2.xpose.msra.mxu0 0.0
  %651 = vmatprep.subr.mxu0 0.0
  %652 = vmatpush2.xpose.msra.mxu0 0.0
  %653 = vmatprep.subr.mxu0 0.0
  %654 = vmatpush2.xpose.msra.mxu0 0.0
  %655 = vmatprep.subr.mxu0 0.0
  %656 = vmatpush2.xpose.msra.mxu0 0.0
  %657 = vmatprep.subr.mxu0 0.0
  %658 = vmatpush2.xpose.msra.mxu0 0.0
  %659 = vmatprep.subr.mxu0 0.0
  %660 = vmatpush2.xpose.msra.mxu0 0.0
  %661 = vmatprep.subr.mxu0 0.0
  %662 = vmatpush2.xpose.msra.mxu0 0.0
  %663 = vmatprep.subr.mxu0 0.0
  %664 = vmatpush2.xpose.msra.mxu0 0.0
  %665 = vmatprep.subr.mxu0 0.0
  %666 = vmatpush2.xpose.msra.mxu0 0.0
  %667 = vmatprep.subr.mxu0 0.0
  %668 = vmatpush2.xpose.msra.mxu0 0.0
  %669 = vmatprep.subr.mxu0 0.0
  %670 = vmatpush2.xpose.msra.mxu0 0.0
  %671 = vmatprep.subr.mxu0 0.0
  %672 = vmatpush2.xpose.msra.mxu0 0.0
  %673 = vmatprep.subr.mxu0 0.0
  %674 = vmatpush2.xpose.msra.mxu0 0.0
  %675 = vmatprep.subr.mxu0 0.0
  %676 = vmatpush2.xpose.msra.mxu0 0.0
  %677 = vmatprep.mubr.f32.mxu0 0.0
  %678 = vmatmul.mubr.f32.gmra.mxu0 %v609
  %v679 = vpop.f32.mrf.mxu0
  %v680 = vadd.f32 0.0, %v679
  %v681 = vpop.f32.mrf.mxu0
  %682 = vdwg.mxu0
  %v683 = vmul.f32 %v602, 0.35355338
  %v684 = vmul.f32 %v680, 0.35355338
  %v685 = vadd.f32 %v683, %v344
  %v686 = vadd.f32 %v684, %v348
  %v687 = vsel %vm185, %v685, -inf
  %688 = vmax.xlane.f32.xlu0 %v687
  %v689 = vpop.xlane.xlu0 %688
  %v690 = vsel %vm185, %v686, -inf
  %691 = vmax.xlane.f32.xlu0 %v690
  %v692 = vpop.xlane.xlu0 %691
  %v693 = vsub.f32 %v685, %v689
  %v694 = vsub.f32 %v686, %v692
  %v695 = vmul.f32 %v693, 1.442695
  %v696 = vpow.pop %v695
  %v697 = vmul.f32 %v694, 1.442695
  %v698 = vpow.pop %v697
  %v699 = vsel %vm185, %v696, 0.0
  %700 = vadd.xlane.f32.xlu0 %v699
  %v701 = vpop.xlane.xlu0 %700
  %v702 = vsel %vm185, %v698, 0.0
  %703 = vadd.xlane.f32.xlu0 %v702
  %v704 = vpop.xlane.xlu0 %703
  %v705 = vrcp.pop %v701
  %v706 = vrcp.pop %v704
  %v707 = vmul.f32 %v696, %v705
  %v708 = vmul.f32 %v698, %v706
  %709 = vrot.lane.b32.xlu0 %v176, 56
  %v710 = vpop.permute.xlu0 %709
  %v713 = vsel %vm185, %v707, 0
  %715 = vmatprep.subr.mxu0 0.0
  %716 = vmatpush1.msra.mxu0 0.0
  %717 = vmatprep.subr.mxu0 0.0
  %718 = vmatpush1.msra.mxu0 0.0
  %719 = vmatprep.subr.mxu0 0.0
  %720 = vmatpush1.msra.mxu0 0.0
  %721 = vmatprep.subr.mxu0 0.0
  %722 = vmatpush1.msra.mxu0 0.0
  %723 = vmatprep.subr.mxu0 0.0
  %724 = vmatpush1.msra.mxu0 0.0
  %725 = vmatprep.subr.mxu0 0.0
  %726 = vmatpush1.msra.mxu0 0.0
  %727 = vmatprep.subr.mxu0 0.0
  %728 = vmatpush1.msra.mxu0 0.0
  %729 = vmatprep.subr.mxu0 0.0
  %730 = vmatpush1.msra.mxu0 0.0
  %731 = vmatprep.subr.mxu0 0.0
  %732 = vmatpush1.msra.mxu0 0.0
  %733 = vmatprep.subr.mxu0 0.0
  %734 = vmatpush1.msra.mxu0 0.0
  %735 = vmatprep.subr.mxu0 0.0
  %736 = vmatpush1.msra.mxu0 0.0
  %737 = vmatprep.subr.mxu0 0.0
  %738 = vmatpush1.msra.mxu0 0.0
  %739 = vmatprep.subr.mxu0 0.0
  %740 = vmatpush1.msra.mxu0 0.0
  %741 = vmatprep.subr.mxu0 0.0
  %742 = vmatpush1.msra.mxu0 0.0
  %743 = vmatprep.subr.mxu0 0.0
  %744 = vmatpush1.msra.mxu0 0.0
  %745 = vmatprep.subr.mxu0 0.0
  %746 = vmatpush1.msra.mxu0 %v710
  %747 = vmatprep.subr.mxu0 0.0
  %748 = vmatpush2.msra.mxu0 0.0
  %749 = vmatprep.subr.mxu0 0.0
  %750 = vmatpush2.msra.mxu0 0.0
  %751 = vmatprep.subr.mxu0 0.0
  %752 = vmatpush2.msra.mxu0 0.0
  %753 = vmatprep.subr.mxu0 0.0
  %754 = vmatpush2.msra.mxu0 0.0
  %755 = vmatprep.subr.mxu0 0.0
  %756 = vmatpush2.msra.mxu0 0.0
  %757 = vmatprep.subr.mxu0 0.0
  %758 = vmatpush2.msra.mxu0 0.0
  %759 = vmatprep.subr.mxu0 0.0
  %760 = vmatpush2.msra.mxu0 0.0
  %761 = vmatprep.subr.mxu0 0.0
  %762 = vmatpush2.msra.mxu0 0.0
  %763 = vmatprep.subr.mxu0 0.0
  %764 = vmatpush2.msra.mxu0 0.0
  %765 = vmatprep.subr.mxu0 0.0
  %766 = vmatpush2.msra.mxu0 0.0
  %767 = vmatprep.subr.mxu0 0.0
  %768 = vmatpush2.msra.mxu0 0.0
  %769 = vmatprep.subr.mxu0 0.0
  %770 = vmatpush2.msra.mxu0 0.0
  %771 = vmatprep.subr.mxu0 0.0
  %772 = vmatpush2.msra.mxu0 0.0
  %773 = vmatprep.subr.mxu0 0.0
  %774 = vmatpush2.msra.mxu0 0.0
  %775 = vmatprep.subr.mxu0 0.0
  %776 = vmatpush2.msra.mxu0 0.0
  %777 = vmatprep.subr.mxu0 0.0
  %778 = vmatpush2.msra.mxu0 0.0
  %779 = vmatprep.mubr.f32.mxu0 0.0
  %780 = vmatmul.mubr.f32.gmra.mxu0 %v713
  %v781 = vpop.f32.mrf.mxu0
  %v782 = vadd.f32 0.0, %v781
  %v783 = vpop.f32.mrf.mxu0
  %784 = vdwg.mxu0
  %785 = vrot.lane.b32.xlu0 %v179, 56
  %v786 = vpop.permute.xlu0 %785
  %v789 = vsel %vm185, %v708, 0
  %791 = vmatprep.subr.mxu0 0.0
  %792 = vmatpush1.msra.mxu0 0.0
  %793 = vmatprep.subr.mxu0 0.0
  %794 = vmatpush1.msra.mxu0 0.0
  %795 = vmatprep.subr.mxu0 0.0
  %796 = vmatpush1.msra.mxu0 0.0
  %797 = vmatprep.subr.mxu0 0.0
  %798 = vmatpush1.msra.mxu0 0.0
  %799 = vmatprep.subr.mxu0 0.0
  %800 = vmatpush1.msra.mxu0 0.0
  %801 = vmatprep.subr.mxu0 0.0
  %802 = vmatpush1.msra.mxu0 0.0
  %803 = vmatprep.subr.mxu0 0.0
  %804 = vmatpush1.msra.mxu0 0.0
  %805 = vmatprep.subr.mxu0 0.0
  %806 = vmatpush1.msra.mxu0 0.0
  %807 = vmatprep.subr.mxu0 0.0
  %808 = vmatpush1.msra.mxu0 0.0
  %809 = vmatprep.subr.mxu0 0.0
  %810 = vmatpush1.msra.mxu0 0.0
  %811 = vmatprep.subr.mxu0 0.0
  %812 = vmatpush1.msra.mxu0 0.0
  %813 = vmatprep.subr.mxu0 0.0
  %814 = vmatpush1.msra.mxu0 0.0
  %815 = vmatprep.subr.mxu0 0.0
  %816 = vmatpush1.msra.mxu0 0.0
  %817 = vmatprep.subr.mxu0 0.0
  %818 = vmatpush1.msra.mxu0 0.0
  %819 = vmatprep.subr.mxu0 0.0
  %820 = vmatpush1.msra.mxu0 0.0
  %821 = vmatprep.subr.mxu0 0.0
  %822 = vmatpush1.msra.mxu0 %v786
  %823 = vmatprep.subr.mxu0 0.0
  %824 = vmatpush2.msra.mxu0 0.0
  %825 = vmatprep.subr.mxu0 0.0
  %826 = vmatpush2.msra.mxu0 0.0
  %827 = vmatprep.subr.mxu0 0.0
  %828 = vmatpush2.msra.mxu0 0.0
  %829 = vmatprep.subr.mxu0 0.0
  %830 = vmatpush2.msra.mxu0 0.0
  %831 = vmatprep.subr.mxu0 0.0
  %832 = vmatpush2.msra.mxu0 0.0
  %833 = vmatprep.subr.mxu0 0.0
  %834 = vmatpush2.msra.mxu0 0.0
  %835 = vmatprep.subr.mxu0 0.0
  %836 = vmatpush2.msra.mxu0 0.0
  %837 = vmatprep.subr.mxu0 0.0
  %838 = vmatpush2.msra.mxu0 0.0
  %839 = vmatprep.subr.mxu0 0.0
  %840 = vmatpush2.msra.mxu0 0.0
  %841 = vmatprep.subr.mxu0 0.0
  %842 = vmatpush2.msra.mxu0 0.0
  %843 = vmatprep.subr.mxu0 0.0
  %844 = vmatpush2.msra.mxu0 0.0
  %845 = vmatprep.subr.mxu0 0.0
  %846 = vmatpush2.msra.mxu0 0.0
  %847 = vmatprep.subr.mxu0 0.0
  %848 = vmatpush2.msra.mxu0 0.0
  %849 = vmatprep.subr.mxu0 0.0
  %850 = vmatpush2.msra.mxu0 0.0
  %851 = vmatprep.subr.mxu0 0.0
  %852 = vmatpush2.msra.mxu0 0.0
  %853 = vmatprep.subr.mxu0 0.0
  %854 = vmatpush2.msra.mxu0 0.0
  %855 = vmatprep.mubr.f32.mxu0 0.0
  %856 = vmatmul.mubr.f32.gmra.mxu0 %v789
  %v857 = vpop.f32.mrf.mxu0
  %v858 = vadd.f32 0.0, %v857
  %v859 = vpop.f32.mrf.mxu0
  %860 = vdwg.mxu0
  %861 = vrot.lane.b32.xlu0 %v176, 112
  %v862 = vpop.permute.xlu0 %861
  %863 = vrot.lane.b32.xlu0 %v176, 80
  %v864 = vpop.permute.xlu0 %863
  %v865 = vsel %vm185, %v862, 0
  %v867 = vsel %vm185, %v864, 0
  %869 = vmatprep.subr.mxu0 0.0
  %870 = vmatpush1.xpose.msra.mxu0 0.0
  %871 = vmatprep.subr.mxu0 0.0
  %872 = vmatpush1.xpose.msra.mxu0 0.0
  %873 = vmatprep.subr.mxu0 0.0
  %874 = vmatpush1.xpose.msra.mxu0 0.0
  %875 = vmatprep.subr.mxu0 0.0
  %876 = vmatpush1.xpose.msra.mxu0 0.0
  %877 = vmatprep.subr.mxu0 0.0
  %878 = vmatpush1.xpose.msra.mxu0 0.0
  %879 = vmatprep.subr.mxu0 0.0
  %880 = vmatpush1.xpose.msra.mxu0 0.0
  %881 = vmatprep.subr.mxu0 0.0
  %882 = vmatpush1.xpose.msra.mxu0 0.0
  %883 = vmatprep.subr.mxu0 0.0
  %884 = vmatpush1.xpose.msra.mxu0 0.0
  %885 = vmatprep.subr.mxu0 0.0
  %886 = vmatpush1.xpose.msra.mxu0 0.0
  %887 = vmatprep.subr.mxu0 0.0
  %888 = vmatpush1.xpose.msra.mxu0 0.0
  %889 = vmatprep.subr.mxu0 0.0
  %890 = vmatpush1.xpose.msra.mxu0 0.0
  %891 = vmatprep.subr.mxu0 0.0
  %892 = vmatpush1.xpose.msra.mxu0 0.0
  %893 = vmatprep.subr.mxu0 0.0
  %894 = vmatpush1.xpose.msra.mxu0 0.0
  %895 = vmatprep.subr.mxu0 0.0
  %896 = vmatpush1.xpose.msra.mxu0 0.0
  %897 = vmatprep.subr.mxu0 0.0
  %898 = vmatpush1.xpose.msra.mxu0 0.0
  %899 = vmatprep.subr.mxu0 0.0
  %900 = vmatpush1.xpose.msra.mxu0 %v867
  %901 = vmatprep.subr.mxu0 0.0
  %902 = vmatpush2.xpose.msra.mxu0 0.0
  %903 = vmatprep.subr.mxu0 0.0
  %904 = vmatpush2.xpose.msra.mxu0 0.0
  %905 = vmatprep.subr.mxu0 0.0
  %906 = vmatpush2.xpose.msra.mxu0 0.0
  %907 = vmatprep.subr.mxu0 0.0
  %908 = vmatpush2.xpose.msra.mxu0 0.0
  %909 = vmatprep.subr.mxu0 0.0
  %910 = vmatpush2.xpose.msra.mxu0 0.0
  %911 = vmatprep.subr.mxu0 0.0
  %912 = vmatpush2.xpose.msra.mxu0 0.0
  %913 = vmatprep.subr.mxu0 0.0
  %914 = vmatpush2.xpose.msra.mxu0 0.0
  %915 = vmatprep.subr.mxu0 0.0
  %916 = vmatpush2.xpose.msra.mxu0 0.0
  %917 = vmatprep.subr.mxu0 0.0
  %918 = vmatpush2.xpose.msra.mxu0 0.0
  %919 = vmatprep.subr.mxu0 0.0
  %920 = vmatpush2.xpose.msra.mxu0 0.0
  %921 = vmatprep.subr.mxu0 0.0
  %922 = vmatpush2.xpose.msra.mxu0 0.0
  %923 = vmatprep.subr.mxu0 0.0
  %924 = vmatpush2.xpose.msra.mxu0 0.0
  %925 = vmatprep.subr.mxu0 0.0
  %926 = vmatpush2.xpose.msra.mxu0 0.0
  %927 = vmatprep.subr.mxu0 0.0
  %928 = vmatpush2.xpose.msra.mxu0 0.0
  %929 = vmatprep.subr.mxu0 0.0
  %930 = vmatpush2.xpose.msra.mxu0 0.0
  %931 = vmatprep.subr.mxu0 0.0
  %932 = vmatpush2.xpose.msra.mxu0 0.0
  %933 = vmatprep.mubr.f32.mxu0 0.0
  %934 = vmatmul.mubr.f32.gmra.mxu0 %v865
  %v935 = vpop.f32.mrf.mxu0
  %v936 = vadd.f32 0.0, %v935
  %v937 = vpop.f32.mrf.mxu0
  %938 = vdwg.mxu0
  %939 = vrot.lane.b32.xlu0 %v179, 112
  %v940 = vpop.permute.xlu0 %939
  %941 = vrot.lane.b32.xlu0 %v179, 80
  %v942 = vpop.permute.xlu0 %941
  %v943 = vsel %vm185, %v940, 0
  %v945 = vsel %vm185, %v942, 0
  %947 = vmatprep.subr.mxu0 0.0
  %948 = vmatpush1.xpose.msra.mxu0 0.0
  %949 = vmatprep.subr.mxu0 0.0
  %950 = vmatpush1.xpose.msra.mxu0 0.0
  %951 = vmatprep.subr.mxu0 0.0
  %952 = vmatpush1.xpose.msra.mxu0 0.0
  %953 = vmatprep.subr.mxu0 0.0
  %954 = vmatpush1.xpose.msra.mxu0 0.0
  %955 = vmatprep.subr.mxu0 0.0
  %956 = vmatpush1.xpose.msra.mxu0 0.0
  %957 = vmatprep.subr.mxu0 0.0
  %958 = vmatpush1.xpose.msra.mxu0 0.0
  %959 = vmatprep.subr.mxu0 0.0
  %960 = vmatpush1.xpose.msra.mxu0 0.0
  %961 = vmatprep.subr.mxu0 0.0
  %962 = vmatpush1.xpose.msra.mxu0 0.0
  %963 = vmatprep.subr.mxu0 0.0
  %964 = vmatpush1.xpose.msra.mxu0 0.0
  %965 = vmatprep.subr.mxu0 0.0
  %966 = vmatpush1.xpose.msra.mxu0 0.0
  %967 = vmatprep.subr.mxu0 0.0
  %968 = vmatpush1.xpose.msra.mxu0 0.0
  %969 = vmatprep.subr.mxu0 0.0
  %970 = vmatpush1.xpose.msra.mxu0 0.0
  %971 = vmatprep.subr.mxu0 0.0
  %972 = vmatpush1.xpose.msra.mxu0 0.0
  %973 = vmatprep.subr.mxu0 0.0
  %974 = vmatpush1.xpose.msra.mxu0 0.0
  %975 = vmatprep.subr.mxu0 0.0
  %976 = vmatpush1.xpose.msra.mxu0 0.0
  %977 = vmatprep.subr.mxu0 0.0
  %978 = vmatpush1.xpose.msra.mxu0 %v945
  %979 = vmatprep.subr.mxu0 0.0
  %980 = vmatpush2.xpose.msra.mxu0 0.0
  %981 = vmatprep.subr.mxu0 0.0
  %982 = vmatpush2.xpose.msra.mxu0 0.0
  %983 = vmatprep.subr.mxu0 0.0
  %984 = vmatpush2.xpose.msra.mxu0 0.0
  %985 = vmatprep.subr.mxu0 0.0
  %986 = vmatpush2.xpose.msra.mxu0 0.0
  %987 = vmatprep.subr.mxu0 0.0
  %988 = vmatpush2.xpose.msra.mxu0 0.0
  %989 = vmatprep.subr.mxu0 0.0
  %990 = vmatpush2.xpose.msra.mxu0 0.0
  %991 = vmatprep.subr.mxu0 0.0
  %992 = vmatpush2.xpose.msra.mxu0 0.0
  %993 = vmatprep.subr.mxu0 0.0
  %994 = vmatpush2.xpose.msra.mxu0 0.0
  %995 = vmatprep.subr.mxu0 0.0
  %996 = vmatpush2.xpose.msra.mxu0 0.0
  %997 = vmatprep.subr.mxu0 0.0
  %998 = vmatpush2.xpose.msra.mxu0 0.0
  %999 = vmatprep.subr.mxu0 0.0
  %1000 = vmatpush2.xpose.msra.mxu0 0.0
  %1001 = vmatprep.subr.mxu0 0.0
  %1002 = vmatpush2.xpose.msra.mxu0 0.0
  %1003 = vmatprep.subr.mxu0 0.0
  %1004 = vmatpush2.xpose.msra.mxu0 0.0
  %1005 = vmatprep.subr.mxu0 0.0
  %1006 = vmatpush2.xpose.msra.mxu0 0.0
  %1007 = vmatprep.subr.mxu0 0.0
  %1008 = vmatpush2.xpose.msra.mxu0 0.0
  %1009 = vmatprep.subr.mxu0 0.0
  %1010 = vmatpush2.xpose.msra.mxu0 0.0
  %1011 = vmatprep.mubr.f32.mxu0 0.0
  %1012 = vmatmul.mubr.f32.gmra.mxu0 %v943
  %v1013 = vpop.f32.mrf.mxu0
  %v1014 = vadd.f32 0.0, %v1013
  %v1015 = vpop.f32.mrf.mxu0
  %1016 = vdwg.mxu0
  %v1017 = vmul.f32 %v936, 0.35355338
  %v1018 = vmul.f32 %v1014, 0.35355338
  %v1019 = vadd.f32 %v1017, %v344
  %v1020 = vadd.f32 %v1018, %v348
  %v1021 = vsel %vm185, %v1019, -inf
  %1022 = vmax.xlane.f32.xlu0 %v1021
  %v1023 = vpop.xlane.xlu0 %1022
  %v1024 = vsel %vm185, %v1020, -inf
  %1025 = vmax.xlane.f32.xlu0 %v1024
  %v1026 = vpop.xlane.xlu0 %1025
  %v1027 = vsub.f32 %v1019, %v1023
  %v1028 = vsub.f32 %v1020, %v1026
  %v1029 = vmul.f32 %v1027, 1.442695
  %v1030 = vpow.pop %v1029
  %v1031 = vmul.f32 %v1028, 1.442695
  %v1032 = vpow.pop %v1031
  %v1033 = vsel %vm185, %v1030, 0.0
  %1034 = vadd.xlane.f32.xlu0 %v1033
  %v1035 = vpop.xlane.xlu0 %1034
  %v1036 = vsel %vm185, %v1032, 0.0
  %1037 = vadd.xlane.f32.xlu0 %v1036
  %v1038 = vpop.xlane.xlu0 %1037
  %v1039 = vrcp.pop %v1035
  %v1040 = vrcp.pop %v1038
  %v1041 = vmul.f32 %v1030, %v1039
  %v1042 = vmul.f32 %v1032, %v1040
  %1043 = vrot.lane.b32.xlu0 %v176, 48
  %v1044 = vpop.permute.xlu0 %1043
  %v1047 = vsel %vm185, %v1041, 0
  %1049 = vmatprep.subr.mxu0 0.0
  %1050 = vmatpush1.msra.mxu0 0.0
  %1051 = vmatprep.subr.mxu0 0.0
  %1052 = vmatpush1.msra.mxu0 0.0
  %1053 = vmatprep.subr.mxu0 0.0
  %1054 = vmatpush1.msra.mxu0 0.0
  %1055 = vmatprep.subr.mxu0 0.0
  %1056 = vmatpush1.msra.mxu0 0.0
  %1057 = vmatprep.subr.mxu0 0.0
  %1058 = vmatpush1.msra.mxu0 0.0
  %1059 = vmatprep.subr.mxu0 0.0
  %1060 = vmatpush1.msra.mxu0 0.0
  %1061 = vmatprep.subr.mxu0 0.0
  %1062 = vmatpush1.msra.mxu0 0.0
  %1063 = vmatprep.subr.mxu0 0.0
  %1064 = vmatpush1.msra.mxu0 0.0
  %1065 = vmatprep.subr.mxu0 0.0
  %1066 = vmatpush1.msra.mxu0 0.0
  %1067 = vmatprep.subr.mxu0 0.0
  %1068 = vmatpush1.msra.mxu0 0.0
  %1069 = vmatprep.subr.mxu0 0.0
  %1070 = vmatpush1.msra.mxu0 0.0
  %1071 = vmatprep.subr.mxu0 0.0
  %1072 = vmatpush1.msra.mxu0 0.0
  %1073 = vmatprep.subr.mxu0 0.0
  %1074 = vmatpush1.msra.mxu0 0.0
  %1075 = vmatprep.subr.mxu0 0.0
  %1076 = vmatpush1.msra.mxu0 0.0
  %1077 = vmatprep.subr.mxu0 0.0
  %1078 = vmatpush1.msra.mxu0 0.0
  %1079 = vmatprep.subr.mxu0 0.0
  %1080 = vmatpush1.msra.mxu0 %v1044
  %1081 = vmatprep.subr.mxu0 0.0
  %1082 = vmatpush2.msra.mxu0 0.0
  %1083 = vmatprep.subr.mxu0 0.0
  %1084 = vmatpush2.msra.mxu0 0.0
  %1085 = vmatprep.subr.mxu0 0.0
  %1086 = vmatpush2.msra.mxu0 0.0
  %1087 = vmatprep.subr.mxu0 0.0
  %1088 = vmatpush2.msra.mxu0 0.0
  %1089 = vmatprep.subr.mxu0 0.0
  %1090 = vmatpush2.msra.mxu0 0.0
  %1091 = vmatprep.subr.mxu0 0.0
  %1092 = vmatpush2.msra.mxu0 0.0
  %1093 = vmatprep.subr.mxu0 0.0
  %1094 = vmatpush2.msra.mxu0 0.0
  %1095 = vmatprep.subr.mxu0 0.0
  %1096 = vmatpush2.msra.mxu0 0.0
  %1097 = vmatprep.subr.mxu0 0.0
  %1098 = vmatpush2.msra.mxu0 0.0
  %1099 = vmatprep.subr.mxu0 0.0
  %1100 = vmatpush2.msra.mxu0 0.0
  %1101 = vmatprep.subr.mxu0 0.0
  %1102 = vmatpush2.msra.mxu0 0.0
  %1103 = vmatprep.subr.mxu0 0.0
  %1104 = vmatpush2.msra.mxu0 0.0
  %1105 = vmatprep.subr.mxu0 0.0
  %1106 = vmatpush2.msra.mxu0 0.0
  %1107 = vmatprep.subr.mxu0 0.0
  %1108 = vmatpush2.msra.mxu0 0.0
  %1109 = vmatprep.subr.mxu0 0.0
  %1110 = vmatpush2.msra.mxu0 0.0
  %1111 = vmatprep.subr.mxu0 0.0
  %1112 = vmatpush2.msra.mxu0 0.0
  %1113 = vmatprep.mubr.f32.mxu0 0.0
  %1114 = vmatmul.mubr.f32.gmra.mxu0 %v1047
  %v1115 = vpop.f32.mrf.mxu0
  %v1116 = vadd.f32 0.0, %v1115
  %v1117 = vpop.f32.mrf.mxu0
  %1118 = vdwg.mxu0
  %1119 = vrot.lane.b32.xlu0 %v179, 48
  %v1120 = vpop.permute.xlu0 %1119
  %v1123 = vsel %vm185, %v1042, 0
  %1125 = vmatprep.subr.mxu0 0.0
  %1126 = vmatpush1.msra.mxu0 0.0
  %1127 = vmatprep.subr.mxu0 0.0
  %1128 = vmatpush1.msra.mxu0 0.0
  %1129 = vmatprep.subr.mxu0 0.0
  %1130 = vmatpush1.msra.mxu0 0.0
  %1131 = vmatprep.subr.mxu0 0.0
  %1132 = vmatpush1.msra.mxu0 0.0
  %1133 = vmatprep.subr.mxu0 0.0
  %1134 = vmatpush1.msra.mxu0 0.0
  %1135 = vmatprep.subr.mxu0 0.0
  %1136 = vmatpush1.msra.mxu0 0.0
  %1137 = vmatprep.subr.mxu0 0.0
  %1138 = vmatpush1.msra.mxu0 0.0
  %1139 = vmatprep.subr.mxu0 0.0
  %1140 = vmatpush1.msra.mxu0 0.0
  %1141 = vmatprep.subr.mxu0 0.0
  %1142 = vmatpush1.msra.mxu0 0.0
  %1143 = vmatprep.subr.mxu0 0.0
  %1144 = vmatpush1.msra.mxu0 0.0
  %1145 = vmatprep.subr.mxu0 0.0
  %1146 = vmatpush1.msra.mxu0 0.0
  %1147 = vmatprep.subr.mxu0 0.0
  %1148 = vmatpush1.msra.mxu0 0.0
  %1149 = vmatprep.subr.mxu0 0.0
  %1150 = vmatpush1.msra.mxu0 0.0
  %1151 = vmatprep.subr.mxu0 0.0
  %1152 = vmatpush1.msra.mxu0 0.0
  %1153 = vmatprep.subr.mxu0 0.0
  %1154 = vmatpush1.msra.mxu0 0.0
  %1155 = vmatprep.subr.mxu0 0.0
  %1156 = vmatpush1.msra.mxu0 %v1120
  %1157 = vmatprep.subr.mxu0 0.0
  %1158 = vmatpush2.msra.mxu0 0.0
  %1159 = vmatprep.subr.mxu0 0.0
  %1160 = vmatpush2.msra.mxu0 0.0
  %1161 = vmatprep.subr.mxu0 0.0
  %1162 = vmatpush2.msra.mxu0 0.0
  %1163 = vmatprep.subr.mxu0 0.0
  %1164 = vmatpush2.msra.mxu0 0.0
  %1165 = vmatprep.subr.mxu0 0.0
  %1166 = vmatpush2.msra.mxu0 0.0
  %1167 = vmatprep.subr.mxu0 0.0
  %1168 = vmatpush2.msra.mxu0 0.0
  %1169 = vmatprep.subr.mxu0 0.0
  %1170 = vmatpush2.msra.mxu0 0.0
  %1171 = vmatprep.subr.mxu0 0.0
  %1172 = vmatpush2.msra.mxu0 0.0
  %1173 = vmatprep.subr.mxu0 0.0
  %1174 = vmatpush2.msra.mxu0 0.0
  %1175 = vmatprep.subr.mxu0 0.0
  %1176 = vmatpush2.msra.mxu0 0.0
  %1177 = vmatprep.subr.mxu0 0.0
  %1178 = vmatpush2.msra.mxu0 0.0
  %1179 = vmatprep.subr.mxu0 0.0
  %1180 = vmatpush2.msra.mxu0 0.0
  %1181 = vmatprep.subr.mxu0 0.0
  %1182 = vmatpush2.msra.mxu0 0.0
  %1183 = vmatprep.subr.mxu0 0.0
  %1184 = vmatpush2.msra.mxu0 0.0
  %1185 = vmatprep.subr.mxu0 0.0
  %1186 = vmatpush2.msra.mxu0 0.0
  %1187 = vmatprep.subr.mxu0 0.0
  %1188 = vmatpush2.msra.mxu0 0.0
  %1189 = vmatprep.mubr.f32.mxu0 0.0
  %1190 = vmatmul.mubr.f32.gmra.mxu0 %v1123
  %v1191 = vpop.f32.mrf.mxu0
  %v1192 = vadd.f32 0.0, %v1191
  %v1193 = vpop.f32.mrf.mxu0
  %1194 = vdwg.mxu0
  %1195 = vrot.lane.b32.xlu0 %v176, 104
  %v1196 = vpop.permute.xlu0 %1195
  %1197 = vrot.lane.b32.xlu0 %v176, 72
  %v1198 = vpop.permute.xlu0 %1197
  %v1199 = vsel %vm185, %v1196, 0
  %v1201 = vsel %vm185, %v1198, 0
  %1203 = vmatprep.subr.mxu0 0.0
  %1204 = vmatpush1.xpose.msra.mxu0 0.0
  %1205 = vmatprep.subr.mxu0 0.0
  %1206 = vmatpush1.xpose.msra.mxu0 0.0
  %1207 = vmatprep.subr.mxu0 0.0
  %1208 = vmatpush1.xpose.msra.mxu0 0.0
  %1209 = vmatprep.subr.mxu0 0.0
  %1210 = vmatpush1.xpose.msra.mxu0 0.0
  %1211 = vmatprep.subr.mxu0 0.0
  %1212 = vmatpush1.xpose.msra.mxu0 0.0
  %1213 = vmatprep.subr.mxu0 0.0
  %1214 = vmatpush1.xpose.msra.mxu0 0.0
  %1215 = vmatprep.subr.mxu0 0.0
  %1216 = vmatpush1.xpose.msra.mxu0 0.0
  %1217 = vmatprep.subr.mxu0 0.0
  %1218 = vmatpush1.xpose.msra.mxu0 0.0
  %1219 = vmatprep.subr.mxu0 0.0
  %1220 = vmatpush1.xpose.msra.mxu0 0.0
  %1221 = vmatprep.subr.mxu0 0.0
  %1222 = vmatpush1.xpose.msra.mxu0 0.0
  %1223 = vmatprep.subr.mxu0 0.0
  %1224 = vmatpush1.xpose.msra.mxu0 0.0
  %1225 = vmatprep.subr.mxu0 0.0
  %1226 = vmatpush1.xpose.msra.mxu0 0.0
  %1227 = vmatprep.subr.mxu0 0.0
  %1228 = vmatpush1.xpose.msra.mxu0 0.0
  %1229 = vmatprep.subr.mxu0 0.0
  %1230 = vmatpush1.xpose.msra.mxu0 0.0
  %1231 = vmatprep.subr.mxu0 0.0
  %1232 = vmatpush1.xpose.msra.mxu0 0.0
  %1233 = vmatprep.subr.mxu0 0.0
  %1234 = vmatpush1.xpose.msra.mxu0 %v1201
  %1235 = vmatprep.subr.mxu0 0.0
  %1236 = vmatpush2.xpose.msra.mxu0 0.0
  %1237 = vmatprep.subr.mxu0 0.0
  %1238 = vmatpush2.xpose.msra.mxu0 0.0
  %1239 = vmatprep.subr.mxu0 0.0
  %1240 = vmatpush2.xpose.msra.mxu0 0.0
  %1241 = vmatprep.subr.mxu0 0.0
  %1242 = vmatpush2.xpose.msra.mxu0 0.0
  %1243 = vmatprep.subr.mxu0 0.0
  %1244 = vmatpush2.xpose.msra.mxu0 0.0
  %1245 = vmatprep.subr.mxu0 0.0
  %1246 = vmatpush2.xpose.msra.mxu0 0.0
  %1247 = vmatprep.subr.mxu0 0.0
  %1248 = vmatpush2.xpose.msra.mxu0 0.0
  %1249 = vmatprep.subr.mxu0 0.0
  %1250 = vmatpush2.xpose.msra.mxu0 0.0
  %1251 = vmatprep.subr.mxu0 0.0
  %1252 = vmatpush2.xpose.msra.mxu0 0.0
  %1253 = vmatprep.subr.mxu0 0.0
  %1254 = vmatpush2.xpose.msra.mxu0 0.0
  %1255 = vmatprep.subr.mxu0 0.0
  %1256 = vmatpush2.xpose.msra.mxu0 0.0
  %1257 = vmatprep.subr.mxu0 0.0
  %1258 = vmatpush2.xpose.msra.mxu0 0.0
  %1259 = vmatprep.subr.mxu0 0.0
  %1260 = vmatpush2.xpose.msra.mxu0 0.0
  %1261 = vmatprep.subr.mxu0 0.0
  %1262 = vmatpush2.xpose.msra.mxu0 0.0
  %1263 = vmatprep.subr.mxu0 0.0
  %1264 = vmatpush2.xpose.msra.mxu0 0.0
  %1265 = vmatprep.subr.mxu0 0.0
  %1266 = vmatpush2.xpose.msra.mxu0 0.0
  %1267 = vmatprep.mubr.f32.mxu0 0.0
  %1268 = vmatmul.mubr.f32.gmra.mxu0 %v1199
  %v1269 = vpop.f32.mrf.mxu0
  %v1270 = vadd.f32 0.0, %v1269
  %v1271 = vpop.f32.mrf.mxu0
  %1272 = vdwg.mxu0
  %1273 = vrot.lane.b32.xlu0 %v179, 104
  %v1274 = vpop.permute.xlu0 %1273
  %1275 = vrot.lane.b32.xlu0 %v179, 72
  %v1276 = vpop.permute.xlu0 %1275
  %v1277 = vsel %vm185, %v1274, 0
  %v1279 = vsel %vm185, %v1276, 0
  %1281 = vmatprep.subr.mxu0 0.0
  %1282 = vmatpush1.xpose.msra.mxu0 0.0
  %1283 = vmatprep.subr.mxu0 0.0
  %1284 = vmatpush1.xpose.msra.mxu0 0.0
  %1285 = vmatprep.subr.mxu0 0.0
  %1286 = vmatpush1.xpose.msra.mxu0 0.0
  %1287 = vmatprep.subr.mxu0 0.0
  %1288 = vmatpush1.xpose.msra.mxu0 0.0
  %1289 = vmatprep.subr.mxu0 0.0
  %1290 = vmatpush1.xpose.msra.mxu0 0.0
  %1291 = vmatprep.subr.mxu0 0.0
  %1292 = vmatpush1.xpose.msra.mxu0 0.0
  %1293 = vmatprep.subr.mxu0 0.0
  %1294 = vmatpush1.xpose.msra.mxu0 0.0
  %1295 = vmatprep.subr.mxu0 0.0
  %1296 = vmatpush1.xpose.msra.mxu0 0.0
  %1297 = vmatprep.subr.mxu0 0.0
  %1298 = vmatpush1.xpose.msra.mxu0 0.0
  %1299 = vmatprep.subr.mxu0 0.0
  %1300 = vmatpush1.xpose.msra.mxu0 0.0
  %1301 = vmatprep.subr.mxu0 0.0
  %1302 = vmatpush1.xpose.msra.mxu0 0.0
  %1303 = vmatprep.subr.mxu0 0.0
  %1304 = vmatpush1.xpose.msra.mxu0 0.0
  %1305 = vmatprep.subr.mxu0 0.0
  %1306 = vmatpush1.xpose.msra.mxu0 0.0
  %1307 = vmatprep.subr.mxu0 0.0
  %1308 = vmatpush1.xpose.msra.mxu0 0.0
  %1309 = vmatprep.subr.mxu0 0.0
  %1310 = vmatpush1.xpose.msra.mxu0 0.0
  %1311 = vmatprep.subr.mxu0 0.0
  %1312 = vmatpush1.xpose.msra.mxu0 %v1279
  %1313 = vmatprep.subr.mxu0 0.0
  %1314 = vmatpush2.xpose.msra.mxu0 0.0
  %1315 = vmatprep.subr.mxu0 0.0
  %1316 = vmatpush2.xpose.msra.mxu0 0.0
  %1317 = vmatprep.subr.mxu0 0.0
  %1318 = vmatpush2.xpose.msra.mxu0 0.0
  %1319 = vmatprep.subr.mxu0 0.0
  %1320 = vmatpush2.xpose.msra.mxu0 0.0
  %1321 = vmatprep.subr.mxu0 0.0
  %1322 = vmatpush2.xpose.msra.mxu0 0.0
  %1323 = vmatprep.subr.mxu0 0.0
  %1324 = vmatpush2.xpose.msra.mxu0 0.0
  %1325 = vmatprep.subr.mxu0 0.0
  %1326 = vmatpush2.xpose.msra.mxu0 0.0
  %1327 = vmatprep.subr.mxu0 0.0
  %1328 = vmatpush2.xpose.msra.mxu0 0.0
  %1329 = vmatprep.subr.mxu0 0.0
  %1330 = vmatpush2.xpose.msra.mxu0 0.0
  %1331 = vmatprep.subr.mxu0 0.0
  %1332 = vmatpush2.xpose.msra.mxu0 0.0
  %1333 = vmatprep.subr.mxu0 0.0
  %1334 = vmatpush2.xpose.msra.mxu0 0.0
  %1335 = vmatprep.subr.mxu0 0.0
  %1336 = vmatpush2.xpose.msra.mxu0 0.0
  %1337 = vmatprep.subr.mxu0 0.0
  %1338 = vmatpush2.xpose.msra.mxu0 0.0
  %1339 = vmatprep.subr.mxu0 0.0
  %1340 = vmatpush2.xpose.msra.mxu0 0.0
  %1341 = vmatprep.subr.mxu0 0.0
  %1342 = vmatpush2.xpose.msra.mxu0 0.0
  %1343 = vmatprep.subr.mxu0 0.0
  %1344 = vmatpush2.xpose.msra.mxu0 0.0
  %1345 = vmatprep.mubr.f32.mxu0 0.0
  %1346 = vmatmul.mubr.f32.gmra.mxu0 %v1277
  %v1347 = vpop.f32.mrf.mxu0
  %v1348 = vadd.f32 0.0, %v1347
  %v1349 = vpop.f32.mrf.mxu0
  %1350 = vdwg.mxu0
  %v1351 = vmul.f32 %v1270, 0.35355338
  %v1352 = vmul.f32 %v1348, 0.35355338
  %v1353 = vadd.f32 %v1351, %v344
  %v1354 = vadd.f32 %v1352, %v348
  %v1355 = vsel %vm185, %v1353, -inf
  %1356 = vmax.xlane.f32.xlu0 %v1355
  %v1357 = vpop.xlane.xlu0 %1356
  %v1358 = vsel %vm185, %v1354, -inf
  %1359 = vmax.xlane.f32.xlu0 %v1358
  %v1360 = vpop.xlane.xlu0 %1359
  %v1361 = vsub.f32 %v1353, %v1357
  %v1362 = vsub.f32 %v1354, %v1360
  %v1363 = vmul.f32 %v1361, 1.442695
  %v1364 = vpow.pop %v1363
  %v1365 = vmul.f32 %v1362, 1.442695
  %v1366 = vpow.pop %v1365
  %v1367 = vsel %vm185, %v1364, 0.0
  %1368 = vadd.xlane.f32.xlu0 %v1367
  %v1369 = vpop.xlane.xlu0 %1368
  %v1370 = vsel %vm185, %v1366, 0.0
  %1371 = vadd.xlane.f32.xlu0 %v1370
  %v1372 = vpop.xlane.xlu0 %1371
  %v1373 = vrcp.pop %v1369
  %v1374 = vrcp.pop %v1372
  %v1375 = vmul.f32 %v1364, %v1373
  %v1376 = vmul.f32 %v1366, %v1374
  %1377 = vrot.lane.b32.xlu0 %v176, 40
  %v1378 = vpop.permute.xlu0 %1377
  %v1381 = vsel %vm185, %v1375, 0
  %1383 = vmatprep.subr.mxu0 0.0
  %1384 = vmatpush1.msra.mxu0 0.0
  %1385 = vmatprep.subr.mxu0 0.0
  %1386 = vmatpush1.msra.mxu0 0.0
  %1387 = vmatprep.subr.mxu0 0.0
  %1388 = vmatpush1.msra.mxu0 0.0
  %1389 = vmatprep.subr.mxu0 0.0
  %1390 = vmatpush1.msra.mxu0 0.0
  %1391 = vmatprep.subr.mxu0 0.0
  %1392 = vmatpush1.msra.mxu0 0.0
  %1393 = vmatprep.subr.mxu0 0.0
  %1394 = vmatpush1.msra.mxu0 0.0
  %1395 = vmatprep.subr.mxu0 0.0
  %1396 = vmatpush1.msra.mxu0 0.0
  %1397 = vmatprep.subr.mxu0 0.0
  %1398 = vmatpush1.msra.mxu0 0.0
  %1399 = vmatprep.subr.mxu0 0.0
  %1400 = vmatpush1.msra.mxu0 0.0
  %1401 = vmatprep.subr.mxu0 0.0
  %1402 = vmatpush1.msra.mxu0 0.0
  %1403 = vmatprep.subr.mxu0 0.0
  %1404 = vmatpush1.msra.mxu0 0.0
  %1405 = vmatprep.subr.mxu0 0.0
  %1406 = vmatpush1.msra.mxu0 0.0
  %1407 = vmatprep.subr.mxu0 0.0
  %1408 = vmatpush1.msra.mxu0 0.0
  %1409 = vmatprep.subr.mxu0 0.0
  %1410 = vmatpush1.msra.mxu0 0.0
  %1411 = vmatprep.subr.mxu0 0.0
  %1412 = vmatpush1.msra.mxu0 0.0
  %1413 = vmatprep.subr.mxu0 0.0
  %1414 = vmatpush1.msra.mxu0 %v1378
  %1415 = vmatprep.subr.mxu0 0.0
  %1416 = vmatpush2.msra.mxu0 0.0
  %1417 = vmatprep.subr.mxu0 0.0
  %1418 = vmatpush2.msra.mxu0 0.0
  %1419 = vmatprep.subr.mxu0 0.0
  %1420 = vmatpush2.msra.mxu0 0.0
  %1421 = vmatprep.subr.mxu0 0.0
  %1422 = vmatpush2.msra.mxu0 0.0
  %1423 = vmatprep.subr.mxu0 0.0
  %1424 = vmatpush2.msra.mxu0 0.0
  %1425 = vmatprep.subr.mxu0 0.0
  %1426 = vmatpush2.msra.mxu0 0.0
  %1427 = vmatprep.subr.mxu0 0.0
  %1428 = vmatpush2.msra.mxu0 0.0
  %1429 = vmatprep.subr.mxu0 0.0
  %1430 = vmatpush2.msra.mxu0 0.0
  %1431 = vmatprep.subr.mxu0 0.0
  %1432 = vmatpush2.msra.mxu0 0.0
  %1433 = vmatprep.subr.mxu0 0.0
  %1434 = vmatpush2.msra.mxu0 0.0
  %1435 = vmatprep.subr.mxu0 0.0
  %1436 = vmatpush2.msra.mxu0 0.0
  %1437 = vmatprep.subr.mxu0 0.0
  %1438 = vmatpush2.msra.mxu0 0.0
  %1439 = vmatprep.subr.mxu0 0.0
  %1440 = vmatpush2.msra.mxu0 0.0
  %1441 = vmatprep.subr.mxu0 0.0
  %1442 = vmatpush2.msra.mxu0 0.0
  %1443 = vmatprep.subr.mxu0 0.0
  %1444 = vmatpush2.msra.mxu0 0.0
  %1445 = vmatprep.subr.mxu0 0.0
  %1446 = vmatpush2.msra.mxu0 0.0
  %1447 = vmatprep.mubr.f32.mxu0 0.0
  %1448 = vmatmul.mubr.f32.gmra.mxu0 %v1381
  %v1449 = vpop.f32.mrf.mxu0
  %v1450 = vadd.f32 0.0, %v1449
  %v1451 = vpop.f32.mrf.mxu0
  %1452 = vdwg.mxu0
  %1453 = vrot.lane.b32.xlu0 %v179, 40
  %v1454 = vpop.permute.xlu0 %1453
  %v1457 = vsel %vm185, %v1376, 0
  %1459 = vmatprep.subr.mxu0 0.0
  %1460 = vmatpush1.msra.mxu0 0.0
  %1461 = vmatprep.subr.mxu0 0.0
  %1462 = vmatpush1.msra.mxu0 0.0
  %1463 = vmatprep.subr.mxu0 0.0
  %1464 = vmatpush1.msra.mxu0 0.0
  %1465 = vmatprep.subr.mxu0 0.0
  %1466 = vmatpush1.msra.mxu0 0.0
  %1467 = vmatprep.subr.mxu0 0.0
  %1468 = vmatpush1.msra.mxu0 0.0
  %1469 = vmatprep.subr.mxu0 0.0
  %1470 = vmatpush1.msra.mxu0 0.0
  %1471 = vmatprep.subr.mxu0 0.0
  %1472 = vmatpush1.msra.mxu0 0.0
  %1473 = vmatprep.subr.mxu0 0.0
  %1474 = vmatpush1.msra.mxu0 0.0
  %1475 = vmatprep.subr.mxu0 0.0
  %1476 = vmatpush1.msra.mxu0 0.0
  %1477 = vmatprep.subr.mxu0 0.0
  %1478 = vmatpush1.msra.mxu0 0.0
  %1479 = vmatprep.subr.mxu0 0.0
  %1480 = vmatpush1.msra.mxu0 0.0
  %1481 = vmatprep.subr.mxu0 0.0
  %1482 = vmatpush1.msra.mxu0 0.0
  %1483 = vmatprep.subr.mxu0 0.0
  %1484 = vmatpush1.msra.mxu0 0.0
  %1485 = vmatprep.subr.mxu0 0.0
  %1486 = vmatpush1.msra.mxu0 0.0
  %1487 = vmatprep.subr.mxu0 0.0
  %1488 = vmatpush1.msra.mxu0 0.0
  %1489 = vmatprep.subr.mxu0 0.0
  %1490 = vmatpush1.msra.mxu0 %v1454
  %1491 = vmatprep.subr.mxu0 0.0
  %1492 = vmatpush2.msra.mxu0 0.0
  %1493 = vmatprep.subr.mxu0 0.0
  %1494 = vmatpush2.msra.mxu0 0.0
  %1495 = vmatprep.subr.mxu0 0.0
  %1496 = vmatpush2.msra.mxu0 0.0
  %1497 = vmatprep.subr.mxu0 0.0
  %1498 = vmatpush2.msra.mxu0 0.0
  %1499 = vmatprep.subr.mxu0 0.0
  %1500 = vmatpush2.msra.mxu0 0.0
  %1501 = vmatprep.subr.mxu0 0.0
  %1502 = vmatpush2.msra.mxu0 0.0
  %1503 = vmatprep.subr.mxu0 0.0
  %1504 = vmatpush2.msra.mxu0 0.0
  %1505 = vmatprep.subr.mxu0 0.0
  %1506 = vmatpush2.msra.mxu0 0.0
  %1507 = vmatprep.subr.mxu0 0.0
  %1508 = vmatpush2.msra.mxu0 0.0
  %1509 = vmatprep.subr.mxu0 0.0
  %1510 = vmatpush2.msra.mxu0 0.0
  %1511 = vmatprep.subr.mxu0 0.0
  %1512 = vmatpush2.msra.mxu0 0.0
  %1513 = vmatprep.subr.mxu0 0.0
  %1514 = vmatpush2.msra.mxu0 0.0
  %1515 = vmatprep.subr.mxu0 0.0
  %1516 = vmatpush2.msra.mxu0 0.0
  %1517 = vmatprep.subr.mxu0 0.0
  %1518 = vmatpush2.msra.mxu0 0.0
  %1519 = vmatprep.subr.mxu0 0.0
  %1520 = vmatpush2.msra.mxu0 0.0
  %1521 = vmatprep.subr.mxu0 0.0
  %1522 = vmatpush2.msra.mxu0 0.0
  %1523 = vmatprep.mubr.f32.mxu0 0.0
  %1524 = vmatmul.mubr.f32.gmra.mxu0 %v1457
  %v1525 = vpop.f32.mrf.mxu0
  %v1526 = vadd.f32 0.0, %v1525
  %v1527 = vpop.f32.mrf.mxu0
  %1528 = vdwg.mxu0
  %1531 = vrot.lane.b32.xlu0 %v782, 8
  %v1532 = vpop.permute.xlu0 %1531
  %1533 = vrot.lane.b32.xlu0 %v858, 8
  %v1534 = vpop.permute.xlu0 %1533
  %1539 = vrot.lane.b32.xlu0 %v1116, 16
  %v1540 = vpop.permute.xlu0 %1539
  %1541 = vrot.lane.b32.xlu0 %v1192, 16
  %v1542 = vpop.permute.xlu0 %1541
  %1547 = vrot.lane.b32.xlu0 %v1450, 24
  %v1548 = vpop.permute.xlu0 %1547
  %1549 = vrot.lane.b32.xlu0 %v1526, 24
  %v1550 = vpop.permute.xlu0 %1549
  %v1553 = vsel %vm185, %v448, %v1532
  %v1554 = vsel %vm185, %v524, %v1534
  %vm1555 = vcmask 130048
  %v1556 = vsel %vm1555, %v1553, %v1540
  %v1557 = vsel %vm1555, %v1554, %v1542
  %vm1558 = vcmask 195584
  %v1559 = vsel %vm1558, %v1556, %v1548
  %v1560 = vsel %vm1558, %v1557, %v1550
  %v1561 = vpack.c.bf16 %v1560, %v1559
  %v1562 = vlaneseq
  %v1563 = vshrl.u32 %v1562, 7
  %v1564 = vsub.s32 0, %v1563
  %v1565 = vrot.slane %v118, %v1564
  %v1570 = vunpack.c.l.b16 %v93
  %v1571 = vunpack.c.l.b16 %v94
  %v1572 = vunpack.c.l.b16 %v95
  %v1573 = vunpack.c.l.b16 %v96
  %v1574 = vpack.c.b16 %v1571, %v1570
  %v1575 = vpack.c.b16 %v1573, %v1572
  %v1579 = vsel %vm46, %v1561, 0
  %1581 = vmatprep.subr.bf16.mxu0 0
  %1582 = vmatpush1.bf16.msra.mxu0 0
  %1583 = vmatprep.subr.bf16.mxu0 0
  %1584 = vmatpush1.bf16.msra.mxu0 0
  %1585 = vmatprep.subr.bf16.mxu0 0
  %1586 = vmatpush1.bf16.msra.mxu0 0
  %1587 = vmatprep.subr.bf16.mxu0 0
  %1588 = vmatpush1.bf16.msra.mxu0 0
  %1589 = vmatprep.subr.bf16.mxu0 0
  %1590 = vmatpush1.bf16.msra.mxu0 0
  %1591 = vmatprep.subr.bf16.mxu0 0
  %1592 = vmatpush1.bf16.msra.mxu0 0
  %1593 = vmatprep.subr.bf16.mxu0 0
  %1594 = vmatpush1.bf16.msra.mxu0 %v1575
  %1595 = vmatprep.subr.bf16.mxu0 0
  %1596 = vmatpush1.bf16.msra.mxu0 %v1574
  %1597 = vmatprep.subr.bf16.mxu0 0
  %1598 = vmatpush2.bf16.msra.mxu0 0
  %1599 = vmatprep.subr.bf16.mxu0 0
  %1600 = vmatpush2.bf16.msra.mxu0 0
  %1601 = vmatprep.subr.bf16.mxu0 0
  %1602 = vmatpush2.bf16.msra.mxu0 0
  %1603 = vmatprep.subr.bf16.mxu0 0
  %1604 = vmatpush2.bf16.msra.mxu0 0
  %1605 = vmatprep.subr.bf16.mxu0 0
  %1606 = vmatpush2.bf16.msra.mxu0 0
  %1607 = vmatprep.subr.bf16.mxu0 0
  %1608 = vmatpush2.bf16.msra.mxu0 0
  %1609 = vmatprep.subr.bf16.mxu0 0
  %1610 = vmatpush2.bf16.msra.mxu0 0
  %1611 = vmatprep.subr.bf16.mxu0 0
  %1612 = vmatpush2.bf16.msra.mxu0 0
  %1613 = vmatprep.mubr.bf16.mxu0 0
  %1614 = vmatmul.mubr.bf16.gmra.mxu0 %v1579
  %v1615 = vpop.f32.mrf.mxu0
  %v1616 = vadd.f32 %v1565, %v1615
  %v1617 = vpop.f32.mrf.mxu0
  %v1618 = vpop.f32.mrf.mxu0
  %v1619 = vadd.f32 %v1565, %v1618
  %v1620 = vpop.f32.mrf.mxu0
  %1621 = vdwg.mxu0
  %v1622 = vadd.f32 %v84, %v1616
  %v1623 = vadd.f32 %v85, %v1619
  %v1624 = vsel %vm46, %v1622, 0.0
  %1625 = vadd.xlane.f32.xlu0 %v1624
  %v1626 = vpop.xlane.xlu0 %1625
  %v1627 = vsel %vm46, %v1623, 0.0
  %1628 = vadd.xlane.f32.xlu0 %v1627
  %v1629 = vpop.xlane.xlu0 %1628
  %v1630 = vmul.f32 %v1626, %v53
  %v1631 = vmul.f32 %v1629, %v53
  %v1632 = vsub.f32 %v1622, %v1630
  %v1633 = vsub.f32 %v1623, %v1631
  %v1634 = vmul.f32 %v1632, %v1632
  %v1635 = vmul.f32 %v1633, %v1633
  %v1636 = vsel %vm46, %v1634, 0.0
  %1637 = vadd.xlane.f32.xlu0 %v1636
  %v1638 = vpop.xlane.xlu0 %1637
  %v1639 = vsel %vm46, %v1635, 0.0
  %1640 = vadd.xlane.f32.xlu0 %v1639
  %v1641 = vpop.xlane.xlu0 %1640
  %v1642 = vmul.f32 %v1638, %v53
  %v1643 = vmul.f32 %v1641, %v53
  %v1644 = vadd.f32 %v1642, 1e-12
  %v1645 = vadd.f32 %v1643, 1e-12
  %v1646 = vrsqrt.pop %v1644
  %v1647 = vrsqrt.pop %v1645
  %v1648 = vmul.f32 %v1632, %v1646
  %v1649 = vmul.f32 %v1633, %v1647
  %v1650 = vlaneseq
  %v1651 = vshrl.u32 %v1650, 7
  %v1652 = vsub.s32 1, %v1651
  %v1653 = vrot.slane %v118, %v1652
  %v1654 = vmul.f32 %v1648, %v1653
  %v1655 = vmul.f32 %v1649, %v1653
  %v1656 = vlaneseq
  %v1657 = vshrl.u32 %v1656, 7
  %v1658 = vsub.s32 2, %v1657
  %v1659 = vrot.slane %v118, %v1658
  %v1660 = vadd.f32 %v1654, %v1659
  %v1661 = vadd.f32 %v1655, %v1659
  %v1662 = vpack.c.bf16 %v1661, %v1660
  %v1664 = vlaneseq
  %v1665 = vshrl.u32 %v1664, 7
  %v1666 = vsub.s32 0, %v1665
  %v1667 = vrot.slane %v101, %v1666
  %v1673 = vunpack.c.l.b16 %v97
  %v1674 = vunpack.c.l.b16 %v98
  %v1675 = vunpack.c.l.b16 %v99
  %v1676 = vunpack.c.l.b16 %v100
  %v1677 = vpack.c.b16 %v1674, %v1673
  %v1678 = vpack.c.b16 %v1676, %v1675
  %v1682 = vsel %vm46, %v1662, 0
  %1684 = vmatprep.subr.bf16.mxu0 0
  %1685 = vmatpush1.bf16.msra.mxu0 0
  %1686 = vmatprep.subr.bf16.mxu0 0
  %1687 = vmatpush1.bf16.msra.mxu0 0
  %1688 = vmatprep.subr.bf16.mxu0 0
  %1689 = vmatpush1.bf16.msra.mxu0 0
  %1690 = vmatprep.subr.bf16.mxu0 0
  %1691 = vmatpush1.bf16.msra.mxu0 0
  %1692 = vmatprep.subr.bf16.mxu0 0
  %1693 = vmatpush1.bf16.msra.mxu0 0
  %1694 = vmatprep.subr.bf16.mxu0 0
  %1695 = vmatpush1.bf16.msra.mxu0 0
  %1696 = vmatprep.subr.bf16.mxu0 0
  %1697 = vmatpush1.bf16.msra.mxu0 %v1678
  %1698 = vmatprep.subr.bf16.mxu0 0
  %1699 = vmatpush1.bf16.msra.mxu0 %v1677
  %1700 = vmatprep.subr.bf16.mxu0 0
  %1701 = vmatpush2.bf16.msra.mxu0 0
  %1702 = vmatprep.subr.bf16.mxu0 0
  %1703 = vmatpush2.bf16.msra.mxu0 0
  %1704 = vmatprep.subr.bf16.mxu0 0
  %1705 = vmatpush2.bf16.msra.mxu0 0
  %1706 = vmatprep.subr.bf16.mxu0 0
  %1707 = vmatpush2.bf16.msra.mxu0 0
  %1708 = vmatprep.subr.bf16.mxu0 0
  %1709 = vmatpush2.bf16.msra.mxu0 0
  %1710 = vmatprep.subr.bf16.mxu0 0
  %1711 = vmatpush2.bf16.msra.mxu0 0
  %1712 = vmatprep.subr.bf16.mxu0 0
  %1713 = vmatpush2.bf16.msra.mxu0 0
  %1714 = vmatprep.subr.bf16.mxu0 0
  %1715 = vmatpush2.bf16.msra.mxu0 0
  %1716 = vmatprep.mubr.bf16.mxu0 0
  %1717 = vmatmul.mubr.bf16.gmra.mxu0 %v1682
  %v1718 = vpop.f32.mrf.mxu0
  %v1719 = vadd.f32 %v1667, %v1718
  %v1720 = vpop.f32.mrf.mxu0
  %v1721 = vpop.f32.mrf.mxu0
  %v1722 = vadd.f32 %v1667, %v1721
  %v1723 = vpop.f32.mrf.mxu0
  %1724 = vdwg.mxu0
  %v1725 = vmul.f32 %v1719, %v1719
  %v1726 = vmul.f32 %v1722, %v1722
  %v1727 = vmul.f32 %v1719, %v1725
  %v1728 = vmul.f32 %v1722, %v1726
  %v1729 = vmul.f32 %v1727, 0.044715
  %v1730 = vmul.f32 %v1728, 0.044715
  %v1731 = vadd.f32 %v1719, %v1729
  %v1732 = vadd.f32 %v1722, %v1730
  %v1733 = vmul.f32 %v1731, 0.7978846
  %v1734 = vmul.f32 %v1732, 0.7978846
  %v1735 = vtanh.pop %v1733
  %v1736 = vtanh.pop %v1734
  %v1737 = vadd.f32 %v1735, 1.0
  %v1738 = vadd.f32 %v1736, 1.0
  %v1739 = vmul.f32 %v1737, 0.5
  %v1740 = vmul.f32 %v1738, 0.5
  %v1741 = vmul.f32 %v1719, %v1739
  %v1742 = vmul.f32 %v1722, %v1740
  %v1743 = vpack.c.bf16 %v1742, %v1741
  %v1744 = vlaneseq
  %v1745 = vshrl.u32 %v1744, 7
  %v1746 = vsub.s32 3, %v1745
  %v1747 = vrot.slane %v118, %v1746
  %v1764 = vunpack.c.l.b16 %v102
  %v1765 = vunpack.c.l.b16 %v103
  %v1766 = vunpack.c.l.b16 %v104
  %v1767 = vunpack.c.l.b16 %v105
  %v1768 = vunpack.c.l.b16 %v106
  %v1769 = vunpack.c.l.b16 %v107
  %v1770 = vunpack.c.l.b16 %v108
  %v1771 = vunpack.c.l.b16 %v109
  %v1772 = vunpack.c.l.b16 %v110
  %v1773 = vunpack.c.l.b16 %v111
  %v1774 = vunpack.c.l.b16 %v112
  %v1775 = vunpack.c.l.b16 %v113
  %v1776 = vunpack.c.l.b16 %v114
  %v1777 = vunpack.c.l.b16 %v115
  %v1778 = vunpack.c.l.b16 %v116
  %v1779 = vunpack.c.l.b16 %v117
  %v1780 = vpack.c.b16 %v1765, %v1764
  %v1781 = vpack.c.b16 %v1767, %v1766
  %v1782 = vpack.c.b16 %v1769, %v1768
  %v1783 = vpack.c.b16 %v1771, %v1770
  %v1784 = vpack.c.b16 %v1773, %v1772
  %v1785 = vpack.c.b16 %v1775, %v1774
  %v1786 = vpack.c.b16 %v1777, %v1776
  %v1787 = vpack.c.b16 %v1779, %v1778
  %1796 = vmatprep.subr.bf16.mxu0 0
  %1797 = vmatpush1.bf16.msra.mxu0 %v1787
  %1798 = vmatprep.subr.bf16.mxu0 0
  %1799 = vmatpush1.bf16.msra.mxu0 %v1786
  %1800 = vmatprep.subr.bf16.mxu0 0
  %1801 = vmatpush1.bf16.msra.mxu0 %v1785
  %1802 = vmatprep.subr.bf16.mxu0 0
  %1803 = vmatpush1.bf16.msra.mxu0 %v1784
  %1804 = vmatprep.subr.bf16.mxu0 0
  %1805 = vmatpush1.bf16.msra.mxu0 %v1783
  %1806 = vmatprep.subr.bf16.mxu0 0
  %1807 = vmatpush1.bf16.msra.mxu0 %v1782
  %1808 = vmatprep.subr.bf16.mxu0 0
  %1809 = vmatpush1.bf16.msra.mxu0 %v1781
  %1810 = vmatprep.subr.bf16.mxu0 0
  %1811 = vmatpush1.bf16.msra.mxu0 %v1780
  %1812 = vmatprep.subr.bf16.mxu0 0
  %1813 = vmatpush2.bf16.msra.mxu0 0
  %1814 = vmatprep.subr.bf16.mxu0 0
  %1815 = vmatpush2.bf16.msra.mxu0 0
  %1816 = vmatprep.subr.bf16.mxu0 0
  %1817 = vmatpush2.bf16.msra.mxu0 0
  %1818 = vmatprep.subr.bf16.mxu0 0
  %1819 = vmatpush2.bf16.msra.mxu0 0
  %1820 = vmatprep.subr.bf16.mxu0 0
  %1821 = vmatpush2.bf16.msra.mxu0 0
  %1822 = vmatprep.subr.bf16.mxu0 0
  %1823 = vmatpush2.bf16.msra.mxu0 0
  %1824 = vmatprep.subr.bf16.mxu0 0
  %1825 = vmatpush2.bf16.msra.mxu0 0
  %1826 = vmatprep.subr.bf16.mxu0 0
  %1827 = vmatpush2.bf16.msra.mxu0 0
  %1828 = vmatprep.mubr.bf16.mxu0 0
  %1829 = vmatmul.mubr.bf16.gmra.mxu0 %v1743
  %v1830 = vpop.f32.mrf.mxu0
  %v1831 = vadd.f32 %v1747, %v1830
  %v1832 = vpop.f32.mrf.mxu0
  %v1833 = vpop.f32.mrf.mxu0
  %v1834 = vadd.f32 %v1747, %v1833
  %v1835 = vpop.f32.mrf.mxu0
  %1836 = vdwg.mxu0
  %v1837 = vadd.f32 %v1660, %v1831
  %v1838 = vadd.f32 %v1661, %v1834
  %v1839 = vsel %vm46, %v1837, 0.0
  %1840 = vadd.xlane.f32.xlu0 %v1839
  %v1841 = vpop.xlane.xlu0 %1840
  %v1842 = vsel %vm46, %v1838, 0.0
  %1843 = vadd.xlane.f32.xlu0 %v1842
  %v1844 = vpop.xlane.xlu0 %1843
  %v1845 = vmul.f32 %v1841, %v53
  %v1846 = vmul.f32 %v1844, %v53
  %v1847 = vsub.f32 %v1837, %v1845
  %v1848 = vsub.f32 %v1838, %v1846
  %v1849 = vmul.f32 %v1847, %v1847
  %v1850 = vmul.f32 %v1848, %v1848
  %v1851 = vsel %vm46, %v1849, 0.0
  %1852 = vadd.xlane.f32.xlu0 %v1851
  %v1853 = vpop.xlane.xlu0 %1852
  %v1854 = vsel %vm46, %v1850, 0.0
  %1855 = vadd.xlane.f32.xlu0 %v1854
  %v1856 = vpop.xlane.xlu0 %1855
  %v1857 = vmul.f32 %v1853, %v53
  %v1858 = vmul.f32 %v1856, %v53
  %v1859 = vadd.f32 %v1857, 1e-12
  %v1860 = vadd.f32 %v1858, 1e-12
  %v1861 = vrsqrt.pop %v1859
  %v1862 = vrsqrt.pop %v1860
  %v1863 = vmul.f32 %v1847, %v1861
  %v1864 = vmul.f32 %v1848, %v1862
  %v1865 = vlaneseq
  %v1866 = vshrl.u32 %v1865, 7
  %v1867 = vsub.s32 4, %v1866
  %v1868 = vrot.slane %v118, %v1867
  %v1869 = vmul.f32 %v1863, %v1868
  %v1870 = vmul.f32 %v1864, %v1868
  %v1871 = vlaneseq
  %v1872 = vshrl.u32 %v1871, 7
  %v1873 = vsub.s32 5, %v1872
  %v1874 = vrot.slane %v118, %v1873
  %v1875 = vadd.f32 %v1869, %v1874
  %v1876 = vadd.f32 %v1870, %v1874
  %s1877 = scalar_lea.vmem %s3, 16
  %v1878 = vld [vmem:[%s1877] sm:$0xf]
  %v1879 = vld [vmem:[%s1877 + $0x4] sm:$0xf]
  %v1880 = vld [vmem:[%s1877 + $0x8] sm:$0xf]
  %v1881 = vld [vmem:[%s1877 + $0xc] sm:$0xf]
  %s1882 = scalar_lea.vmem %s4, 1
  %v1883 = vld [vmem:[%s1882] sm:$0x1]
  %s1884 = scalar_lea.vmem %s5, 16
  %v1885 = vld [vmem:[%s1884] sm:$0xf]
  %v1886 = vld [vmem:[%s1884 + $0x4] sm:$0xf]
  %v1887 = vld [vmem:[%s1884 + $0x8] sm:$0xf]
  %v1888 = vld [vmem:[%s1884 + $0xc] sm:$0xf]
  %s1889 = scalar_lea.vmem %s6, 16
  %v1890 = vld [vmem:[%s1889] sm:$0xf]
  %v1891 = vld [vmem:[%s1889 + $0x4] sm:$0xf]
  %v1892 = vld [vmem:[%s1889 + $0x8] sm:$0xf]
  %v1893 = vld [vmem:[%s1889 + $0xc] sm:$0xf]
  %s1894 = scalar_lea.vmem %s7, 1
  %v1895 = vld [vmem:[%s1894] sm:$0x1]
  %s1896 = scalar_lea.vmem %s8, 64
  %v1897 = vld [vmem:[%s1896] sm:$0xf]
  %v1898 = vld [vmem:[%s1896 + $0x4] sm:$0xf]
  %v1899 = vld [vmem:[%s1896 + $0x8] sm:$0xf]
  %v1900 = vld [vmem:[%s1896 + $0xc] sm:$0xf]
  %v1901 = vld [vmem:[%s1896 + $0x10] sm:$0xf]
  %v1902 = vld [vmem:[%s1896 + $0x14] sm:$0xf]
  %v1903 = vld [vmem:[%s1896 + $0x18] sm:$0xf]
  %v1904 = vld [vmem:[%s1896 + $0x1c] sm:$0xf]
  %v1905 = vld [vmem:[%s1896 + $0x20] sm:$0xf]
  %v1906 = vld [vmem:[%s1896 + $0x24] sm:$0xf]
  %v1907 = vld [vmem:[%s1896 + $0x28] sm:$0xf]
  %v1908 = vld [vmem:[%s1896 + $0x2c] sm:$0xf]
  %v1909 = vld [vmem:[%s1896 + $0x30] sm:$0xf]
  %v1910 = vld [vmem:[%s1896 + $0x34] sm:$0xf]
  %v1911 = vld [vmem:[%s1896 + $0x38] sm:$0xf]
  %v1912 = vld [vmem:[%s1896 + $0x3c] sm:$0xf]
  %s1913 = scalar_lea.vmem %s9, 8
  %v1914 = vld [vmem:[%s1913] sm:$0x3f]
  %v1915 = vpack.c.bf16 %v1876, %v1875
  %v1917 = vlaneseq
  %v1918 = vshrl.u32 %v1917, 7
  %v1919 = vsub.s32 0, %v1918
  %v1920 = vrot.slane %v1883, %v1919
  %v1926 = vunpack.c.l.b16 %v1878
  %v1927 = vunpack.c.l.b16 %v1879
  %v1928 = vunpack.c.l.b16 %v1880
  %v1929 = vunpack.c.l.b16 %v1881
  %v1930 = vpack.c.b16 %v1927, %v1926
  %v1931 = vpack.c.b16 %v1929, %v1928
  %v1935 = vsel %vm46, %v1915, 0
  %1937 = vmatprep.subr.bf16.mxu0 0
  %1938 = vmatpush1.bf16.msra.mxu0 0
  %1939 = vmatprep.subr.bf16.mxu0 0
  %1940 = vmatpush1.bf16.msra.mxu0 0
  %1941 = vmatprep.subr.bf16.mxu0 0
  %1942 = vmatpush1.bf16.msra.mxu0 0
  %1943 = vmatprep.subr.bf16.mxu0 0
  %1944 = vmatpush1.bf16.msra.mxu0 0
  %1945 = vmatprep.subr.bf16.mxu0 0
  %1946 = vmatpush1.bf16.msra.mxu0 0
  %1947 = vmatprep.subr.bf16.mxu0 0
  %1948 = vmatpush1.bf16.msra.mxu0 0
  %1949 = vmatprep.subr.bf16.mxu0 0
  %1950 = vmatpush1.bf16.msra.mxu0 %v1931
  %1951 = vmatprep.subr.bf16.mxu0 0
  %1952 = vmatpush1.bf16.msra.mxu0 %v1930
  %1953 = vmatprep.subr.bf16.mxu0 0
  %1954 = vmatpush2.bf16.msra.mxu0 0
  %1955 = vmatprep.subr.bf16.mxu0 0
  %1956 = vmatpush2.bf16.msra.mxu0 0
  %1957 = vmatprep.subr.bf16.mxu0 0
  %1958 = vmatpush2.bf16.msra.mxu0 0
  %1959 = vmatprep.subr.bf16.mxu0 0
  %1960 = vmatpush2.bf16.msra.mxu0 0
  %1961 = vmatprep.subr.bf16.mxu0 0
  %1962 = vmatpush2.bf16.msra.mxu0 0
  %1963 = vmatprep.subr.bf16.mxu0 0
  %1964 = vmatpush2.bf16.msra.mxu0 0
  %1965 = vmatprep.subr.bf16.mxu0 0
  %1966 = vmatpush2.bf16.msra.mxu0 0
  %1967 = vmatprep.subr.bf16.mxu0 0
  %1968 = vmatpush2.bf16.msra.mxu0 0
  %1969 = vmatprep.mubr.bf16.mxu0 0
  %1970 = vmatmul.mubr.bf16.gmra.mxu0 %v1935
  %v1971 = vpop.f32.mrf.mxu0
  %v1972 = vadd.f32 %v1920, %v1971
  %v1973 = vpop.f32.mrf.mxu0
  %v1974 = vpop.f32.mrf.mxu0
  %v1975 = vadd.f32 %v1920, %v1974
  %v1976 = vpop.f32.mrf.mxu0
  %1977 = vdwg.mxu0
  %1979 = vrot.lane.b32.xlu0 %v1972, 96
  %v1980 = vpop.permute.xlu0 %1979
  %v1981 = vsel %vm185, %v1972, 0
  %v1983 = vsel %vm185, %v1980, 0
  %1985 = vmatprep.subr.mxu0 0.0
  %1986 = vmatpush1.xpose.msra.mxu0 0.0
  %1987 = vmatprep.subr.mxu0 0.0
  %1988 = vmatpush1.xpose.msra.mxu0 0.0
  %1989 = vmatprep.subr.mxu0 0.0
  %1990 = vmatpush1.xpose.msra.mxu0 0.0
  %1991 = vmatprep.subr.mxu0 0.0
  %1992 = vmatpush1.xpose.msra.mxu0 0.0
  %1993 = vmatprep.subr.mxu0 0.0
  %1994 = vmatpush1.xpose.msra.mxu0 0.0
  %1995 = vmatprep.subr.mxu0 0.0
  %1996 = vmatpush1.xpose.msra.mxu0 0.0
  %1997 = vmatprep.subr.mxu0 0.0
  %1998 = vmatpush1.xpose.msra.mxu0 0.0
  %1999 = vmatprep.subr.mxu0 0.0
  %2000 = vmatpush1.xpose.msra.mxu0 0.0
  %2001 = vmatprep.subr.mxu0 0.0
  %2002 = vmatpush1.xpose.msra.mxu0 0.0
  %2003 = vmatprep.subr.mxu0 0.0
  %2004 = vmatpush1.xpose.msra.mxu0 0.0
  %2005 = vmatprep.subr.mxu0 0.0
  %2006 = vmatpush1.xpose.msra.mxu0 0.0
  %2007 = vmatprep.subr.mxu0 0.0
  %2008 = vmatpush1.xpose.msra.mxu0 0.0
  %2009 = vmatprep.subr.mxu0 0.0
  %2010 = vmatpush1.xpose.msra.mxu0 0.0
  %2011 = vmatprep.subr.mxu0 0.0
  %2012 = vmatpush1.xpose.msra.mxu0 0.0
  %2013 = vmatprep.subr.mxu0 0.0
  %2014 = vmatpush1.xpose.msra.mxu0 0.0
  %2015 = vmatprep.subr.mxu0 0.0
  %2016 = vmatpush1.xpose.msra.mxu0 %v1983
  %2017 = vmatprep.subr.mxu0 0.0
  %2018 = vmatpush2.xpose.msra.mxu0 0.0
  %2019 = vmatprep.subr.mxu0 0.0
  %2020 = vmatpush2.xpose.msra.mxu0 0.0
  %2021 = vmatprep.subr.mxu0 0.0
  %2022 = vmatpush2.xpose.msra.mxu0 0.0
  %2023 = vmatprep.subr.mxu0 0.0
  %2024 = vmatpush2.xpose.msra.mxu0 0.0
  %2025 = vmatprep.subr.mxu0 0.0
  %2026 = vmatpush2.xpose.msra.mxu0 0.0
  %2027 = vmatprep.subr.mxu0 0.0
  %2028 = vmatpush2.xpose.msra.mxu0 0.0
  %2029 = vmatprep.subr.mxu0 0.0
  %2030 = vmatpush2.xpose.msra.mxu0 0.0
  %2031 = vmatprep.subr.mxu0 0.0
  %2032 = vmatpush2.xpose.msra.mxu0 0.0
  %2033 = vmatprep.subr.mxu0 0.0
  %2034 = vmatpush2.xpose.msra.mxu0 0.0
  %2035 = vmatprep.subr.mxu0 0.0
  %2036 = vmatpush2.xpose.msra.mxu0 0.0
  %2037 = vmatprep.subr.mxu0 0.0
  %2038 = vmatpush2.xpose.msra.mxu0 0.0
  %2039 = vmatprep.subr.mxu0 0.0
  %2040 = vmatpush2.xpose.msra.mxu0 0.0
  %2041 = vmatprep.subr.mxu0 0.0
  %2042 = vmatpush2.xpose.msra.mxu0 0.0
  %2043 = vmatprep.subr.mxu0 0.0
  %2044 = vmatpush2.xpose.msra.mxu0 0.0
  %2045 = vmatprep.subr.mxu0 0.0
  %2046 = vmatpush2.xpose.msra.mxu0 0.0
  %2047 = vmatprep.subr.mxu0 0.0
  %2048 = vmatpush2.xpose.msra.mxu0 0.0
  %2049 = vmatprep.mubr.f32.mxu0 0.0
  %2050 = vmatmul.mubr.f32.gmra.mxu0 %v1981
  %v2051 = vpop.f32.mrf.mxu0
  %v2052 = vadd.f32 0.0, %v2051
  %v2053 = vpop.f32.mrf.mxu0
  %2054 = vdwg.mxu0
  %2056 = vrot.lane.b32.xlu0 %v1975, 96
  %v2057 = vpop.permute.xlu0 %2056
  %v2058 = vsel %vm185, %v1975, 0
  %v2060 = vsel %vm185, %v2057, 0
  %2062 = vmatprep.subr.mxu0 0.0
  %2063 = vmatpush1.xpose.msra.mxu0 0.0
  %2064 = vmatprep.subr.mxu0 0.0
  %2065 = vmatpush1.xpose.msra.mxu0 0.0
  %2066 = vmatprep.subr.mxu0 0.0
  %2067 = vmatpush1.xpose.msra.mxu0 0.0
  %2068 = vmatprep.subr.mxu0 0.0
  %2069 = vmatpush1.xpose.msra.mxu0 0.0
  %2070 = vmatprep.subr.mxu0 0.0
  %2071 = vmatpush1.xpose.msra.mxu0 0.0
  %2072 = vmatprep.subr.mxu0 0.0
  %2073 = vmatpush1.xpose.msra.mxu0 0.0
  %2074 = vmatprep.subr.mxu0 0.0
  %2075 = vmatpush1.xpose.msra.mxu0 0.0
  %2076 = vmatprep.subr.mxu0 0.0
  %2077 = vmatpush1.xpose.msra.mxu0 0.0
  %2078 = vmatprep.subr.mxu0 0.0
  %2079 = vmatpush1.xpose.msra.mxu0 0.0
  %2080 = vmatprep.subr.mxu0 0.0
  %2081 = vmatpush1.xpose.msra.mxu0 0.0
  %2082 = vmatprep.subr.mxu0 0.0
  %2083 = vmatpush1.xpose.msra.mxu0 0.0
  %2084 = vmatprep.subr.mxu0 0.0
  %2085 = vmatpush1.xpose.msra.mxu0 0.0
  %2086 = vmatprep.subr.mxu0 0.0
  %2087 = vmatpush1.xpose.msra.mxu0 0.0
  %2088 = vmatprep.subr.mxu0 0.0
  %2089 = vmatpush1.xpose.msra.mxu0 0.0
  %2090 = vmatprep.subr.mxu0 0.0
  %2091 = vmatpush1.xpose.msra.mxu0 0.0
  %2092 = vmatprep.subr.mxu0 0.0
  %2093 = vmatpush1.xpose.msra.mxu0 %v2060
  %2094 = vmatprep.subr.mxu0 0.0
  %2095 = vmatpush2.xpose.msra.mxu0 0.0
  %2096 = vmatprep.subr.mxu0 0.0
  %2097 = vmatpush2.xpose.msra.mxu0 0.0
  %2098 = vmatprep.subr.mxu0 0.0
  %2099 = vmatpush2.xpose.msra.mxu0 0.0
  %2100 = vmatprep.subr.mxu0 0.0
  %2101 = vmatpush2.xpose.msra.mxu0 0.0
  %2102 = vmatprep.subr.mxu0 0.0
  %2103 = vmatpush2.xpose.msra.mxu0 0.0
  %2104 = vmatprep.subr.mxu0 0.0
  %2105 = vmatpush2.xpose.msra.mxu0 0.0
  %2106 = vmatprep.subr.mxu0 0.0
  %2107 = vmatpush2.xpose.msra.mxu0 0.0
  %2108 = vmatprep.subr.mxu0 0.0
  %2109 = vmatpush2.xpose.msra.mxu0 0.0
  %2110 = vmatprep.subr.mxu0 0.0
  %2111 = vmatpush2.xpose.msra.mxu0 0.0
  %2112 = vmatprep.subr.mxu0 0.0
  %2113 = vmatpush2.xpose.msra.mxu0 0.0
  %2114 = vmatprep.subr.mxu0 0.0
  %2115 = vmatpush2.xpose.msra.mxu0 0.0
  %2116 = vmatprep.subr.mxu0 0.0
  %2117 = vmatpush2.xpose.msra.mxu0 0.0
  %2118 = vmatprep.subr.mxu0 0.0
  %2119 = vmatpush2.xpose.msra.mxu0 0.0
  %2120 = vmatprep.subr.mxu0 0.0
  %2121 = vmatpush2.xpose.msra.mxu0 0.0
  %2122 = vmatprep.subr.mxu0 0.0
  %2123 = vmatpush2.xpose.msra.mxu0 0.0
  %2124 = vmatprep.subr.mxu0 0.0
  %2125 = vmatpush2.xpose.msra.mxu0 0.0
  %2126 = vmatprep.mubr.f32.mxu0 0.0
  %2127 = vmatmul.mubr.f32.gmra.mxu0 %v2058
  %v2128 = vpop.f32.mrf.mxu0
  %v2129 = vadd.f32 0.0, %v2128
  %v2130 = vpop.f32.mrf.mxu0
  %2131 = vdwg.mxu0
  %v2132 = vmul.f32 %v2052, 0.35355338
  %v2133 = vmul.f32 %v2129, 0.35355338
  %v2134 = vadd.f32 %v2132, %v344
  %v2135 = vadd.f32 %v2133, %v348
  %v2136 = vsel %vm185, %v2134, -inf
  %2137 = vmax.xlane.f32.xlu0 %v2136
  %v2138 = vpop.xlane.xlu0 %2137
  %v2139 = vsel %vm185, %v2135, -inf
  %2140 = vmax.xlane.f32.xlu0 %v2139
  %v2141 = vpop.xlane.xlu0 %2140
  %v2142 = vsub.f32 %v2134, %v2138
  %v2143 = vsub.f32 %v2135, %v2141
  %v2144 = vmul.f32 %v2142, 1.442695
  %v2145 = vpow.pop %v2144
  %v2146 = vmul.f32 %v2143, 1.442695
  %v2147 = vpow.pop %v2146
  %v2148 = vsel %vm185, %v2145, 0.0
  %2149 = vadd.xlane.f32.xlu0 %v2148
  %v2150 = vpop.xlane.xlu0 %2149
  %v2151 = vsel %vm185, %v2147, 0.0
  %2152 = vadd.xlane.f32.xlu0 %v2151
  %v2153 = vpop.xlane.xlu0 %2152
  %v2154 = vrcp.pop %v2150
  %v2155 = vrcp.pop %v2153
  %v2156 = vmul.f32 %v2145, %v2154
  %v2157 = vmul.f32 %v2147, %v2155
  %2158 = vrot.lane.b32.xlu0 %v1972, 64
  %v2159 = vpop.permute.xlu0 %2158
  %v2162 = vsel %vm185, %v2156, 0
  %2164 = vmatprep.subr.mxu0 0.0
  %2165 = vmatpush1.msra.mxu0 0.0
  %2166 = vmatprep.subr.mxu0 0.0
  %2167 = vmatpush1.msra.mxu0 0.0
  %2168 = vmatprep.subr.mxu0 0.0
  %2169 = vmatpush1.msra.mxu0 0.0
  %2170 = vmatprep.subr.mxu0 0.0
  %2171 = vmatpush1.msra.mxu0 0.0
  %2172 = vmatprep.subr.mxu0 0.0
  %2173 = vmatpush1.msra.mxu0 0.0
  %2174 = vmatprep.subr.mxu0 0.0
  %2175 = vmatpush1.msra.mxu0 0.0
  %2176 = vmatprep.subr.mxu0 0.0
  %2177 = vmatpush1.msra.mxu0 0.0
  %2178 = vmatprep.subr.mxu0 0.0
  %2179 = vmatpush1.msra.mxu0 0.0
  %2180 = vmatprep.subr.mxu0 0.0
  %2181 = vmatpush1.msra.mxu0 0.0
  %2182 = vmatprep.subr.mxu0 0.0
  %2183 = vmatpush1.msra.mxu0 0.0
  %2184 = vmatprep.subr.mxu0 0.0
  %2185 = vmatpush1.msra.mxu0 0.0
  %2186 = vmatprep.subr.mxu0 0.0
  %2187 = vmatpush1.msra.mxu0 0.0
  %2188 = vmatprep.subr.mxu0 0.0
  %2189 = vmatpush1.msra.mxu0 0.0
  %2190 = vmatprep.subr.mxu0 0.0
  %2191 = vmatpush1.msra.mxu0 0.0
  %2192 = vmatprep.subr.mxu0 0.0
  %2193 = vmatpush1.msra.mxu0 0.0
  %2194 = vmatprep.subr.mxu0 0.0
  %2195 = vmatpush1.msra.mxu0 %v2159
  %2196 = vmatprep.subr.mxu0 0.0
  %2197 = vmatpush2.msra.mxu0 0.0
  %2198 = vmatprep.subr.mxu0 0.0
  %2199 = vmatpush2.msra.mxu0 0.0
  %2200 = vmatprep.subr.mxu0 0.0
  %2201 = vmatpush2.msra.mxu0 0.0
  %2202 = vmatprep.subr.mxu0 0.0
  %2203 = vmatpush2.msra.mxu0 0.0
  %2204 = vmatprep.subr.mxu0 0.0
  %2205 = vmatpush2.msra.mxu0 0.0
  %2206 = vmatprep.subr.mxu0 0.0
  %2207 = vmatpush2.msra.mxu0 0.0
  %2208 = vmatprep.subr.mxu0 0.0
  %2209 = vmatpush2.msra.mxu0 0.0
  %2210 = vmatprep.subr.mxu0 0.0
  %2211 = vmatpush2.msra.mxu0 0.0
  %2212 = vmatprep.subr.mxu0 0.0
  %2213 = vmatpush2.msra.mxu0 0.0
  %2214 = vmatprep.subr.mxu0 0.0
  %2215 = vmatpush2.msra.mxu0 0.0
  %2216 = vmatprep.subr.mxu0 0.0
  %2217 = vmatpush2.msra.mxu0 0.0
  %2218 = vmatprep.subr.mxu0 0.0
  %2219 = vmatpush2.msra.mxu0 0.0
  %2220 = vmatprep.subr.mxu0 0.0
  %2221 = vmatpush2.msra.mxu0 0.0
  %2222 = vmatprep.subr.mxu0 0.0
  %2223 = vmatpush2.msra.mxu0 0.0
  %2224 = vmatprep.subr.mxu0 0.0
  %2225 = vmatpush2.msra.mxu0 0.0
  %2226 = vmatprep.subr.mxu0 0.0
  %2227 = vmatpush2.msra.mxu0 0.0
  %2228 = vmatprep.mubr.f32.mxu0 0.0
  %2229 = vmatmul.mubr.f32.gmra.mxu0 %v2162
  %v2230 = vpop.f32.mrf.mxu0
  %v2231 = vadd.f32 0.0, %v2230
  %v2232 = vpop.f32.mrf.mxu0
  %2233 = vdwg.mxu0
  %2234 = vrot.lane.b32.xlu0 %v1975, 64
  %v2235 = vpop.permute.xlu0 %2234
  %v2238 = vsel %vm185, %v2157, 0
  %2240 = vmatprep.subr.mxu0 0.0
  %2241 = vmatpush1.msra.mxu0 0.0
  %2242 = vmatprep.subr.mxu0 0.0
  %2243 = vmatpush1.msra.mxu0 0.0
  %2244 = vmatprep.subr.mxu0 0.0
  %2245 = vmatpush1.msra.mxu0 0.0
  %2246 = vmatprep.subr.mxu0 0.0
  %2247 = vmatpush1.msra.mxu0 0.0
  %2248 = vmatprep.subr.mxu0 0.0
  %2249 = vmatpush1.msra.mxu0 0.0
  %2250 = vmatprep.subr.mxu0 0.0
  %2251 = vmatpush1.msra.mxu0 0.0
  %2252 = vmatprep.subr.mxu0 0.0
  %2253 = vmatpush1.msra.mxu0 0.0
  %2254 = vmatprep.subr.mxu0 0.0
  %2255 = vmatpush1.msra.mxu0 0.0
  %2256 = vmatprep.subr.mxu0 0.0
  %2257 = vmatpush1.msra.mxu0 0.0
  %2258 = vmatprep.subr.mxu0 0.0
  %2259 = vmatpush1.msra.mxu0 0.0
  %2260 = vmatprep.subr.mxu0 0.0
  %2261 = vmatpush1.msra.mxu0 0.0
  %2262 = vmatprep.subr.mxu0 0.0
  %2263 = vmatpush1.msra.mxu0 0.0
  %2264 = vmatprep.subr.mxu0 0.0
  %2265 = vmatpush1.msra.mxu0 0.0
  %2266 = vmatprep.subr.mxu0 0.0
  %2267 = vmatpush1.msra.mxu0 0.0
  %2268 = vmatprep.subr.mxu0 0.0
  %2269 = vmatpush1.msra.mxu0 0.0
  %2270 = vmatprep.subr.mxu0 0.0
  %2271 = vmatpush1.msra.mxu0 %v2235
  %2272 = vmatprep.subr.mxu0 0.0
  %2273 = vmatpush2.msra.mxu0 0.0
  %2274 = vmatprep.subr.mxu0 0.0
  %2275 = vmatpush2.msra.mxu0 0.0
  %2276 = vmatprep.subr.mxu0 0.0
  %2277 = vmatpush2.msra.mxu0 0.0
  %2278 = vmatprep.subr.mxu0 0.0
  %2279 = vmatpush2.msra.mxu0 0.0
  %2280 = vmatprep.subr.mxu0 0.0
  %2281 = vmatpush2.msra.mxu0 0.0
  %2282 = vmatprep.subr.mxu0 0.0
  %2283 = vmatpush2.msra.mxu0 0.0
  %2284 = vmatprep.subr.mxu0 0.0
  %2285 = vmatpush2.msra.mxu0 0.0
  %2286 = vmatprep.subr.mxu0 0.0
  %2287 = vmatpush2.msra.mxu0 0.0
  %2288 = vmatprep.subr.mxu0 0.0
  %2289 = vmatpush2.msra.mxu0 0.0
  %2290 = vmatprep.subr.mxu0 0.0
  %2291 = vmatpush2.msra.mxu0 0.0
  %2292 = vmatprep.subr.mxu0 0.0
  %2293 = vmatpush2.msra.mxu0 0.0
  %2294 = vmatprep.subr.mxu0 0.0
  %2295 = vmatpush2.msra.mxu0 0.0
  %2296 = vmatprep.subr.mxu0 0.0
  %2297 = vmatpush2.msra.mxu0 0.0
  %2298 = vmatprep.subr.mxu0 0.0
  %2299 = vmatpush2.msra.mxu0 0.0
  %2300 = vmatprep.subr.mxu0 0.0
  %2301 = vmatpush2.msra.mxu0 0.0
  %2302 = vmatprep.subr.mxu0 0.0
  %2303 = vmatpush2.msra.mxu0 0.0
  %2304 = vmatprep.mubr.f32.mxu0 0.0
  %2305 = vmatmul.mubr.f32.gmra.mxu0 %v2238
  %v2306 = vpop.f32.mrf.mxu0
  %v2307 = vadd.f32 0.0, %v2306
  %v2308 = vpop.f32.mrf.mxu0
  %2309 = vdwg.mxu0
  %2310 = vrot.lane.b32.xlu0 %v1972, 120
  %v2311 = vpop.permute.xlu0 %2310
  %2312 = vrot.lane.b32.xlu0 %v1972, 88
  %v2313 = vpop.permute.xlu0 %2312
  %v2314 = vsel %vm185, %v2311, 0
  %v2316 = vsel %vm185, %v2313, 0
  %2318 = vmatprep.subr.mxu0 0.0
  %2319 = vmatpush1.xpose.msra.mxu0 0.0
  %2320 = vmatprep.subr.mxu0 0.0
  %2321 = vmatpush1.xpose.msra.mxu0 0.0
  %2322 = vmatprep.subr.mxu0 0.0
  %2323 = vmatpush1.xpose.msra.mxu0 0.0
  %2324 = vmatprep.subr.mxu0 0.0
  %2325 = vmatpush1.xpose.msra.mxu0 0.0
  %2326 = vmatprep.subr.mxu0 0.0
  %2327 = vmatpush1.xpose.msra.mxu0 0.0
  %2328 = vmatprep.subr.mxu0 0.0
  %2329 = vmatpush1.xpose.msra.mxu0 0.0
  %2330 = vmatprep.subr.mxu0 0.0
  %2331 = vmatpush1.xpose.msra.mxu0 0.0
  %2332 = vmatprep.subr.mxu0 0.0
  %2333 = vmatpush1.xpose.msra.mxu0 0.0
  %2334 = vmatprep.subr.mxu0 0.0
  %2335 = vmatpush1.xpose.msra.mxu0 0.0
  %2336 = vmatprep.subr.mxu0 0.0
  %2337 = vmatpush1.xpose.msra.mxu0 0.0
  %2338 = vmatprep.subr.mxu0 0.0
  %2339 = vmatpush1.xpose.msra.mxu0 0.0
  %2340 = vmatprep.subr.mxu0 0.0
  %2341 = vmatpush1.xpose.msra.mxu0 0.0
  %2342 = vmatprep.subr.mxu0 0.0
  %2343 = vmatpush1.xpose.msra.mxu0 0.0
  %2344 = vmatprep.subr.mxu0 0.0
  %2345 = vmatpush1.xpose.msra.mxu0 0.0
  %2346 = vmatprep.subr.mxu0 0.0
  %2347 = vmatpush1.xpose.msra.mxu0 0.0
  %2348 = vmatprep.subr.mxu0 0.0
  %2349 = vmatpush1.xpose.msra.mxu0 %v2316
  %2350 = vmatprep.subr.mxu0 0.0
  %2351 = vmatpush2.xpose.msra.mxu0 0.0
  %2352 = vmatprep.subr.mxu0 0.0
  %2353 = vmatpush2.xpose.msra.mxu0 0.0
  %2354 = vmatprep.subr.mxu0 0.0
  %2355 = vmatpush2.xpose.msra.mxu0 0.0
  %2356 = vmatprep.subr.mxu0 0.0
  %2357 = vmatpush2.xpose.msra.mxu0 0.0
  %2358 = vmatprep.subr.mxu0 0.0
  %2359 = vmatpush2.xpose.msra.mxu0 0.0
  %2360 = vmatprep.subr.mxu0 0.0
  %2361 = vmatpush2.xpose.msra.mxu0 0.0
  %2362 = vmatprep.subr.mxu0 0.0
  %2363 = vmatpush2.xpose.msra.mxu0 0.0
  %2364 = vmatprep.subr.mxu0 0.0
  %2365 = vmatpush2.xpose.msra.mxu0 0.0
  %2366 = vmatprep.subr.mxu0 0.0
  %2367 = vmatpush2.xpose.msra.mxu0 0.0
  %2368 = vmatprep.subr.mxu0 0.0
  %2369 = vmatpush2.xpose.msra.mxu0 0.0
  %2370 = vmatprep.subr.mxu0 0.0
  %2371 = vmatpush2.xpose.msra.mxu0 0.0
  %2372 = vmatprep.subr.mxu0 0.0
  %2373 = vmatpush2.xpose.msra.mxu0 0.0
  %2374 = vmatprep.subr.mxu0 0.0
  %2375 = vmatpush2.xpose.msra.mxu0 0.0
  %2376 = vmatprep.subr.mxu0 0.0
  %2377 = vmatpush2.xpose.msra.mxu0 0.0
  %2378 = vmatprep.subr.mxu0 0.0
  %2379 = vmatpush2.xpose.msra.mxu0 0.0
  %2380 = vmatprep.subr.mxu0 0.0
  %2381 = vmatpush2.xpose.msra.mxu0 0.0
  %2382 = vmatprep.mubr.f32.mxu0 0.0
  %2383 = vmatmul.mubr.f32.gmra.mxu0 %v2314
  %v2384 = vpop.f32.mrf.mxu0
  %v2385 = vadd.f32 0.0, %v2384
  %v2386 = vpop.f32.mrf.mxu0
  %2387 = vdwg.mxu0
  %2388 = vrot.lane.b32.xlu0 %v1975, 120
  %v2389 = vpop.permute.xlu0 %2388
  %2390 = vrot.lane.b32.xlu0 %v1975, 88
  %v2391 = vpop.permute.xlu0 %2390
  %v2392 = vsel %vm185, %v2389, 0
  %v2394 = vsel %vm185, %v2391, 0
  %2396 = vmatprep.subr.mxu0 0.0
  %2397 = vmatpush1.xpose.msra.mxu0 0.0
  %2398 = vmatprep.subr.mxu0 0.0
  %2399 = vmatpush1.xpose.msra.mxu0 0.0
  %2400 = vmatprep.subr.mxu0 0.0
  %2401 = vmatpush1.xpose.msra.mxu0 0.0
  %2402 = vmatprep.subr.mxu0 0.0
  %2403 = vmatpush1.xpose.msra.mxu0 0.0
  %2404 = vmatprep.subr.mxu0 0.0
  %2405 = vmatpush1.xpose.msra.mxu0 0.0
  %2406 = vmatprep.subr.mxu0 0.0
  %2407 = vmatpush1.xpose.msra.mxu0 0.0
  %2408 = vmatprep.subr.mxu0 0.0
  %2409 = vmatpush1.xpose.msra.mxu0 0.0
  %2410 = vmatprep.subr.mxu0 0.0
  %2411 = vmatpush1.xpose.msra.mxu0 0.0
  %2412 = vmatprep.subr.mxu0 0.0
  %2413 = vmatpush1.xpose.msra.mxu0 0.0
  %2414 = vmatprep.subr.mxu0 0.0
  %2415 = vmatpush1.xpose.msra.mxu0 0.0
  %2416 = vmatprep.subr.mxu0 0.0
  %2417 = vmatpush1.xpose.msra.mxu0 0.0
  %2418 = vmatprep.subr.mxu0 0.0
  %2419 = vmatpush1.xpose.msra.mxu0 0.0
  %2420 = vmatprep.subr.mxu0 0.0
  %2421 = vmatpush1.xpose.msra.mxu0 0.0
  %2422 = vmatprep.subr.mxu0 0.0
  %2423 = vmatpush1.xpose.msra.mxu0 0.0
  %2424 = vmatprep.subr.mxu0 0.0
  %2425 = vmatpush1.xpose.msra.mxu0 0.0
  %2426 = vmatprep.subr.mxu0 0.0
  %2427 = vmatpush1.xpose.msra.mxu0 %v2394
  %2428 = vmatprep.subr.mxu0 0.0
  %2429 = vmatpush2.xpose.msra.mxu0 0.0
  %2430 = vmatprep.subr.mxu0 0.0
  %2431 = vmatpush2.xpose.msra.mxu0 0.0
  %2432 = vmatprep.subr.mxu0 0.0
  %2433 = vmatpush2.xpose.msra.mxu0 0.0
  %2434 = vmatprep.subr.mxu0 0.0
  %2435 = vmatpush2.xpose.msra.mxu0 0.0
  %2436 = vmatprep.subr.mxu0 0.0
  %2437 = vmatpush2.xpose.msra.mxu0 0.0
  %2438 = vmatprep.subr.mxu0 0.0
  %2439 = vmatpush2.xpose.msra.mxu0 0.0
  %2440 = vmatprep.subr.mxu0 0.0
  %2441 = vmatpush2.xpose.msra.mxu0 0.0
  %2442 = vmatprep.subr.mxu0 0.0
  %2443 = vmatpush2.xpose.msra.mxu0 0.0
  %2444 = vmatprep.subr.mxu0 0.0
  %2445 = vmatpush2.xpose.msra.mxu0 0.0
  %2446 = vmatprep.subr.mxu0 0.0
  %2447 = vmatpush2.xpose.msra.mxu0 0.0
  %2448 = vmatprep.subr.mxu0 0.0
  %2449 = vmatpush2.xpose.msra.mxu0 0.0
  %2450 = vmatprep.subr.mxu0 0.0
  %2451 = vmatpush2.xpose.msra.mxu0 0.0
  %2452 = vmatprep.subr.mxu0 0.0
  %2453 = vmatpush2.xpose.msra.mxu0 0.0
  %2454 = vmatprep.subr.mxu0 0.0
  %2455 = vmatpush2.xpose.msra.mxu0 0.0
  %2456 = vmatprep.subr.mxu0 0.0
  %2457 = vmatpush2.xpose.msra.mxu0 0.0
  %2458 = vmatprep.subr.mxu0 0.0
  %2459 = vmatpush2.xpose.msra.mxu0 0.0
  %2460 = vmatprep.mubr.f32.mxu0 0.0
  %2461 = vmatmul.mubr.f32.gmra.mxu0 %v2392
  %v2462 = vpop.f32.mrf.mxu0
  %v2463 = vadd.f32 0.0, %v2462
  %v2464 = vpop.f32.mrf.mxu0
  %2465 = vdwg.mxu0
  %v2466 = vmul.f32 %v2385, 0.35355338
  %v2467 = vmul.f32 %v2463, 0.35355338
  %v2468 = vadd.f32 %v2466, %v344
  %v2469 = vadd.f32 %v2467, %v348
  %v2470 = vsel %vm185, %v2468, -inf
  %2471 = vmax.xlane.f32.xlu0 %v2470
  %v2472 = vpop.xlane.xlu0 %2471
  %v2473 = vsel %vm185, %v2469, -inf
  %2474 = vmax.xlane.f32.xlu0 %v2473
  %v2475 = vpop.xlane.xlu0 %2474
  %v2476 = vsub.f32 %v2468, %v2472
  %v2477 = vsub.f32 %v2469, %v2475
  %v2478 = vmul.f32 %v2476, 1.442695
  %v2479 = vpow.pop %v2478
  %v2480 = vmul.f32 %v2477, 1.442695
  %v2481 = vpow.pop %v2480
  %v2482 = vsel %vm185, %v2479, 0.0
  %2483 = vadd.xlane.f32.xlu0 %v2482
  %v2484 = vpop.xlane.xlu0 %2483
  %v2485 = vsel %vm185, %v2481, 0.0
  %2486 = vadd.xlane.f32.xlu0 %v2485
  %v2487 = vpop.xlane.xlu0 %2486
  %v2488 = vrcp.pop %v2484
  %v2489 = vrcp.pop %v2487
  %v2490 = vmul.f32 %v2479, %v2488
  %v2491 = vmul.f32 %v2481, %v2489
  %2492 = vrot.lane.b32.xlu0 %v1972, 56
  %v2493 = vpop.permute.xlu0 %2492
  %v2496 = vsel %vm185, %v2490, 0
  %2498 = vmatprep.subr.mxu0 0.0
  %2499 = vmatpush1.msra.mxu0 0.0
  %2500 = vmatprep.subr.mxu0 0.0
  %2501 = vmatpush1.msra.mxu0 0.0
  %2502 = vmatprep.subr.mxu0 0.0
  %2503 = vmatpush1.msra.mxu0 0.0
  %2504 = vmatprep.subr.mxu0 0.0
  %2505 = vmatpush1.msra.mxu0 0.0
  %2506 = vmatprep.subr.mxu0 0.0
  %2507 = vmatpush1.msra.mxu0 0.0
  %2508 = vmatprep.subr.mxu0 0.0
  %2509 = vmatpush1.msra.mxu0 0.0
  %2510 = vmatprep.subr.mxu0 0.0
  %2511 = vmatpush1.msra.mxu0 0.0
  %2512 = vmatprep.subr.mxu0 0.0
  %2513 = vmatpush1.msra.mxu0 0.0
  %2514 = vmatprep.subr.mxu0 0.0
  %2515 = vmatpush1.msra.mxu0 0.0
  %2516 = vmatprep.subr.mxu0 0.0
  %2517 = vmatpush1.msra.mxu0 0.0
  %2518 = vmatprep.subr.mxu0 0.0
  %2519 = vmatpush1.msra.mxu0 0.0
  %2520 = vmatprep.subr.mxu0 0.0
  %2521 = vmatpush1.msra.mxu0 0.0
  %2522 = vmatprep.subr.mxu0 0.0
  %2523 = vmatpush1.msra.mxu0 0.0
  %2524 = vmatprep.subr.mxu0 0.0
  %2525 = vmatpush1.msra.mxu0 0.0
  %2526 = vmatprep.subr.mxu0 0.0
  %2527 = vmatpush1.msra.mxu0 0.0
  %2528 = vmatprep.subr.mxu0 0.0
  %2529 = vmatpush1.msra.mxu0 %v2493
  %2530 = vmatprep.subr.mxu0 0.0
  %2531 = vmatpush2.msra.mxu0 0.0
  %2532 = vmatprep.subr.mxu0 0.0
  %2533 = vmatpush2.msra.mxu0 0.0
  %2534 = vmatprep.subr.mxu0 0.0
  %2535 = vmatpush2.msra.mxu0 0.0
  %2536 = vmatprep.subr.mxu0 0.0
  %2537 = vmatpush2.msra.mxu0 0.0
  %2538 = vmatprep.subr.mxu0 0.0
  %2539 = vmatpush2.msra.mxu0 0.0
  %2540 = vmatprep.subr.mxu0 0.0
  %2541 = vmatpush2.msra.mxu0 0.0
  %2542 = vmatprep.subr.mxu0 0.0
  %2543 = vmatpush2.msra.mxu0 0.0
  %2544 = vmatprep.subr.mxu0 0.0
  %2545 = vmatpush2.msra.mxu0 0.0
  %2546 = vmatprep.subr.mxu0 0.0
  %2547 = vmatpush2.msra.mxu0 0.0
  %2548 = vmatprep.subr.mxu0 0.0
  %2549 = vmatpush2.msra.mxu0 0.0
  %2550 = vmatprep.subr.mxu0 0.0
  %2551 = vmatpush2.msra.mxu0 0.0
  %2552 = vmatprep.subr.mxu0 0.0
  %2553 = vmatpush2.msra.mxu0 0.0
  %2554 = vmatprep.subr.mxu0 0.0
  %2555 = vmatpush2.msra.mxu0 0.0
  %2556 = vmatprep.subr.mxu0 0.0
  %2557 = vmatpush2.msra.mxu0 0.0
  %2558 = vmatprep.subr.mxu0 0.0
  %2559 = vmatpush2.msra.mxu0 0.0
  %2560 = vmatprep.subr.mxu0 0.0
  %2561 = vmatpush2.msra.mxu0 0.0
  %2562 = vmatprep.mubr.f32.mxu0 0.0
  %2563 = vmatmul.mubr.f32.gmra.mxu0 %v2496
  %v2564 = vpop.f32.mrf.mxu0
  %v2565 = vadd.f32 0.0, %v2564
  %v2566 = vpop.f32.mrf.mxu0
  %2567 = vdwg.mxu0
  %2568 = vrot.lane.b32.xlu0 %v1975, 56
  %v2569 = vpop.permute.xlu0 %2568
  %v2572 = vsel %vm185, %v2491, 0
  %2574 = vmatprep.subr.mxu0 0.0
  %2575 = vmatpush1.msra.mxu0 0.0
  %2576 = vmatprep.subr.mxu0 0.0
  %2577 = vmatpush1.msra.mxu0 0.0
  %2578 = vmatprep.subr.mxu0 0.0
  %2579 = vmatpush1.msra.mxu0 0.0
  %2580 = vmatprep.subr.mxu0 0.0
  %2581 = vmatpush1.msra.mxu0 0.0
  %2582 = vmatprep.subr.mxu0 0.0
  %2583 = vmatpush1.msra.mxu0 0.0
  %2584 = vmatprep.subr.mxu0 0.0
  %2585 = vmatpush1.msra.mxu0 0.0
  %2586 = vmatprep.subr.mxu0 0.0
  %2587 = vmatpush1.msra.mxu0 0.0
  %2588 = vmatprep.subr.mxu0 0.0
  %2589 = vmatpush1.msra.mxu0 0.0
  %2590 = vmatprep.subr.mxu0 0.0
  %2591 = vmatpush1.msra.mxu0 0.0
  %2592 = vmatprep.subr.mxu0 0.0
  %2593 = vmatpush1.msra.mxu0 0.0
  %2594 = vmatprep.subr.mxu0 0.0
  %2595 = vmatpush1.msra.mxu0 0.0
  %2596 = vmatprep.subr.mxu0 0.0
  %2597 = vmatpush1.msra.mxu0 0.0
  %2598 = vmatprep.subr.mxu0 0.0
  %2599 = vmatpush1.msra.mxu0 0.0
  %2600 = vmatprep.subr.mxu0 0.0
  %2601 = vmatpush1.msra.mxu0 0.0
  %2602 = vmatprep.subr.mxu0 0.0
  %2603 = vmatpush1.msra.mxu0 0.0
  %2604 = vmatprep.subr.mxu0 0.0
  %2605 = vmatpush1.msra.mxu0 %v2569
  %2606 = vmatprep.subr.mxu0 0.0
  %2607 = vmatpush2.msra.mxu0 0.0
  %2608 = vmatprep.subr.mxu0 0.0
  %2609 = vmatpush2.msra.mxu0 0.0
  %2610 = vmatprep.subr.mxu0 0.0
  %2611 = vmatpush2.msra.mxu0 0.0
  %2612 = vmatprep.subr.mxu0 0.0
  %2613 = vmatpush2.msra.mxu0 0.0
  %2614 = vmatprep.subr.mxu0 0.0
  %2615 = vmatpush2.msra.mxu0 0.0
  %2616 = vmatprep.subr.mxu0 0.0
  %2617 = vmatpush2.msra.mxu0 0.0
  %2618 = vmatprep.subr.mxu0 0.0
  %2619 = vmatpush2.msra.mxu0 0.0
  %2620 = vmatprep.subr.mxu0 0.0
  %2621 = vmatpush2.msra.mxu0 0.0
  %2622 = vmatprep.subr.mxu0 0.0
  %2623 = vmatpush2.msra.mxu0 0.0
  %2624 = vmatprep.subr.mxu0 0.0
  %2625 = vmatpush2.msra.mxu0 0.0
  %2626 = vmatprep.subr.mxu0 0.0
  %2627 = vmatpush2.msra.mxu0 0.0
  %2628 = vmatprep.subr.mxu0 0.0
  %2629 = vmatpush2.msra.mxu0 0.0
  %2630 = vmatprep.subr.mxu0 0.0
  %2631 = vmatpush2.msra.mxu0 0.0
  %2632 = vmatprep.subr.mxu0 0.0
  %2633 = vmatpush2.msra.mxu0 0.0
  %2634 = vmatprep.subr.mxu0 0.0
  %2635 = vmatpush2.msra.mxu0 0.0
  %2636 = vmatprep.subr.mxu0 0.0
  %2637 = vmatpush2.msra.mxu0 0.0
  %2638 = vmatprep.mubr.f32.mxu0 0.0
  %2639 = vmatmul.mubr.f32.gmra.mxu0 %v2572
  %v2640 = vpop.f32.mrf.mxu0
  %v2641 = vadd.f32 0.0, %v2640
  %v2642 = vpop.f32.mrf.mxu0
  %2643 = vdwg.mxu0
  %2644 = vrot.lane.b32.xlu0 %v1972, 112
  %v2645 = vpop.permute.xlu0 %2644
  %2646 = vrot.lane.b32.xlu0 %v1972, 80
  %v2647 = vpop.permute.xlu0 %2646
  %v2648 = vsel %vm185, %v2645, 0
  %v2650 = vsel %vm185, %v2647, 0
  %2652 = vmatprep.subr.mxu0 0.0
  %2653 = vmatpush1.xpose.msra.mxu0 0.0
  %2654 = vmatprep.subr.mxu0 0.0
  %2655 = vmatpush1.xpose.msra.mxu0 0.0
  %2656 = vmatprep.subr.mxu0 0.0
  %2657 = vmatpush1.xpose.msra.mxu0 0.0
  %2658 = vmatprep.subr.mxu0 0.0
  %2659 = vmatpush1.xpose.msra.mxu0 0.0
  %2660 = vmatprep.subr.mxu0 0.0
  %2661 = vmatpush1.xpose.msra.mxu0 0.0
  %2662 = vmatprep.subr.mxu0 0.0
  %2663 = vmatpush1.xpose.msra.mxu0 0.0
  %2664 = vmatprep.subr.mxu0 0.0
  %2665 = vmatpush1.xpose.msra.mxu0 0.0
  %2666 = vmatprep.subr.mxu0 0.0
  %2667 = vmatpush1.xpose.msra.mxu0 0.0
  %2668 = vmatprep.subr.mxu0 0.0
  %2669 = vmatpush1.xpose.msra.mxu0 0.0
  %2670 = vmatprep.subr.mxu0 0.0
  %2671 = vmatpush1.xpose.msra.mxu0 0.0
  %2672 = vmatprep.subr.mxu0 0.0
  %2673 = vmatpush1.xpose.msra.mxu0 0.0
  %2674 = vmatprep.subr.mxu0 0.0
  %2675 = vmatpush1.xpose.msra.mxu0 0.0
  %2676 = vmatprep.subr.mxu0 0.0
  %2677 = vmatpush1.xpose.msra.mxu0 0.0
  %2678 = vmatprep.subr.mxu0 0.0
  %2679 = vmatpush1.xpose.msra.mxu0 0.0
  %2680 = vmatprep.subr.mxu0 0.0
  %2681 = vmatpush1.xpose.msra.mxu0 0.0
  %2682 = vmatprep.subr.mxu0 0.0
  %2683 = vmatpush1.xpose.msra.mxu0 %v2650
  %2684 = vmatprep.subr.mxu0 0.0
  %2685 = vmatpush2.xpose.msra.mxu0 0.0
  %2686 = vmatprep.subr.mxu0 0.0
  %2687 = vmatpush2.xpose.msra.mxu0 0.0
  %2688 = vmatprep.subr.mxu0 0.0
  %2689 = vmatpush2.xpose.msra.mxu0 0.0
  %2690 = vmatprep.subr.mxu0 0.0
  %2691 = vmatpush2.xpose.msra.mxu0 0.0
  %2692 = vmatprep.subr.mxu0 0.0
  %2693 = vmatpush2.xpose.msra.mxu0 0.0
  %2694 = vmatprep.subr.mxu0 0.0
  %2695 = vmatpush2.xpose.msra.mxu0 0.0
  %2696 = vmatprep.subr.mxu0 0.0
  %2697 = vmatpush2.xpose.msra.mxu0 0.0
  %2698 = vmatprep.subr.mxu0 0.0
  %2699 = vmatpush2.xpose.msra.mxu0 0.0
  %2700 = vmatprep.subr.mxu0 0.0
  %2701 = vmatpush2.xpose.msra.mxu0 0.0
  %2702 = vmatprep.subr.mxu0 0.0
  %2703 = vmatpush2.xpose.msra.mxu0 0.0
  %2704 = vmatprep.subr.mxu0 0.0
  %2705 = vmatpush2.xpose.msra.mxu0 0.0
  %2706 = vmatprep.subr.mxu0 0.0
  %2707 = vmatpush2.xpose.msra.mxu0 0.0
  %2708 = vmatprep.subr.mxu0 0.0
  %2709 = vmatpush2.xpose.msra.mxu0 0.0
  %2710 = vmatprep.subr.mxu0 0.0
  %2711 = vmatpush2.xpose.msra.mxu0 0.0
  %2712 = vmatprep.subr.mxu0 0.0
  %2713 = vmatpush2.xpose.msra.mxu0 0.0
  %2714 = vmatprep.subr.mxu0 0.0
  %2715 = vmatpush2.xpose.msra.mxu0 0.0
  %2716 = vmatprep.mubr.f32.mxu0 0.0
  %2717 = vmatmul.mubr.f32.gmra.mxu0 %v2648
  %v2718 = vpop.f32.mrf.mxu0
  %v2719 = vadd.f32 0.0, %v2718
  %v2720 = vpop.f32.mrf.mxu0
  %2721 = vdwg.mxu0
  %2722 = vrot.lane.b32.xlu0 %v1975, 112
  %v2723 = vpop.permute.xlu0 %2722
  %2724 = vrot.lane.b32.xlu0 %v1975, 80
  %v2725 = vpop.permute.xlu0 %2724
  %v2726 = vsel %vm185, %v2723, 0
  %v2728 = vsel %vm185, %v2725, 0
  %2730 = vmatprep.subr.mxu0 0.0
  %2731 = vmatpush1.xpose.msra.mxu0 0.0
  %2732 = vmatprep.subr.mxu0 0.0
  %2733 = vmatpush1.xpose.msra.mxu0 0.0
  %2734 = vmatprep.subr.mxu0 0.0
  %2735 = vmatpush1.xpose.msra.mxu0 0.0
  %2736 = vmatprep.subr.mxu0 0.0
  %2737 = vmatpush1.xpose.msra.mxu0 0.0
  %2738 = vmatprep.subr.mxu0 0.0
  %2739 = vmatpush1.xpose.msra.mxu0 0.0
  %2740 = vmatprep.subr.mxu0 0.0
  %2741 = vmatpush1.xpose.msra.mxu0 0.0
  %2742 = vmatprep.subr.mxu0 0.0
  %2743 = vmatpush1.xpose.msra.mxu0 0.0
  %2744 = vmatprep.subr.mxu0 0.0
  %2745 = vmatpush1.xpose.msra.mxu0 0.0
  %2746 = vmatprep.subr.mxu0 0.0
  %2747 = vmatpush1.xpose.msra.mxu0 0.0
  %2748 = vmatprep.subr.mxu0 0.0
  %2749 = vmatpush1.xpose.msra.mxu0 0.0
  %2750 = vmatprep.subr.mxu0 0.0
  %2751 = vmatpush1.xpose.msra.mxu0 0.0
  %2752 = vmatprep.subr.mxu0 0.0
  %2753 = vmatpush1.xpose.msra.mxu0 0.0
  %2754 = vmatprep.subr.mxu0 0.0
  %2755 = vmatpush1.xpose.msra.mxu0 0.0
  %2756 = vmatprep.subr.mxu0 0.0
  %2757 = vmatpush1.xpose.msra.mxu0 0.0
  %2758 = vmatprep.subr.mxu0 0.0
  %2759 = vmatpush1.xpose.msra.mxu0 0.0
  %2760 = vmatprep.subr.mxu0 0.0
  %2761 = vmatpush1.xpose.msra.mxu0 %v2728
  %2762 = vmatprep.subr.mxu0 0.0
  %2763 = vmatpush2.xpose.msra.mxu0 0.0
  %2764 = vmatprep.subr.mxu0 0.0
  %2765 = vmatpush2.xpose.msra.mxu0 0.0
  %2766 = vmatprep.subr.mxu0 0.0
  %2767 = vmatpush2.xpose.msra.mxu0 0.0
  %2768 = vmatprep.subr.mxu0 0.0
  %2769 = vmatpush2.xpose.msra.mxu0 0.0
  %2770 = vmatprep.subr.mxu0 0.0
  %2771 = vmatpush2.xpose.msra.mxu0 0.0
  %2772 = vmatprep.subr.mxu0 0.0
  %2773 = vmatpush2.xpose.msra.mxu0 0.0
  %2774 = vmatprep.subr.mxu0 0.0
  %2775 = vmatpush2.xpose.msra.mxu0 0.0
  %2776 = vmatprep.subr.mxu0 0.0
  %2777 = vmatpush2.xpose.msra.mxu0 0.0
  %2778 = vmatprep.subr.mxu0 0.0
  %2779 = vmatpush2.xpose.msra.mxu0 0.0
  %2780 = vmatprep.subr.mxu0 0.0
  %2781 = vmatpush2.xpose.msra.mxu0 0.0
  %2782 = vmatprep.subr.mxu0 0.0
  %2783 = vmatpush2.xpose.msra.mxu0 0.0
  %2784 = vmatprep.subr.mxu0 0.0
  %2785 = vmatpush2.xpose.msra.mxu0 0.0
  %2786 = vmatprep.subr.mxu0 0.0
  %2787 = vmatpush2.xpose.msra.mxu0 0.0
  %2788 = vmatprep.subr.mxu0 0.0
  %2789 = vmatpush2.xpose.msra.mxu0 0.0
  %2790 = vmatprep.subr.mxu0 0.0
  %2791 = vmatpush2.xpose.msra.mxu0 0.0
  %2792 = vmatprep.subr.mxu0 0.0
  %2793 = vmatpush2.xpose.msra.mxu0 0.0
  %2794 = vmatprep.mubr.f32.mxu0 0.0
  %2795 = vmatmul.mubr.f32.gmra.mxu0 %v2726
  %v2796 = vpop.f32.mrf.mxu0
  %v2797 = vadd.f32 0.0, %v2796
  %v2798 = vpop.f32.mrf.mxu0
  %2799 = vdwg.mxu0
  %v2800 = vmul.f32 %v2719, 0.35355338
  %v2801 = vmul.f32 %v2797, 0.35355338
  %v2802 = vadd.f32 %v2800, %v344
  %v2803 = vadd.f32 %v2801, %v348
  %v2804 = vsel %vm185, %v2802, -inf
  %2805 = vmax.xlane.f32.xlu0 %v2804
  %v2806 = vpop.xlane.xlu0 %2805
  %v2807 = vsel %vm185, %v2803, -inf
  %2808 = vmax.xlane.f32.xlu0 %v2807
  %v2809 = vpop.xlane.xlu0 %2808
  %v2810 = vsub.f32 %v2802, %v2806
  %v2811 = vsub.f32 %v2803, %v2809
  %v2812 = vmul.f32 %v2810, 1.442695
  %v2813 = vpow.pop %v2812
  %v2814 = vmul.f32 %v2811, 1.442695
  %v2815 = vpow.pop %v2814
  %v2816 = vsel %vm185, %v2813, 0.0
  %2817 = vadd.xlane.f32.xlu0 %v2816
  %v2818 = vpop.xlane.xlu0 %2817
  %v2819 = vsel %vm185, %v2815, 0.0
  %2820 = vadd.xlane.f32.xlu0 %v2819
  %v2821 = vpop.xlane.xlu0 %2820
  %v2822 = vrcp.pop %v2818
  %v2823 = vrcp.pop %v2821
  %v2824 = vmul.f32 %v2813, %v2822
  %v2825 = vmul.f32 %v2815, %v2823
  %2826 = vrot.lane.b32.xlu0 %v1972, 48
  %v2827 = vpop.permute.xlu0 %2826
  %v2830 = vsel %vm185, %v2824, 0
  %2832 = vmatprep.subr.mxu0 0.0
  %2833 = vmatpush1.msra.mxu0 0.0
  %2834 = vmatprep.subr.mxu0 0.0
  %2835 = vmatpush1.msra.mxu0 0.0
  %2836 = vmatprep.subr.mxu0 0.0
  %2837 = vmatpush1.msra.mxu0 0.0
  %2838 = vmatprep.subr.mxu0 0.0
  %2839 = vmatpush1.msra.mxu0 0.0
  %2840 = vmatprep.subr.mxu0 0.0
  %2841 = vmatpush1.msra.mxu0 0.0
  %2842 = vmatprep.subr.mxu0 0.0
  %2843 = vmatpush1.msra.mxu0 0.0
  %2844 = vmatprep.subr.mxu0 0.0
  %2845 = vmatpush1.msra.mxu0 0.0
  %2846 = vmatprep.subr.mxu0 0.0
  %2847 = vmatpush1.msra.mxu0 0.0
  %2848 = vmatprep.subr.mxu0 0.0
  %2849 = vmatpush1.msra.mxu0 0.0
  %2850 = vmatprep.subr.mxu0 0.0
  %2851 = vmatpush1.msra.mxu0 0.0
  %2852 = vmatprep.subr.mxu0 0.0
  %2853 = vmatpush1.msra.mxu0 0.0
  %2854 = vmatprep.subr.mxu0 0.0
  %2855 = vmatpush1.msra.mxu0 0.0
  %2856 = vmatprep.subr.mxu0 0.0
  %2857 = vmatpush1.msra.mxu0 0.0
  %2858 = vmatprep.subr.mxu0 0.0
  %2859 = vmatpush1.msra.mxu0 0.0
  %2860 = vmatprep.subr.mxu0 0.0
  %2861 = vmatpush1.msra.mxu0 0.0
  %2862 = vmatprep.subr.mxu0 0.0
  %2863 = vmatpush1.msra.mxu0 %v2827
  %2864 = vmatprep.subr.mxu0 0.0
  %2865 = vmatpush2.msra.mxu0 0.0
  %2866 = vmatprep.subr.mxu0 0.0
  %2867 = vmatpush2.msra.mxu0 0.0
  %2868 = vmatprep.subr.mxu0 0.0
  %2869 = vmatpush2.msra.mxu0 0.0
  %2870 = vmatprep.subr.mxu0 0.0
  %2871 = vmatpush2.msra.mxu0 0.0
  %2872 = vmatprep.subr.mxu0 0.0
  %2873 = vmatpush2.msra.mxu0 0.0
  %2874 = vmatprep.subr.mxu0 0.0
  %2875 = vmatpush2.msra.mxu0 0.0
  %2876 = vmatprep.subr.mxu0 0.0
  %2877 = vmatpush2.msra.mxu0 0.0
  %2878 = vmatprep.subr.mxu0 0.0
  %2879 = vmatpush2.msra.mxu0 0.0
  %2880 = vmatprep.subr.mxu0 0.0
  %2881 = vmatpush2.msra.mxu0 0.0
  %2882 = vmatprep.subr.mxu0 0.0
  %2883 = vmatpush2.msra.mxu0 0.0
  %2884 = vmatprep.subr.mxu0 0.0
  %2885 = vmatpush2.msra.mxu0 0.0
  %2886 = vmatprep.subr.mxu0 0.0
  %2887 = vmatpush2.msra.mxu0 0.0
  %2888 = vmatprep.subr.mxu0 0.0
  %2889 = vmatpush2.msra.mxu0 0.0
  %2890 = vmatprep.subr.mxu0 0.0
  %2891 = vmatpush2.msra.mxu0 0.0
  %2892 = vmatprep.subr.mxu0 0.0
  %2893 = vmatpush2.msra.mxu0 0.0
  %2894 = vmatprep.subr.mxu0 0.0
  %2895 = vmatpush2.msra.mxu0 0.0
  %2896 = vmatprep.mubr.f32.mxu0 0.0
  %2897 = vmatmul.mubr.f32.gmra.mxu0 %v2830
  %v2898 = vpop.f32.mrf.mxu0
  %v2899 = vadd.f32 0.0, %v2898
  %v2900 = vpop.f32.mrf.mxu0
  %2901 = vdwg.mxu0
  %2902 = vrot.lane.b32.xlu0 %v1975, 48
  %v2903 = vpop.permute.xlu0 %2902
  %v2906 = vsel %vm185, %v2825, 0
  %2908 = vmatprep.subr.mxu0 0.0
  %2909 = vmatpush1.msra.mxu0 0.0
  %2910 = vmatprep.subr.mxu0 0.0
  %2911 = vmatpush1.msra.mxu0 0.0
  %2912 = vmatprep.subr.mxu0 0.0
  %2913 = vmatpush1.msra.mxu0 0.0
  %2914 = vmatprep.subr.mxu0 0.0
  %2915 = vmatpush1.msra.mxu0 0.0
  %2916 = vmatprep.subr.mxu0 0.0
  %2917 = vmatpush1.msra.mxu0 0.0
  %2918 = vmatprep.subr.mxu0 0.0
  %2919 = vmatpush1.msra.mxu0 0.0
  %2920 = vmatprep.subr.mxu0 0.0
  %2921 = vmatpush1.msra.mxu0 0.0
  %2922 = vmatprep.subr.mxu0 0.0
  %2923 = vmatpush1.msra.mxu0 0.0
  %2924 = vmatprep.subr.mxu0 0.0
  %2925 = vmatpush1.msra.mxu0 0.0
  %2926 = vmatprep.subr.mxu0 0.0
  %2927 = vmatpush1.msra.mxu0 0.0
  %2928 = vmatprep.subr.mxu0 0.0
  %2929 = vmatpush1.msra.mxu0 0.0
  %2930 = vmatprep.subr.mxu0 0.0
  %2931 = vmatpush1.msra.mxu0 0.0
  %2932 = vmatprep.subr.mxu0 0.0
  %2933 = vmatpush1.msra.mxu0 0.0
  %2934 = vmatprep.subr.mxu0 0.0
  %2935 = vmatpush1.msra.mxu0 0.0
  %2936 = vmatprep.subr.mxu0 0.0
  %2937 = vmatpush1.msra.mxu0 0.0
  %2938 = vmatprep.subr.mxu0 0.0
  %2939 = vmatpush1.msra.mxu0 %v2903
  %2940 = vmatprep.subr.mxu0 0.0
  %2941 = vmatpush2.msra.mxu0 0.0
  %2942 = vmatprep.subr.mxu0 0.0
  %2943 = vmatpush2.msra.mxu0 0.0
  %2944 = vmatprep.subr.mxu0 0.0
  %2945 = vmatpush2.msra.mxu0 0.0
  %2946 = vmatprep.subr.mxu0 0.0
  %2947 = vmatpush2.msra.mxu0 0.0
  %2948 = vmatprep.subr.mxu0 0.0
  %2949 = vmatpush2.msra.mxu0 0.0
  %2950 = vmatprep.subr.mxu0 0.0
  %2951 = vmatpush2.msra.mxu0 0.0
  %2952 = vmatprep.subr.mxu0 0.0
  %2953 = vmatpush2.msra.mxu0 0.0
  %2954 = vmatprep.subr.mxu0 0.0
  %2955 = vmatpush2.msra.mxu0 0.0
  %2956 = vmatprep.subr.mxu0 0.0
  %2957 = vmatpush2.msra.mxu0 0.0
  %2958 = vmatprep.subr.mxu0 0.0
  %2959 = vmatpush2.msra.mxu0 0.0
  %2960 = vmatprep.subr.mxu0 0.0
  %2961 = vmatpush2.msra.mxu0 0.0
  %2962 = vmatprep.subr.mxu0 0.0
  %2963 = vmatpush2.msra.mxu0 0.0
  %2964 = vmatprep.subr.mxu0 0.0
  %2965 = vmatpush2.msra.mxu0 0.0
  %2966 = vmatprep.subr.mxu0 0.0
  %2967 = vmatpush2.msra.mxu0 0.0
  %2968 = vmatprep.subr.mxu0 0.0
  %2969 = vmatpush2.msra.mxu0 0.0
  %2970 = vmatprep.subr.mxu0 0.0
  %2971 = vmatpush2.msra.mxu0 0.0
  %2972 = vmatprep.mubr.f32.mxu0 0.0
  %2973 = vmatmul.mubr.f32.gmra.mxu0 %v2906
  %v2974 = vpop.f32.mrf.mxu0
  %v2975 = vadd.f32 0.0, %v2974
  %v2976 = vpop.f32.mrf.mxu0
  %2977 = vdwg.mxu0
  %2978 = vrot.lane.b32.xlu0 %v1972, 104
  %v2979 = vpop.permute.xlu0 %2978
  %2980 = vrot.lane.b32.xlu0 %v1972, 72
  %v2981 = vpop.permute.xlu0 %2980
  %v2982 = vsel %vm185, %v2979, 0
  %v2984 = vsel %vm185, %v2981, 0
  %2986 = vmatprep.subr.mxu0 0.0
  %2987 = vmatpush1.xpose.msra.mxu0 0.0
  %2988 = vmatprep.subr.mxu0 0.0
  %2989 = vmatpush1.xpose.msra.mxu0 0.0
  %2990 = vmatprep.subr.mxu0 0.0
  %2991 = vmatpush1.xpose.msra.mxu0 0.0
  %2992 = vmatprep.subr.mxu0 0.0
  %2993 = vmatpush1.xpose.msra.mxu0 0.0
  %2994 = vmatprep.subr.mxu0 0.0
  %2995 = vmatpush1.xpose.msra.mxu0 0.0
  %2996 = vmatprep.subr.mxu0 0.0
  %2997 = vmatpush1.xpose.msra.mxu0 0.0
  %2998 = vmatprep.subr.mxu0 0.0
  %2999 = vmatpush1.xpose.msra.mxu0 0.0
  %3000 = vmatprep.subr.mxu0 0.0
  %3001 = vmatpush1.xpose.msra.mxu0 0.0
  %3002 = vmatprep.subr.mxu0 0.0
  %3003 = vmatpush1.xpose.msra.mxu0 0.0
  %3004 = vmatprep.subr.mxu0 0.0
  %3005 = vmatpush1.xpose.msra.mxu0 0.0
  %3006 = vmatprep.subr.mxu0 0.0
  %3007 = vmatpush1.xpose.msra.mxu0 0.0
  %3008 = vmatprep.subr.mxu0 0.0
  %3009 = vmatpush1.xpose.msra.mxu0 0.0
  %3010 = vmatprep.subr.mxu0 0.0
  %3011 = vmatpush1.xpose.msra.mxu0 0.0
  %3012 = vmatprep.subr.mxu0 0.0
  %3013 = vmatpush1.xpose.msra.mxu0 0.0
  %3014 = vmatprep.subr.mxu0 0.0
  %3015 = vmatpush1.xpose.msra.mxu0 0.0
  %3016 = vmatprep.subr.mxu0 0.0
  %3017 = vmatpush1.xpose.msra.mxu0 %v2984
  %3018 = vmatprep.subr.mxu0 0.0
  %3019 = vmatpush2.xpose.msra.mxu0 0.0
  %3020 = vmatprep.subr.mxu0 0.0
  %3021 = vmatpush2.xpose.msra.mxu0 0.0
  %3022 = vmatprep.subr.mxu0 0.0
  %3023 = vmatpush2.xpose.msra.mxu0 0.0
  %3024 = vmatprep.subr.mxu0 0.0
  %3025 = vmatpush2.xpose.msra.mxu0 0.0
  %3026 = vmatprep.subr.mxu0 0.0
  %3027 = vmatpush2.xpose.msra.mxu0 0.0
  %3028 = vmatprep.subr.mxu0 0.0
  %3029 = vmatpush2.xpose.msra.mxu0 0.0
  %3030 = vmatprep.subr.mxu0 0.0
  %3031 = vmatpush2.xpose.msra.mxu0 0.0
  %3032 = vmatprep.subr.mxu0 0.0
  %3033 = vmatpush2.xpose.msra.mxu0 0.0
  %3034 = vmatprep.subr.mxu0 0.0
  %3035 = vmatpush2.xpose.msra.mxu0 0.0
  %3036 = vmatprep.subr.mxu0 0.0
  %3037 = vmatpush2.xpose.msra.mxu0 0.0
  %3038 = vmatprep.subr.mxu0 0.0
  %3039 = vmatpush2.xpose.msra.mxu0 0.0
  %3040 = vmatprep.subr.mxu0 0.0
  %3041 = vmatpush2.xpose.msra.mxu0 0.0
  %3042 = vmatprep.subr.mxu0 0.0
  %3043 = vmatpush2.xpose.msra.mxu0 0.0
  %3044 = vmatprep.subr.mxu0 0.0
  %3045 = vmatpush2.xpose.msra.mxu0 0.0
  %3046 = vmatprep.subr.mxu0 0.0
  %3047 = vmatpush2.xpose.msra.mxu0 0.0
  %3048 = vmatprep.subr.mxu0 0.0
  %3049 = vmatpush2.xpose.msra.mxu0 0.0
  %3050 = vmatprep.mubr.f32.mxu0 0.0
  %3051 = vmatmul.mubr.f32.gmra.mxu0 %v2982
  %v3052 = vpop.f32.mrf.mxu0
  %v3053 = vadd.f32 0.0, %v3052
  %v3054 = vpop.f32.mrf.mxu0
  %3055 = vdwg.mxu0
  %3056 = vrot.lane.b32.xlu0 %v1975, 104
  %v3057 = vpop.permute.xlu0 %3056
  %3058 = vrot.lane.b32.xlu0 %v1975, 72
  %v3059 = vpop.permute.xlu0 %3058
  %v3060 = vsel %vm185, %v3057, 0
  %v3062 = vsel %vm185, %v3059, 0
  %3064 = vmatprep.subr.mxu0 0.0
  %3065 = vmatpush1.xpose.msra.mxu0 0.0
  %3066 = vmatprep.subr.mxu0 0.0
  %3067 = vmatpush1.xpose.msra.mxu0 0.0
  %3068 = vmatprep.subr.mxu0 0.0
  %3069 = vmatpush1.xpose.msra.mxu0 0.0
  %3070 = vmatprep.subr.mxu0 0.0
  %3071 = vmatpush1.xpose.msra.mxu0 0.0
  %3072 = vmatprep.subr.mxu0 0.0
  %3073 = vmatpush1.xpose.msra.mxu0 0.0
  %3074 = vmatprep.subr.mxu0 0.0
  %3075 = vmatpush1.xpose.msra.mxu0 0.0
  %3076 = vmatprep.subr.mxu0 0.0
  %3077 = vmatpush1.xpose.msra.mxu0 0.0
  %3078 = vmatprep.subr.mxu0 0.0
  %3079 = vmatpush1.xpose.msra.mxu0 0.0
  %3080 = vmatprep.subr.mxu0 0.0
  %3081 = vmatpush1.xpose.msra.mxu0 0.0
  %3082 = vmatprep.subr.mxu0 0.0
  %3083 = vmatpush1.xpose.msra.mxu0 0.0
  %3084 = vmatprep.subr.mxu0 0.0
  %3085 = vmatpush1.xpose.msra.mxu0 0.0
  %3086 = vmatprep.subr.mxu0 0.0
  %3087 = vmatpush1.xpose.msra.mxu0 0.0
  %3088 = vmatprep.subr.mxu0 0.0
  %3089 = vmatpush1.xpose.msra.mxu0 0.0
  %3090 = vmatprep.subr.mxu0 0.0
  %3091 = vmatpush1.xpose.msra.mxu0 0.0
  %3092 = vmatprep.subr.mxu0 0.0
  %3093 = vmatpush1.xpose.msra.mxu0 0.0
  %3094 = vmatprep.subr.mxu0 0.0
  %3095 = vmatpush1.xpose.msra.mxu0 %v3062
  %3096 = vmatprep.subr.mxu0 0.0
  %3097 = vmatpush2.xpose.msra.mxu0 0.0
  %3098 = vmatprep.subr.mxu0 0.0
  %3099 = vmatpush2.xpose.msra.mxu0 0.0
  %3100 = vmatprep.subr.mxu0 0.0
  %3101 = vmatpush2.xpose.msra.mxu0 0.0
  %3102 = vmatprep.subr.mxu0 0.0
  %3103 = vmatpush2.xpose.msra.mxu0 0.0
  %3104 = vmatprep.subr.mxu0 0.0
  %3105 = vmatpush2.xpose.msra.mxu0 0.0
  %3106 = vmatprep.subr.mxu0 0.0
  %3107 = vmatpush2.xpose.msra.mxu0 0.0
  %3108 = vmatprep.subr.mxu0 0.0
  %3109 = vmatpush2.xpose.msra.mxu0 0.0
  %3110 = vmatprep.subr.mxu0 0.0
  %3111 = vmatpush2.xpose.msra.mxu0 0.0
  %3112 = vmatprep.subr.mxu0 0.0
  %3113 = vmatpush2.xpose.msra.mxu0 0.0
  %3114 = vmatprep.subr.mxu0 0.0
  %3115 = vmatpush2.xpose.msra.mxu0 0.0
  %3116 = vmatprep.subr.mxu0 0.0
  %3117 = vmatpush2.xpose.msra.mxu0 0.0
  %3118 = vmatprep.subr.mxu0 0.0
  %3119 = vmatpush2.xpose.msra.mxu0 0.0
  %3120 = vmatprep.subr.mxu0 0.0
  %3121 = vmatpush2.xpose.msra.mxu0 0.0
  %3122 = vmatprep.subr.mxu0 0.0
  %3123 = vmatpush2.xpose.msra.mxu0 0.0
  %3124 = vmatprep.subr.mxu0 0.0
  %3125 = vmatpush2.xpose.msra.mxu0 0.0
  %3126 = vmatprep.subr.mxu0 0.0
  %3127 = vmatpush2.xpose.msra.mxu0 0.0
  %3128 = vmatprep.mubr.f32.mxu0 0.0
  %3129 = vmatmul.mubr.f32.gmra.mxu0 %v3060
  %v3130 = vpop.f32.mrf.mxu0
  %v3131 = vadd.f32 0.0, %v3130
  %v3132 = vpop.f32.mrf.mxu0
  %3133 = vdwg.mxu0
  %v3134 = vmul.f32 %v3053, 0.35355338
  %v3135 = vmul.f32 %v3131, 0.35355338
  %v3136 = vadd.f32 %v3134, %v344
  %v3137 = vadd.f32 %v3135, %v348
  %v3138 = vsel %vm185, %v3136, -inf
  %3139 = vmax.xlane.f32.xlu0 %v3138
  %v3140 = vpop.xlane.xlu0 %3139
  %v3141 = vsel %vm185, %v3137, -inf
  %3142 = vmax.xlane.f32.xlu0 %v3141
  %v3143 = vpop.xlane.xlu0 %3142
  %v3144 = vsub.f32 %v3136, %v3140
  %v3145 = vsub.f32 %v3137, %v3143
  %v3146 = vmul.f32 %v3144, 1.442695
  %v3147 = vpow.pop %v3146
  %v3148 = vmul.f32 %v3145, 1.442695
  %v3149 = vpow.pop %v3148
  %v3150 = vsel %vm185, %v3147, 0.0
  %3151 = vadd.xlane.f32.xlu0 %v3150
  %v3152 = vpop.xlane.xlu0 %3151
  %v3153 = vsel %vm185, %v3149, 0.0
  %3154 = vadd.xlane.f32.xlu0 %v3153
  %v3155 = vpop.xlane.xlu0 %3154
  %v3156 = vrcp.pop %v3152
  %v3157 = vrcp.pop %v3155
  %v3158 = vmul.f32 %v3147, %v3156
  %v3159 = vmul.f32 %v3149, %v3157
  %3160 = vrot.lane.b32.xlu0 %v1972, 40
  %v3161 = vpop.permute.xlu0 %3160
  %v3164 = vsel %vm185, %v3158, 0
  %3166 = vmatprep.subr.mxu0 0.0
  %3167 = vmatpush1.msra.mxu0 0.0
  %3168 = vmatprep.subr.mxu0 0.0
  %3169 = vmatpush1.msra.mxu0 0.0
  %3170 = vmatprep.subr.mxu0 0.0
  %3171 = vmatpush1.msra.mxu0 0.0
  %3172 = vmatprep.subr.mxu0 0.0
  %3173 = vmatpush1.msra.mxu0 0.0
  %3174 = vmatprep.subr.mxu0 0.0
  %3175 = vmatpush1.msra.mxu0 0.0
  %3176 = vmatprep.subr.mxu0 0.0
  %3177 = vmatpush1.msra.mxu0 0.0
  %3178 = vmatprep.subr.mxu0 0.0
  %3179 = vmatpush1.msra.mxu0 0.0
  %3180 = vmatprep.subr.mxu0 0.0
  %3181 = vmatpush1.msra.mxu0 0.0
  %3182 = vmatprep.subr.mxu0 0.0
  %3183 = vmatpush1.msra.mxu0 0.0
  %3184 = vmatprep.subr.mxu0 0.0
  %3185 = vmatpush1.msra.mxu0 0.0
  %3186 = vmatprep.subr.mxu0 0.0
  %3187 = vmatpush1.msra.mxu0 0.0
  %3188 = vmatprep.subr.mxu0 0.0
  %3189 = vmatpush1.msra.mxu0 0.0
  %3190 = vmatprep.subr.mxu0 0.0
  %3191 = vmatpush1.msra.mxu0 0.0
  %3192 = vmatprep.subr.mxu0 0.0
  %3193 = vmatpush1.msra.mxu0 0.0
  %3194 = vmatprep.subr.mxu0 0.0
  %3195 = vmatpush1.msra.mxu0 0.0
  %3196 = vmatprep.subr.mxu0 0.0
  %3197 = vmatpush1.msra.mxu0 %v3161
  %3198 = vmatprep.subr.mxu0 0.0
  %3199 = vmatpush2.msra.mxu0 0.0
  %3200 = vmatprep.subr.mxu0 0.0
  %3201 = vmatpush2.msra.mxu0 0.0
  %3202 = vmatprep.subr.mxu0 0.0
  %3203 = vmatpush2.msra.mxu0 0.0
  %3204 = vmatprep.subr.mxu0 0.0
  %3205 = vmatpush2.msra.mxu0 0.0
  %3206 = vmatprep.subr.mxu0 0.0
  %3207 = vmatpush2.msra.mxu0 0.0
  %3208 = vmatprep.subr.mxu0 0.0
  %3209 = vmatpush2.msra.mxu0 0.0
  %3210 = vmatprep.subr.mxu0 0.0
  %3211 = vmatpush2.msra.mxu0 0.0
  %3212 = vmatprep.subr.mxu0 0.0
  %3213 = vmatpush2.msra.mxu0 0.0
  %3214 = vmatprep.subr.mxu0 0.0
  %3215 = vmatpush2.msra.mxu0 0.0
  %3216 = vmatprep.subr.mxu0 0.0
  %3217 = vmatpush2.msra.mxu0 0.0
  %3218 = vmatprep.subr.mxu0 0.0
  %3219 = vmatpush2.msra.mxu0 0.0
  %3220 = vmatprep.subr.mxu0 0.0
  %3221 = vmatpush2.msra.mxu0 0.0
  %3222 = vmatprep.subr.mxu0 0.0
  %3223 = vmatpush2.msra.mxu0 0.0
  %3224 = vmatprep.subr.mxu0 0.0
  %3225 = vmatpush2.msra.mxu0 0.0
  %3226 = vmatprep.subr.mxu0 0.0
  %3227 = vmatpush2.msra.mxu0 0.0
  %3228 = vmatprep.subr.mxu0 0.0
  %3229 = vmatpush2.msra.mxu0 0.0
  %3230 = vmatprep.mubr.f32.mxu0 0.0
  %3231 = vmatmul.mubr.f32.gmra.mxu0 %v3164
  %v3232 = vpop.f32.mrf.mxu0
  %v3233 = vadd.f32 0.0, %v3232
  %v3234 = vpop.f32.mrf.mxu0
  %3235 = vdwg.mxu0
  %3236 = vrot.lane.b32.xlu0 %v1975, 40
  %v3237 = vpop.permute.xlu0 %3236
  %v3240 = vsel %vm185, %v3159, 0
  %3242 = vmatprep.subr.mxu0 0.0
  %3243 = vmatpush1.msra.mxu0 0.0
  %3244 = vmatprep.subr.mxu0 0.0
  %3245 = vmatpush1.msra.mxu0 0.0
  %3246 = vmatprep.subr.mxu0 0.0
  %3247 = vmatpush1.msra.mxu0 0.0
  %3248 = vmatprep.subr.mxu0 0.0
  %3249 = vmatpush1.msra.mxu0 0.0
  %3250 = vmatprep.subr.mxu0 0.0
  %3251 = vmatpush1.msra.mxu0 0.0
  %3252 = vmatprep.subr.mxu0 0.0
  %3253 = vmatpush1.msra.mxu0 0.0
  %3254 = vmatprep.subr.mxu0 0.0
  %3255 = vmatpush1.msra.mxu0 0.0
  %3256 = vmatprep.subr.mxu0 0.0
  %3257 = vmatpush1.msra.mxu0 0.0
  %3258 = vmatprep.subr.mxu0 0.0
  %3259 = vmatpush1.msra.mxu0 0.0
  %3260 = vmatprep.subr.mxu0 0.0
  %3261 = vmatpush1.msra.mxu0 0.0
  %3262 = vmatprep.subr.mxu0 0.0
  %3263 = vmatpush1.msra.mxu0 0.0
  %3264 = vmatprep.subr.mxu0 0.0
  %3265 = vmatpush1.msra.mxu0 0.0
  %3266 = vmatprep.subr.mxu0 0.0
  %3267 = vmatpush1.msra.mxu0 0.0
  %3268 = vmatprep.subr.mxu0 0.0
  %3269 = vmatpush1.msra.mxu0 0.0
  %3270 = vmatprep.subr.mxu0 0.0
  %3271 = vmatpush1.msra.mxu0 0.0
  %3272 = vmatprep.subr.mxu0 0.0
  %3273 = vmatpush1.msra.mxu0 %v3237
  %3274 = vmatprep.subr.mxu0 0.0
  %3275 = vmatpush2.msra.mxu0 0.0
  %3276 = vmatprep.subr.mxu0 0.0
  %3277 = vmatpush2.msra.mxu0 0.0
  %3278 = vmatprep.subr.mxu0 0.0
  %3279 = vmatpush2.msra.mxu0 0.0
  %3280 = vmatprep.subr.mxu0 0.0
  %3281 = vmatpush2.msra.mxu0 0.0
  %3282 = vmatprep.subr.mxu0 0.0
  %3283 = vmatpush2.msra.mxu0 0.0
  %3284 = vmatprep.subr.mxu0 0.0
  %3285 = vmatpush2.msra.mxu0 0.0
  %3286 = vmatprep.subr.mxu0 0.0
  %3287 = vmatpush2.msra.mxu0 0.0
  %3288 = vmatprep.subr.mxu0 0.0
  %3289 = vmatpush2.msra.mxu0 0.0
  %3290 = vmatprep.subr.mxu0 0.0
  %3291 = vmatpush2.msra.mxu0 0.0
  %3292 = vmatprep.subr.mxu0 0.0
  %3293 = vmatpush2.msra.mxu0 0.0
  %3294 = vmatprep.subr.mxu0 0.0
  %3295 = vmatpush2.msra.mxu0 0.0
  %3296 = vmatprep.subr.mxu0 0.0
  %3297 = vmatpush2.msra.mxu0 0.0
  %3298 = vmatprep.subr.mxu0 0.0
  %3299 = vmatpush2.msra.mxu0 0.0
  %3300 = vmatprep.subr.mxu0 0.0
  %3301 = vmatpush2.msra.mxu0 0.0
  %3302 = vmatprep.subr.mxu0 0.0
  %3303 = vmatpush2.msra.mxu0 0.0
  %3304 = vmatprep.subr.mxu0 0.0
  %3305 = vmatpush2.msra.mxu0 0.0
  %3306 = vmatprep.mubr.f32.mxu0 0.0
  %3307 = vmatmul.mubr.f32.gmra.mxu0 %v3240
  %v3308 = vpop.f32.mrf.mxu0
  %v3309 = vadd.f32 0.0, %v3308
  %v3310 = vpop.f32.mrf.mxu0
  %3311 = vdwg.mxu0
  %3314 = vrot.lane.b32.xlu0 %v2565, 8
  %v3315 = vpop.permute.xlu0 %3314
  %3316 = vrot.lane.b32.xlu0 %v2641, 8
  %v3317 = vpop.permute.xlu0 %3316
  %3322 = vrot.lane.b32.xlu0 %v2899, 16
  %v3323 = vpop.permute.xlu0 %3322
  %3324 = vrot.lane.b32.xlu0 %v2975, 16
  %v3325 = vpop.permute.xlu0 %3324
  %3330 = vrot.lane.b32.xlu0 %v3233, 24
  %v3331 = vpop.permute.xlu0 %3330
  %3332 = vrot.lane.b32.xlu0 %v3309, 24
  %v3333 = vpop.permute.xlu0 %3332
  %v3336 = vsel %vm185, %v2231, %v3315
  %v3337 = vsel %vm185, %v2307, %v3317
  %v3338 = vsel %vm1555, %v3336, %v3323
  %v3339 = vsel %vm1555, %v3337, %v3325
  %v3340 = vsel %vm1558, %v3338, %v3331
  %v3341 = vsel %vm1558, %v3339, %v3333
  %v3342 = vpack.c.bf16 %v3341, %v3340
  %v3343 = vlaneseq
  %v3344 = vshrl.u32 %v3343, 7
  %v3345 = vsub.s32 0, %v3344
  %v3346 = vrot.slane %v1914, %v3345
  %v3351 = vunpack.c.l.b16 %v1885
  %v3352 = vunpack.c.l.b16 %v1886
  %v3353 = vunpack.c.l.b16 %v1887
  %v3354 = vunpack.c.l.b16 %v1888
  %v3355 = vpack.c.b16 %v3352, %v3351
  %v3356 = vpack.c.b16 %v3354, %v3353
  %v3360 = vsel %vm46, %v3342, 0
  %3362 = vmatprep.subr.bf16.mxu0 0
  %3363 = vmatpush1.bf16.msra.mxu0 0
  %3364 = vmatprep.subr.bf16.mxu0 0
  %3365 = vmatpush1.bf16.msra.mxu0 0
  %3366 = vmatprep.subr.bf16.mxu0 0
  %3367 = vmatpush1.bf16.msra.mxu0 0
  %3368 = vmatprep.subr.bf16.mxu0 0
  %3369 = vmatpush1.bf16.msra.mxu0 0
  %3370 = vmatprep.subr.bf16.mxu0 0
  %3371 = vmatpush1.bf16.msra.mxu0 0
  %3372 = vmatprep.subr.bf16.mxu0 0
  %3373 = vmatpush1.bf16.msra.mxu0 0
  %3374 = vmatprep.subr.bf16.mxu0 0
  %3375 = vmatpush1.bf16.msra.mxu0 %v3356
  %3376 = vmatprep.subr.bf16.mxu0 0
  %3377 = vmatpush1.bf16.msra.mxu0 %v3355
  %3378 = vmatprep.subr.bf16.mxu0 0
  %3379 = vmatpush2.bf16.msra.mxu0 0
  %3380 = vmatprep.subr.bf16.mxu0 0
  %3381 = vmatpush2.bf16.msra.mxu0 0
  %3382 = vmatprep.subr.bf16.mxu0 0
  %3383 = vmatpush2.bf16.msra.mxu0 0
  %3384 = vmatprep.subr.bf16.mxu0 0
  %3385 = vmatpush2.bf16.msra.mxu0 0
  %3386 = vmatprep.subr.bf16.mxu0 0
  %3387 = vmatpush2.bf16.msra.mxu0 0
  %3388 = vmatprep.subr.bf16.mxu0 0
  %3389 = vmatpush2.bf16.msra.mxu0 0
  %3390 = vmatprep.subr.bf16.mxu0 0
  %3391 = vmatpush2.bf16.msra.mxu0 0
  %3392 = vmatprep.subr.bf16.mxu0 0
  %3393 = vmatpush2.bf16.msra.mxu0 0
  %3394 = vmatprep.mubr.bf16.mxu0 0
  %3395 = vmatmul.mubr.bf16.gmra.mxu0 %v3360
  %v3396 = vpop.f32.mrf.mxu0
  %v3397 = vadd.f32 %v3346, %v3396
  %v3398 = vpop.f32.mrf.mxu0
  %v3399 = vpop.f32.mrf.mxu0
  %v3400 = vadd.f32 %v3346, %v3399
  %v3401 = vpop.f32.mrf.mxu0
  %3402 = vdwg.mxu0
  %v3403 = vadd.f32 %v1875, %v3397
  %v3404 = vadd.f32 %v1876, %v3400
  %v3405 = vsel %vm46, %v3403, 0.0
  %3406 = vadd.xlane.f32.xlu0 %v3405
  %v3407 = vpop.xlane.xlu0 %3406
  %v3408 = vsel %vm46, %v3404, 0.0
  %3409 = vadd.xlane.f32.xlu0 %v3408
  %v3410 = vpop.xlane.xlu0 %3409
  %v3411 = vmul.f32 %v3407, %v53
  %v3412 = vmul.f32 %v3410, %v53
  %v3413 = vsub.f32 %v3403, %v3411
  %v3414 = vsub.f32 %v3404, %v3412
  %v3415 = vmul.f32 %v3413, %v3413
  %v3416 = vmul.f32 %v3414, %v3414
  %v3417 = vsel %vm46, %v3415, 0.0
  %3418 = vadd.xlane.f32.xlu0 %v3417
  %v3419 = vpop.xlane.xlu0 %3418
  %v3420 = vsel %vm46, %v3416, 0.0
  %3421 = vadd.xlane.f32.xlu0 %v3420
  %v3422 = vpop.xlane.xlu0 %3421
  %v3423 = vmul.f32 %v3419, %v53
  %v3424 = vmul.f32 %v3422, %v53
  %v3425 = vadd.f32 %v3423, 1e-12
  %v3426 = vadd.f32 %v3424, 1e-12
  %v3427 = vrsqrt.pop %v3425
  %v3428 = vrsqrt.pop %v3426
  %v3429 = vmul.f32 %v3413, %v3427
  %v3430 = vmul.f32 %v3414, %v3428
  %v3431 = vlaneseq
  %v3432 = vshrl.u32 %v3431, 7
  %v3433 = vsub.s32 1, %v3432
  %v3434 = vrot.slane %v1914, %v3433
  %v3435 = vmul.f32 %v3429, %v3434
  %v3436 = vmul.f32 %v3430, %v3434
  %v3437 = vlaneseq
  %v3438 = vshrl.u32 %v3437, 7
  %v3439 = vsub.s32 2, %v3438
  %v3440 = vrot.slane %v1914, %v3439
  %v3441 = vadd.f32 %v3435, %v3440
  %v3442 = vadd.f32 %v3436, %v3440
  %v3443 = vpack.c.bf16 %v3442, %v3441
  %v3445 = vlaneseq
  %v3446 = vshrl.u32 %v3445, 7
  %v3447 = vsub.s32 0, %v3446
  %v3448 = vrot.slane %v1895, %v3447
  %v3454 = vunpack.c.l.b16 %v1890
  %v3455 = vunpack.c.l.b16 %v1891
  %v3456 = vunpack.c.l.b16 %v1892
  %v3457 = vunpack.c.l.b16 %v1893
  %v3458 = vpack.c.b16 %v3455, %v3454
  %v3459 = vpack.c.b16 %v3457, %v3456
  %v3463 = vsel %vm46, %v3443, 0
  %3465 = vmatprep.subr.bf16.mxu0 0
  %3466 = vmatpush1.bf16.msra.mxu0 0
  %3467 = vmatprep.subr.bf16.mxu0 0
  %3468 = vmatpush1.bf16.msra.mxu0 0
  %3469 = vmatprep.subr.bf16.mxu0 0
  %3470 = vmatpush1.bf16.msra.mxu0 0
  %3471 = vmatprep.subr.bf16.mxu0 0
  %3472 = vmatpush1.bf16.msra.mxu0 0
  %3473 = vmatprep.subr.bf16.mxu0 0
  %3474 = vmatpush1.bf16.msra.mxu0 0
  %3475 = vmatprep.subr.bf16.mxu0 0
  %3476 = vmatpush1.bf16.msra.mxu0 0
  %3477 = vmatprep.subr.bf16.mxu0 0
  %3478 = vmatpush1.bf16.msra.mxu0 %v3459
  %3479 = vmatprep.subr.bf16.mxu0 0
  %3480 = vmatpush1.bf16.msra.mxu0 %v3458
  %3481 = vmatprep.subr.bf16.mxu0 0
  %3482 = vmatpush2.bf16.msra.mxu0 0
  %3483 = vmatprep.subr.bf16.mxu0 0
  %3484 = vmatpush2.bf16.msra.mxu0 0
  %3485 = vmatprep.subr.bf16.mxu0 0
  %3486 = vmatpush2.bf16.msra.mxu0 0
  %3487 = vmatprep.subr.bf16.mxu0 0
  %3488 = vmatpush2.bf16.msra.mxu0 0
  %3489 = vmatprep.subr.bf16.mxu0 0
  %3490 = vmatpush2.bf16.msra.mxu0 0
  %3491 = vmatprep.subr.bf16.mxu0 0
  %3492 = vmatpush2.bf16.msra.mxu0 0
  %3493 = vmatprep.subr.bf16.mxu0 0
  %3494 = vmatpush2.bf16.msra.mxu0 0
  %3495 = vmatprep.subr.bf16.mxu0 0
  %3496 = vmatpush2.bf16.msra.mxu0 0
  %3497 = vmatprep.mubr.bf16.mxu0 0
  %3498 = vmatmul.mubr.bf16.gmra.mxu0 %v3463
  %v3499 = vpop.f32.mrf.mxu0
  %v3500 = vadd.f32 %v3448, %v3499
  %v3501 = vpop.f32.mrf.mxu0
  %v3502 = vpop.f32.mrf.mxu0
  %v3503 = vadd.f32 %v3448, %v3502
  %v3504 = vpop.f32.mrf.mxu0
  %3505 = vdwg.mxu0
  %v3506 = vmul.f32 %v3500, %v3500
  %v3507 = vmul.f32 %v3503, %v3503
  %v3508 = vmul.f32 %v3500, %v3506
  %v3509 = vmul.f32 %v3503, %v3507
  %v3510 = vmul.f32 %v3508, 0.044715
  %v3511 = vmul.f32 %v3509, 0.044715
  %v3512 = vadd.f32 %v3500, %v3510
  %v3513 = vadd.f32 %v3503, %v3511
  %v3514 = vmul.f32 %v3512, 0.7978846
  %v3515 = vmul.f32 %v3513, 0.7978846
  %v3516 = vtanh.pop %v3514
  %v3517 = vtanh.pop %v3515
  %v3518 = vadd.f32 %v3516, 1.0
  %v3519 = vadd.f32 %v3517, 1.0
  %v3520 = vmul.f32 %v3518, 0.5
  %v3521 = vmul.f32 %v3519, 0.5
  %v3522 = vmul.f32 %v3500, %v3520
  %v3523 = vmul.f32 %v3503, %v3521
  %v3524 = vpack.c.bf16 %v3523, %v3522
  %v3525 = vlaneseq
  %v3526 = vshrl.u32 %v3525, 7
  %v3527 = vsub.s32 3, %v3526
  %v3528 = vrot.slane %v1914, %v3527
  %v3545 = vunpack.c.l.b16 %v1897
  %v3546 = vunpack.c.l.b16 %v1898
  %v3547 = vunpack.c.l.b16 %v1899
  %v3548 = vunpack.c.l.b16 %v1900
  %v3549 = vunpack.c.l.b16 %v1901
  %v3550 = vunpack.c.l.b16 %v1902
  %v3551 = vunpack.c.l.b16 %v1903
  %v3552 = vunpack.c.l.b16 %v1904
  %v3553 = vunpack.c.l.b16 %v1905
  %v3554 = vunpack.c.l.b16 %v1906
  %v3555 = vunpack.c.l.b16 %v1907
  %v3556 = vunpack.c.l.b16 %v1908
  %v3557 = vunpack.c.l.b16 %v1909
  %v3558 = vunpack.c.l.b16 %v1910
  %v3559 = vunpack.c.l.b16 %v1911
  %v3560 = vunpack.c.l.b16 %v1912
  %v3561 = vpack.c.b16 %v3546, %v3545
  %v3562 = vpack.c.b16 %v3548, %v3547
  %v3563 = vpack.c.b16 %v3550, %v3549
  %v3564 = vpack.c.b16 %v3552, %v3551
  %v3565 = vpack.c.b16 %v3554, %v3553
  %v3566 = vpack.c.b16 %v3556, %v3555
  %v3567 = vpack.c.b16 %v3558, %v3557
  %v3568 = vpack.c.b16 %v3560, %v3559
  %3577 = vmatprep.subr.bf16.mxu0 0
  %3578 = vmatpush1.bf16.msra.mxu0 %v3568
  %3579 = vmatprep.subr.bf16.mxu0 0
  %3580 = vmatpush1.bf16.msra.mxu0 %v3567
  %3581 = vmatprep.subr.bf16.mxu0 0
  %3582 = vmatpush1.bf16.msra.mxu0 %v3566
  %3583 = vmatprep.subr.bf16.mxu0 0
  %3584 = vmatpush1.bf16.msra.mxu0 %v3565
  %3585 = vmatprep.subr.bf16.mxu0 0
  %3586 = vmatpush1.bf16.msra.mxu0 %v3564
  %3587 = vmatprep.subr.bf16.mxu0 0
  %3588 = vmatpush1.bf16.msra.mxu0 %v3563
  %3589 = vmatprep.subr.bf16.mxu0 0
  %3590 = vmatpush1.bf16.msra.mxu0 %v3562
  %3591 = vmatprep.subr.bf16.mxu0 0
  %3592 = vmatpush1.bf16.msra.mxu0 %v3561
  %3593 = vmatprep.subr.bf16.mxu0 0
  %3594 = vmatpush2.bf16.msra.mxu0 0
  %3595 = vmatprep.subr.bf16.mxu0 0
  %3596 = vmatpush2.bf16.msra.mxu0 0
  %3597 = vmatprep.subr.bf16.mxu0 0
  %3598 = vmatpush2.bf16.msra.mxu0 0
  %3599 = vmatprep.subr.bf16.mxu0 0
  %3600 = vmatpush2.bf16.msra.mxu0 0
  %3601 = vmatprep.subr.bf16.mxu0 0
  %3602 = vmatpush2.bf16.msra.mxu0 0
  %3603 = vmatprep.subr.bf16.mxu0 0
  %3604 = vmatpush2.bf16.msra.mxu0 0
  %3605 = vmatprep.subr.bf16.mxu0 0
  %3606 = vmatpush2.bf16.msra.mxu0 0
  %3607 = vmatprep.subr.bf16.mxu0 0
  %3608 = vmatpush2.bf16.msra.mxu0 0
  %3609 = vmatprep.mubr.bf16.mxu0 0
  %3610 = vmatmul.mubr.bf16.gmra.mxu0 %v3524
  %v3611 = vpop.f32.mrf.mxu0
  %v3612 = vadd.f32 %v3528, %v3611
  %v3613 = vpop.f32.mrf.mxu0
  %v3614 = vpop.f32.mrf.mxu0
  %v3615 = vadd.f32 %v3528, %v3614
  %v3616 = vpop.f32.mrf.mxu0
  %3617 = vdwg.mxu0
  %v3618 = vadd.f32 %v3441, %v3612
  %v3619 = vadd.f32 %v3442, %v3615
  %v3620 = vsel %vm46, %v3618, 0.0
  %3621 = vadd.xlane.f32.xlu0 %v3620
  %v3622 = vpop.xlane.xlu0 %3621
  %v3623 = vsel %vm46, %v3619, 0.0
  %3624 = vadd.xlane.f32.xlu0 %v3623
  %v3625 = vpop.xlane.xlu0 %3624
  %v3626 = vmul.f32 %v3622, %v53
  %v3627 = vmul.f32 %v3625, %v53
  %v3628 = vsub.f32 %v3618, %v3626
  %v3629 = vsub.f32 %v3619, %v3627
  %v3630 = vmul.f32 %v3628, %v3628
  %v3631 = vmul.f32 %v3629, %v3629
  %v3632 = vsel %vm46, %v3630, 0.0
  %3633 = vadd.xlane.f32.xlu0 %v3632
  %v3634 = vpop.xlane.xlu0 %3633
  %v3635 = vsel %vm46, %v3631, 0.0
  %3636 = vadd.xlane.f32.xlu0 %v3635
  %v3637 = vpop.xlane.xlu0 %3636
  %v3638 = vmul.f32 %v3634, %v53
  %v3639 = vmul.f32 %v3637, %v53
  %v3640 = vadd.f32 %v3638, 1e-12
  %v3641 = vadd.f32 %v3639, 1e-12
  %v3642 = vrsqrt.pop %v3640
  %v3643 = vrsqrt.pop %v3641
  %v3644 = vmul.f32 %v3628, %v3642
  %v3645 = vmul.f32 %v3629, %v3643
  %v3646 = vlaneseq
  %v3647 = vshrl.u32 %v3646, 7
  %v3648 = vsub.s32 4, %v3647
  %v3649 = vrot.slane %v1914, %v3648
  %v3650 = vmul.f32 %v3644, %v3649
  %v3651 = vmul.f32 %v3645, %v3649
  %v3652 = vlaneseq
  %v3653 = vshrl.u32 %v3652, 7
  %v3654 = vsub.s32 5, %v3653
  %v3655 = vrot.slane %v1914, %v3654
  %v3656 = vadd.f32 %v3650, %v3655
  %v3657 = vadd.f32 %v3651, %v3655
  %v3658 = vld [vmem:[%s10] sm:$0xf]
  %v3659 = vld [vmem:[%s10 + $0x4] sm:$0xf]
  %v3660 = vld [vmem:[%s10 + $0x8] sm:$0xf]
  %v3661 = vld [vmem:[%s10 + $0xc] sm:$0xf]
  %s3662 = scalar_lea.vmem %s10, 16
  %v3663 = vld [vmem:[%s3662] sm:$0xf]
  %v3664 = vld [vmem:[%s3662 + $0x4] sm:$0xf]
  %v3665 = vld [vmem:[%s3662 + $0x8] sm:$0xf]
  %v3666 = vld [vmem:[%s3662 + $0xc] sm:$0xf]
  %v3667 = vld [vmem:[%s11] sm:$0xf]
  %v3668 = vpack.c.bf16 %v3656, %v3656
  %v3669 = vpack.c.bf16 %v3657, %v3657
  %v3670 = vlaneseq
  %v3671 = vshrl.u32 %v3670, 7
  %v3672 = vsub.s32 0, %v3671
  %v3673 = vrot.slane %v3667, %v3672
  %v3676 = vunpack.c.l.b16 %v3668
  %v3677 = vunpack.c.l.b16 %v3669
  %v3678 = vrot.slane %v3677, 7
  %vm3679 = vcmask 1041409
  %v3680 = vsel %vm3679, %v3678, %v3676
  %v3681 = vpack.c.b16 %v3680, %v3680
  %v3686 = vunpack.c.l.b16 %v3658
  %v3687 = vunpack.c.l.b16 %v3659
  %v3688 = vunpack.c.l.b16 %v3660
  %v3689 = vunpack.c.l.b16 %v3661
  %v3690 = vpack.c.b16 %v3687, %v3686
  %v3691 = vpack.c.b16 %v3689, %v3688
  %v3695 = vsel %vm46, %v3681, 0
  %3697 = vmatprep.subr.bf16.mxu0 0
  %3698 = vmatpush1.bf16.msra.mxu0 0
  %3699 = vmatprep.subr.bf16.mxu0 0
  %3700 = vmatpush1.bf16.msra.mxu0 0
  %3701 = vmatprep.subr.bf16.mxu0 0
  %3702 = vmatpush1.bf16.msra.mxu0 0
  %3703 = vmatprep.subr.bf16.mxu0 0
  %3704 = vmatpush1.bf16.msra.mxu0 0
  %3705 = vmatprep.subr.bf16.mxu0 0
  %3706 = vmatpush1.bf16.msra.mxu0 0
  %3707 = vmatprep.subr.bf16.mxu0 0
  %3708 = vmatpush1.bf16.msra.mxu0 0
  %3709 = vmatprep.subr.bf16.mxu0 0
  %3710 = vmatpush1.bf16.msra.mxu0 %v3691
  %3711 = vmatprep.subr.bf16.mxu0 0
  %3712 = vmatpush1.bf16.msra.mxu0 %v3690
  %3713 = vmatprep.subr.bf16.mxu0 0
  %3714 = vmatpush2.bf16.msra.mxu0 0
  %3715 = vmatprep.subr.bf16.mxu0 0
  %3716 = vmatpush2.bf16.msra.mxu0 0
  %3717 = vmatprep.subr.bf16.mxu0 0
  %3718 = vmatpush2.bf16.msra.mxu0 0
  %3719 = vmatprep.subr.bf16.mxu0 0
  %3720 = vmatpush2.bf16.msra.mxu0 0
  %3721 = vmatprep.subr.bf16.mxu0 0
  %3722 = vmatpush2.bf16.msra.mxu0 0
  %3723 = vmatprep.subr.bf16.mxu0 0
  %3724 = vmatpush2.bf16.msra.mxu0 0
  %3725 = vmatprep.subr.bf16.mxu0 0
  %3726 = vmatpush2.bf16.msra.mxu0 0
  %3727 = vmatprep.subr.bf16.mxu0 0
  %3728 = vmatpush2.bf16.msra.mxu0 0
  %3729 = vmatprep.mubr.bf16.mxu0 0
  %3730 = vmatmul.mubr.bf16.gmra.mxu0 %v3695
  %v3731 = vpop.f32.mrf.mxu0
  %v3732 = vadd.f32 %v3673, %v3731
  %v3733 = vpop.f32.mrf.mxu0
  %v3734 = vpop.f32.mrf.mxu0
  %v3735 = vpop.f32.mrf.mxu0
  %3736 = vdwg.mxu0
  %v3737 = vtanh.pop %v3732
  %v3738 = vpack.c.bf16 %v3737, %v3737
  %v3739 = vlaneseq
  %v3740 = vshrl.u32 %v3739, 7
  %v3741 = vsub.s32 1, %v3740
  %v3742 = vrot.slane %v3667, %v3741
  %v3747 = vunpack.c.l.b16 %v3663
  %v3748 = vunpack.c.l.b16 %v3664
  %v3749 = vunpack.c.l.b16 %v3665
  %v3750 = vunpack.c.l.b16 %v3666
  %v3751 = vpack.c.b16 %v3748, %v3747
  %v3752 = vpack.c.b16 %v3750, %v3749
  %v3756 = vsel %vm46, %v3738, 0
  %3758 = vmatprep.subr.bf16.mxu0 0
  %3759 = vmatpush1.bf16.msra.mxu0 0
  %3760 = vmatprep.subr.bf16.mxu0 0
  %3761 = vmatpush1.bf16.msra.mxu0 0
  %3762 = vmatprep.subr.bf16.mxu0 0
  %3763 = vmatpush1.bf16.msra.mxu0 0
  %3764 = vmatprep.subr.bf16.mxu0 0
  %3765 = vmatpush1.bf16.msra.mxu0 0
  %3766 = vmatprep.subr.bf16.mxu0 0
  %3767 = vmatpush1.bf16.msra.mxu0 0
  %3768 = vmatprep.subr.bf16.mxu0 0
  %3769 = vmatpush1.bf16.msra.mxu0 0
  %3770 = vmatprep.subr.bf16.mxu0 0
  %3771 = vmatpush1.bf16.msra.mxu0 %v3752
  %3772 = vmatprep.subr.bf16.mxu0 0
  %3773 = vmatpush1.bf16.msra.mxu0 %v3751
  %3774 = vmatprep.subr.bf16.mxu0 0
  %3775 = vmatpush2.bf16.msra.mxu0 0
  %3776 = vmatprep.subr.bf16.mxu0 0
  %3777 = vmatpush2.bf16.msra.mxu0 0
  %3778 = vmatprep.subr.bf16.mxu0 0
  %3779 = vmatpush2.bf16.msra.mxu0 0
  %3780 = vmatprep.subr.bf16.mxu0 0
  %3781 = vmatpush2.bf16.msra.mxu0 0
  %3782 = vmatprep.subr.bf16.mxu0 0
  %3783 = vmatpush2.bf16.msra.mxu0 0
  %3784 = vmatprep.subr.bf16.mxu0 0
  %3785 = vmatpush2.bf16.msra.mxu0 0
  %3786 = vmatprep.subr.bf16.mxu0 0
  %3787 = vmatpush2.bf16.msra.mxu0 0
  %3788 = vmatprep.subr.bf16.mxu0 0
  %3789 = vmatpush2.bf16.msra.mxu0 0
  %3790 = vmatprep.mubr.bf16.mxu0 0
  %3791 = vmatmul.mubr.bf16.gmra.mxu0 %v3756
  %v3792 = vpop.f32.mrf.mxu0
  %v3793 = vadd.f32 %v3742, %v3792
  %v3794 = vpop.f32.mrf.mxu0
  %v3795 = vpop.f32.mrf.mxu0
  %v3796 = vpop.f32.mrf.mxu0
  %3797 = vdwg.mxu0
  %v3798 = vmax.f32 %v3793, 0.0
  %v3799 = vlaneseq
  %v3800 = vshrl.u32 %v3799, 7
  %v3801 = vsub.s32 2, %v3800
  %v3802 = vrot.slane %v3667, %v3801
  %v3803 = vmul.f32 %v3798, %v3802
  %vm3804 = vcmask 254976
  %v3805 = vsel %vm3804, %v3803, 0.0
  %3806 = vadd.xlane.f32.xlu0 %v3805
  %v3807 = vpop.xlane.xlu0 %3806
  %v3808 = vlaneseq
  %v3809 = vshrl.u32 %v3808, 7
  %v3810 = vsub.s32 3, %v3809
  %v3811 = vrot.slane %v3667, %v3810
  %v3812 = vadd.f32 %v3807, %v3811
  %vm3813 = vcmask 1024
  %3814 = vst.msk [vmem:[%s12] sm:$0x3] %vm3813, %v3812
  // Predicated region
  $region50: #{bert_regressor_forward.1} parent=0 // pred_check
    _
  $region51: #{bert_regressor_forward.1} parent=0 // pred_check_branch
    %3816 = sbr.rel (0) target = $region53
  $region52: #{bert_regressor_forward.1} parent=0 // pred_region
    _
  $region53: #{bert_regressor_forward.1} parent=0 // pred_fallthru
    _
  // Predicated region
  $region54: #{bert_regressor_forward.1} parent=0 // pred_check
    _
  $region55: #{bert_regressor_forward.1} parent=0 // pred_check_branch
    %3818 = sbr.rel (0) target = $region57
  $region56: #{bert_regressor_forward.1} parent=0 // pred_region
    _
  $region57: #{bert_regressor_forward.1} parent=0 // pred_fallthru
    _

</llo_original>
